<compile_context>
chip_gen: v5e
topology: v5e:2x2
jax: 0.10.0
libtpu: 0.0.40
codegen_flags: <defaults>
</compile_context>

<pallas_src>
import jax
import jax.numpy as jnp
from jax.experimental import pallas as pl
from jax.experimental.pallas import tpu as pltpu

EMB_DIM = 512
HIDDEN = 256
BN_EPS = 1e-5


def siamese_kernel(
    x_ref,        # (2, tb, tk)   bf16 stacked images (x1 in [0], x2 in [1])
    w_enc_ref,    # (tk, 512)     bf16 encoder weight K-tile
    b_enc_ref,    # (1, 512)      f32 encoder bias
    w1s_ref,      # (4, 512, 256) bf16 BN-folded head weight, pre-split
    b1_ref,       # (1, 256)      f32 BN-folded head bias
    w2_ref,       # (1, 256)      f32 final weight row
    b2_ref,       # (1, 1)        f32 final bias
    out_ref,      # (tb, 128)     f32 lane-dense output slab (col 0 is result)
    acc_ref,      # (2*tb, 512)   f32 embedding accumulator scratch
):
    k = pl.program_id(1)
    nk = pl.num_programs(1)

    @pl.when(k == 0)
    def _():
        acc_ref[...] = jnp.zeros_like(acc_ref)

    _, tb, tk = x_ref.shape
    x = x_ref[...].reshape(2 * tb, tk)                      # leading-dim merge
    acc_ref[...] += jnp.dot(x, w_enc_ref[...],
                            preferred_element_type=jnp.float32)

    @pl.when(k == nk - 1)
    def _():
        # finish stand-in encoder: bias + L2 normalize (single rsqrt)
        e = acc_ref[...] + b_enc_ref[...]                   # (2*tb, 512) f32
        sq = jnp.sum(e * e, axis=1, keepdims=True)
        e = e * jax.lax.rsqrt(jnp.maximum(sq, 1e-24))

        emb1 = e[:tb]
        emb2 = e[tb:]

        # pairwise features (algebraically identical to the PyTorch forward)
        diff = emb1 - emb2
        s = emb1 + emb2
        f1 = diff * s            # emb1^2 - emb2^2
        f2 = diff * diff         # (emb1 - emb2)^2
        f3 = emb1 * emb2
        f4 = s

        # Linear(2048,256) with BN folded in, as 4 split-K matmuls (no concat)
        dt = w1s_ref.dtype
        h = jnp.dot(f1.astype(dt), w1s_ref[0], preferred_element_type=jnp.float32)
        h += jnp.dot(f2.astype(dt), w1s_ref[1], preferred_element_type=jnp.float32)
        h += jnp.dot(f3.astype(dt), w1s_ref[2], preferred_element_type=jnp.float32)
        h += jnp.dot(f4.astype(dt), w1s_ref[3], preferred_element_type=jnp.float32)
        h = h + b1_ref[...]

        # ReLU
        h = jnp.maximum(h, 0.0)

        # Linear(256,1) as VPU multiply + lane reduction (avoid N=1 MXU pass)
        o = jnp.sum(h * w2_ref[...], axis=-1, keepdims=True) + b2_ref[...]

        # lane-dense store; wrapper slices column 0
        out_ref[...] = jnp.broadcast_to(o, out_ref.shape)


def _round_up(x, m):
    return ((x + m - 1) // m) * m


def siamese_forward(x1_img, x2_img, params, *, max_tb=256, max_tk=2048):
    B = x1_img.shape[0]
    x1 = x1_img.reshape(B, -1).astype(jnp.float32)
    x2 = x2_img.reshape(B, -1).astype(jnp.float32)
    F = x1.shape[1]

    # Batch tiling: whole (padded) batch in one tile up to max_tb rows; tb is
    # kept a multiple of 8 so sublane alignment is preserved.  (On v7x, split
    # the batch across 2 TCs only when compute-bound; default keeps a single
    # batch tile so the encoder weight is streamed from HBM exactly once.)
    b_tiles = pl.cdiv(B, max_tb)
    tb = _round_up(pl.cdiv(B, b_tiles), 8)
    Bpad = b_tiles * tb

    # K tiling: large tiles (up to max_tk, multiple of 128) so per-step DMA
    # dominates the fixed grid-step overhead; sized to minimize zero padding.
    k_tiles = pl.cdiv(F, max_tk)
    tk = _round_up(pl.cdiv(F, k_tiles), 128)
    Kpad = k_tiles * tk

    def pad2(a, rows, cols):
        return jnp.pad(a, ((0, rows - a.shape[0]), (0, cols - a.shape[1])))

    # fused encoder input: (2, Bpad, Kpad) bf16
    x_stacked = jnp.stack([pad2(x1, Bpad, Kpad),
                           pad2(x2, Bpad, Kpad)], axis=0).astype(jnp.bfloat16)

    # encoder weight padded along K, bf16 (MXU-native; halves the HBM stream)
    w_enc = pad2(params["w_enc"].astype(jnp.float32), Kpad, EMB_DIM)
    w_enc = w_enc.astype(jnp.bfloat16)
    b_enc = params["b_enc"].astype(jnp.float32)

    # fold BatchNorm1d (inference mode) into Linear(2048,256)
    scale = params["gamma"] * jax.lax.rsqrt(params["rvar"] + BN_EPS)   # (1,256)
    w1_folded = params["w1"] * scale                                   # (2048,256)
    b1_folded = (params["b1"] - params["rmean"]) * scale + params["beta"]
    # pre-split into 4 chunks matching [f1,f2,f3,f4] and stack: (4,512,256) bf16
    w1s = w1_folded.reshape(4, EMB_DIM, HIDDEN).astype(jnp.bfloat16)

    w2_row = params["w2"].reshape(1, HIDDEN).astype(jnp.float32)
    b2 = params["b2"].reshape(1, 1).astype(jnp.float32)

    grid = (b_tiles, k_tiles)

    out = pl.pallas_call(
        siamese_kernel,
        out_shape=jax.ShapeDtypeStruct((Bpad, 128), jnp.float32),
        grid_spec=pltpu.PrefetchScalarGridSpec(
            num_scalar_prefetch=0,
            grid=grid,
            in_specs=[
                pl.BlockSpec((2, tb, tk), lambda b, k: (0, b, k)),
                pl.BlockSpec((tk, EMB_DIM), lambda b, k: (k, 0)),
                pl.BlockSpec((1, EMB_DIM), lambda b, k: (0, 0)),
                pl.BlockSpec((4, EMB_DIM, HIDDEN), lambda b, k: (0, 0, 0)),
                pl.BlockSpec((1, HIDDEN), lambda b, k: (0, 0)),
                pl.BlockSpec((1, HIDDEN), lambda b, k: (0, 0)),
                pl.BlockSpec((1, 1), lambda b, k: (0, 0)),
            ],
            out_specs=pl.BlockSpec((tb, 128), lambda b, k: (b, 0)),
            scratch_shapes=[pltpu.VMEM((2 * tb, EMB_DIM), jnp.float32)],
        ),
        compiler_params=pltpu.CompilerParams(
            dimension_semantics=("parallel", "arbitrary"),
            # ~11 MiB resident at tb=256/tk=2048 (x 2MiBx2, w_enc 2MiBx2,
            # w1s 1MiBx2, acc 1MiB) -> 32 MiB leaves headroom on v7x (64 MiB).
            vmem_limit_bytes=32 << 20,
        ),
    )(x_stacked, w_enc, b_enc, w1s, b1_folded, w2_row, b2)

    return out[:B, :1]


def init_params(in_feats):
    key = jax.random.PRNGKey(0)
    ks = jax.random.split(key, 10)

    def unif(k, shape, scale):
        return jax.random.uniform(k, shape, jnp.float32, -scale, scale)

    return {
        # stand-in encoder
        "w_enc": unif(ks[0], (in_feats, EMB_DIM), 1.0 / jnp.sqrt(in_feats)),
        "b_enc": unif(ks[1], (1, EMB_DIM), 1.0 / jnp.sqrt(in_feats)),
        # Linear(4*512, 256)
        "w1": unif(ks[2], (4 * EMB_DIM, HIDDEN), 1.0 / jnp.sqrt(4 * EMB_DIM)),
        "b1": unif(ks[3], (1, HIDDEN), 1.0 / jnp.sqrt(4 * EMB_DIM)),
        # BatchNorm1d(256) params + running stats (deterministic, nontrivial)
        "gamma": 1.0 + 0.1 * jax.random.normal(ks[4], (1, HIDDEN), jnp.float32),
        "beta": 0.05 * jax.random.normal(ks[5], (1, HIDDEN), jnp.float32),
        "rmean": 0.1 * jax.random.normal(ks[6], (1, HIDDEN), jnp.float32),
        "rvar": jnp.abs(1.0 + 0.1 * jax.random.normal(ks[7], (1, HIDDEN),
                                                      jnp.float32)),
        # Linear(256, 1)
        "w2": unif(ks[8], (HIDDEN, 1), 1.0 / jnp.sqrt(HIDDEN)),
        "b2": unif(ks[9], (1, 1), 1.0 / jnp.sqrt(HIDDEN)),
    }


if __name__ == "__main__":
    B, C, H, W = 2, 3, 16, 16      # small NCHW face-image pair
    key = jax.random.PRNGKey(0)
    k1, k2 = jax.random.split(key)
    img1 = jax.random.normal(k1, (B, C, H, W), jnp.float32)
    img2 = jax.random.normal(k2, (B, C, H, W), jnp.float32)

    params = init_params(C * H * W)

    out = siamese_forward(img1, img2, params)
    out = jax.block_until_ready(out)
    assert out.shape == (B, 1) and out.dtype == jnp.float32
    print("KERNEL_OK")
</pallas_src>

<mosaic_0001>
module attributes {stable_mosaic.version = 11 : i64} {
  func.func @siamese_kernel(%arg0: i32, %arg1: i32, %arg2: memref<2x8x768xbf16, #tpu.memory_space<vmem>>, %arg3: memref<768x512xbf16, #tpu.memory_space<vmem>>, %arg4: memref<1x512xf32, #tpu.memory_space<vmem>>, %arg5: memref<4x512x256xbf16, #tpu.memory_space<vmem>>, %arg6: memref<1x256xf32, #tpu.memory_space<vmem>>, %arg7: memref<1x256xf32, #tpu.memory_space<vmem>>, %arg8: memref<1x1xf32, #tpu.memory_space<vmem>>, %arg9: memref<8x128xf32, #tpu.memory_space<vmem>>, %arg10: memref<16x512xf32, #tpu.memory_space<vmem>>) attributes {dimension_semantics = [#tpu.dimension_semantics<parallel>, #tpu.dimension_semantics<arbitrary>], iteration_bounds = array<i64: 1, 1>, scalar_prefetch = 0 : i64, scratch_operands = 1 : i64, tpu.core_type = #tpu.core_type<tc>, window_params = [{transform_indices = @transform_0, window_bounds = array<i64: 2, 8, 768>}, {transform_indices = @transform_1, window_bounds = array<i64: 768, 512>}, {pipeline_mode = #tpu.pipeline_mode<synchronous>, transform_indices = @transform_2, window_bounds = array<i64: 1, 512>}, {pipeline_mode = #tpu.pipeline_mode<synchronous>, transform_indices = @transform_3, window_bounds = array<i64: 4, 512, 256>}, {pipeline_mode = #tpu.pipeline_mode<synchronous>, transform_indices = @transform_4, window_bounds = array<i64: 1, 256>}, {pipeline_mode = #tpu.pipeline_mode<synchronous>, transform_indices = @transform_5, window_bounds = array<i64: 1, 256>}, {pipeline_mode = #tpu.pipeline_mode<synchronous>, transform_indices = @transform_6, window_bounds = array<i64: 1, 1>}, {transform_indices = @transform_7, window_bounds = array<i64: 8, 128>}]} {
    %c0_i32 = arith.constant 0 : i32
    %0 = arith.cmpi eq, %arg1, %c0_i32 : i32
    %1 = arith.extui %0 : i1 to i32
    %c0_i32_0 = arith.constant 0 : i32
    %2 = arith.cmpi ne, %1, %c0_i32_0 : i32
    scf.if %2 {
      %cst_11 = arith.constant 0.000000e+00 : f32
      %13 = vector.broadcast %cst_11 : f32 to vector<16x512xf32>
      %c0_12 = arith.constant 0 : index
      %c0_13 = arith.constant 0 : index
      %14 = vector.load %arg10[%c0_12, %c0_13] : memref<16x512xf32, #tpu.memory_space<vmem>>, vector<16x512xf32>
      tpu.vector_store %arg10[%c0_12, %c0_13], %13 {strides = array<i32>} : memref<16x512xf32, #tpu.memory_space<vmem>>, vector<16x512xf32>,
    } else {
    }
    %c0 = arith.constant 0 : index
    %c0_1 = arith.constant 0 : index
    %c0_2 = arith.constant 0 : index
    %3 = vector.load %arg2[%c0, %c0_1, %c0_2] : memref<2x8x768xbf16, #tpu.memory_space<vmem>>, vector<2x8x768xbf16>
    %4 = vector.shape_cast %3 : vector<2x8x768xbf16> to vector<16x768xbf16>
    %c0_3 = arith.constant 0 : index
    %c0_4 = arith.constant 0 : index
    %5 = vector.load %arg10[%c0_3, %c0_4] : memref<16x512xf32, #tpu.memory_space<vmem>>, vector<16x512xf32>
    %c0_5 = arith.constant 0 : index
    %c0_6 = arith.constant 0 : index
    %6 = vector.load %arg3[%c0_5, %c0_6] : memref<768x512xbf16, #tpu.memory_space<vmem>>, vector<768x512xbf16>
    %cst = arith.constant dense<0.000000e+00> : vector<16x512xf32>
    %7 = tpu.matmul %4, %6, %cst {dimension_numbers = #tpu.dot_dimension_numbers<[1], [0], [0], [1], [0, 0, 1, 1], [], []>} : vector<16x768xbf16>, vector<768x512xbf16>, vector<16x512xf32> -> vector<16x512xf32>
    %8 = arith.addf %5, %7 : vector<16x512xf32>
    %c0_7 = arith.constant 0 : index
    %c0_8 = arith.constant 0 : index
    %9 = vector.load %arg10[%c0_7, %c0_8] : memref<16x512xf32, #tpu.memory_space<vmem>>, vector<16x512xf32>
    tpu.vector_store %arg10[%c0_7, %c0_8], %8 {strides = array<i32>} : memref<16x512xf32, #tpu.memory_space<vmem>>, vector<16x512xf32>,
    %c0_i32_9 = arith.constant 0 : i32
    %10 = arith.cmpi eq, %arg1, %c0_i32_9 : i32
    %11 = arith.extui %10 : i1 to i32
    %c0_i32_10 = arith.constant 0 : i32
    %12 = arith.cmpi ne, %11, %c0_i32_10 : i32
    scf.if %12 {
      %c0_11 = arith.constant 0 : index
      %c0_12 = arith.constant 0 : index
      %13 = vector.load %arg10[%c0_11, %c0_12] : memref<16x512xf32, #tpu.memory_space<vmem>>, vector<16x512xf32>
      %c0_13 = arith.constant 0 : index
      %c0_14 = arith.constant 0 : index
      %14 = vector.load %arg4[%c0_13, %c0_14] : memref<1x512xf32, #tpu.memory_space<vmem>>, vector<1x512xf32>
      %15 = vector.broadcast %14 : vector<1x512xf32> to vector<16x512xf32>
      %16 = arith.addf %13, %15 : vector<16x512xf32>
      %17 = arith.mulf %16, %16 : vector<16x512xf32>
      %cst_15 = arith.constant dense<0.000000e+00> : vector<16xf32>
      %18 = vector.multi_reduction <add>, %17, %cst_15 [1] : vector<16x512xf32> to vector<16xf32>
      %19 = vector.shape_cast %18 : vector<16xf32> to vector<16x1xf32>
      %cst_16 = arith.constant 1.000000e-24 : f32
      %20 = vector.broadcast %cst_16 : f32 to vector<16x1xf32>
      %21 = arith.maximumf %19, %20 : vector<16x1xf32>
      %22 = math.rsqrt %21 : vector<16x1xf32>
      %23 = vector.broadcast %22 : vector<16x1xf32> to vector<16x512xf32>
      %24 = arith.mulf %16, %23 : vector<16x512xf32>
      %25 = vector.extract_strided_slice %24 {offsets = [0, 0], sizes = [8, 512], strides = [1, 1]} : vector<16x512xf32> to vector<8x512xf32>
      %26 = vector.extract_strided_slice %24 {offsets = [8, 0], sizes = [8, 512], strides = [1, 1]} : vector<16x512xf32> to vector<8x512xf32>
      %27 = arith.subf %25, %26 : vector<8x512xf32>
      %28 = arith.addf %25, %26 : vector<8x512xf32>
      %29 = arith.mulf %27, %28 : vector<8x512xf32>
      %30 = arith.mulf %27, %27 : vector<8x512xf32>
      %31 = arith.mulf %25, %26 : vector<8x512xf32>
      %32 = arith.truncf %29 : vector<8x512xf32> to vector<8x512xbf16>
      %c0_17 = arith.constant 0 : index
      %c0_18 = arith.constant 0 : index
      %c0_19 = arith.constant 0 : index
      %33 = vector.load %arg5[%c0_17, %c0_18, %c0_19] : memref<4x512x256xbf16, #tpu.memory_space<vmem>>, vector<1x512x256xbf16>
      %34 = vector.shape_cast %33 : vector<1x512x256xbf16> to vector<512x256xbf16>
      %cst_20 = arith.constant dense<0.000000e+00> : vector<8x256xf32>
      %35 = tpu.matmul %32, %34, %cst_20 {dimension_numbers = #tpu.dot_dimension_numbers<[1], [0], [0], [1], [0, 0, 1, 1], [], []>} : vector<8x512xbf16>, vector<512x256xbf16>, vector<8x256xf32> -> vector<8x256xf32>
      %36 = arith.truncf %30 : vector<8x512xf32> to vector<8x512xbf16>
      %c1 = arith.constant 1 : index
      %c0_21 = arith.constant 0 : index
      %c0_22 = arith.constant 0 : index
      %37 = vector.load %arg5[%c1, %c0_21, %c0_22] : memref<4x512x256xbf16, #tpu.memory_space<vmem>>, vector<1x512x256xbf16>
      %38 = vector.shape_cast %37 : vector<1x512x256xbf16> to vector<512x256xbf16>
      %cst_23 = arith.constant dense<0.000000e+00> : vector<8x256xf32>
      %39 = tpu.matmul %36, %38, %cst_23 {dimension_numbers = #tpu.dot_dimension_numbers<[1], [0], [0], [1], [0, 0, 1, 1], [], []>} : vector<8x512xbf16>, vector<512x256xbf16>, vector<8x256xf32> -> vector<8x256xf32>
      %40 = arith.addf %35, %39 : vector<8x256xf32>
      %41 = arith.truncf %31 : vector<8x512xf32> to vector<8x512xbf16>
      %c2 = arith.constant 2 : index
      %c0_24 = arith.constant 0 : index
      %c0_25 = arith.constant 0 : index
      %42 = vector.load %arg5[%c2, %c0_24, %c0_25] : memref<4x512x256xbf16, #tpu.memory_space<vmem>>, vector<1x512x256xbf16>
      %43 = vector.shape_cast %42 : vector<1x512x256xbf16> to vector<512x256xbf16>
      %cst_26 = arith.constant dense<0.000000e+00> : vector<8x256xf32>
      %44 = tpu.matmul %41, %43, %cst_26 {dimension_numbers = #tpu.dot_dimension_numbers<[1], [0], [0], [1], [0, 0, 1, 1], [], []>} : vector<8x512xbf16>, vector<512x256xbf16>, vector<8x256xf32> -> vector<8x256xf32>
      %45 = arith.addf %40, %44 : vector<8x256xf32>
      %46 = arith.truncf %28 : vector<8x512xf32> to vector<8x512xbf16>
      %c3 = arith.constant 3 : index
      %c0_27 = arith.constant 0 : index
      %c0_28 = arith.constant 0 : index
      %47 = vector.load %arg5[%c3, %c0_27, %c0_28] : memref<4x512x256xbf16, #tpu.memory_space<vmem>>, vector<1x512x256xbf16>
      %48 = vector.shape_cast %47 : vector<1x512x256xbf16> to vector<512x256xbf16>
      %cst_29 = arith.constant dense<0.000000e+00> : vector<8x256xf32>
      %49 = tpu.matmul %46, %48, %cst_29 {dimension_numbers = #tpu.dot_dimension_numbers<[1], [0], [0], [1], [0, 0, 1, 1], [], []>} : vector<8x512xbf16>, vector<512x256xbf16>, vector<8x256xf32> -> vector<8x256xf32>
      %50 = arith.addf %45, %49 : vector<8x256xf32>
      %c0_30 = arith.constant 0 : index
      %c0_31 = arith.constant 0 : index
      %51 = vector.load %arg6[%c0_30, %c0_31] : memref<1x256xf32, #tpu.memory_space<vmem>>, vector<1x256xf32>
      %52 = vector.broadcast %51 : vector<1x256xf32> to vector<8x256xf32>
      %53 = arith.addf %50, %52 : vector<8x256xf32>
      %cst_32 = arith.constant 0.000000e+00 : f32
      %54 = vector.broadcast %cst_32 : f32 to vector<8x256xf32>
      %55 = arith.maximumf %53, %54 : vector<8x256xf32>
      %c0_33 = arith.constant 0 : index
      %c0_34 = arith.constant 0 : index
      %56 = vector.load %arg7[%c0_33, %c0_34] : memref<1x256xf32, #tpu.memory_space<vmem>>, vector<1x256xf32>
      %57 = vector.broadcast %56 : vector<1x256xf32> to vector<8x256xf32>
      %58 = arith.mulf %55, %57 : vector<8x256xf32>
      %cst_35 = arith.constant dense<0.000000e+00> : vector<8xf32>
      %59 = vector.multi_reduction <add>, %58, %cst_35 [1] : vector<8x256xf32> to vector<8xf32>
      %60 = vector.shape_cast %59 : vector<8xf32> to vector<8x1xf32>
      %c0_36 = arith.constant 0 : index
      %c0_37 = arith.constant 0 : index
      %61 = vector.load %arg8[%c0_36, %c0_37] : memref<1x1xf32, #tpu.memory_space<vmem>>, vector<1x1xf32>
      %62 = vector.broadcast %61 : vector<1x1xf32> to vector<8x1xf32>
      %63 = arith.addf %60, %62 : vector<8x1xf32>
      %64 = vector.shape_cast %63 : vector<8x1xf32> to vector<8x1xf32>
      %65 = vector.broadcast %64 : vector<8x1xf32> to vector<8x128xf32>
      %c0_38 = arith.constant 0 : index
      %c0_39 = arith.constant 0 : index
      %66 = vector.load %arg9[%c0_38, %c0_39] : memref<8x128xf32, #tpu.memory_space<vmem>>, vector<8x128xf32>
      tpu.vector_store %arg9[%c0_38, %c0_39], %65 {strides = array<i32>} : memref<8x128xf32, #tpu.memory_space<vmem>>, vector<8x128xf32>,
    } else {
    }
    return
  }
  func.func @transform_0(%arg0: i32, %arg1: i32) -> (i32, i32, i32) {
    %c0_i32 = arith.constant 0 : i32
    %c0_i32_0 = arith.constant 0 : i32
    return %c0_i32, %arg0, %arg1 : i32, i32, i32
  }
  func.func @transform_1(%arg0: i32, %arg1: i32) -> (i32, i32) {
    %c0_i32 = arith.constant 0 : i32
    %c0_i32_0 = arith.constant 0 : i32
    return %arg1, %c0_i32 : i32, i32
  }
  func.func @transform_2(%arg0: i32, %arg1: i32) -> (i32, i32) {
    %c0_i32 = arith.constant 0 : i32
    %c0_i32_0 = arith.constant 0 : i32
    %c0_i32_1 = arith.constant 0 : i32
    return %c0_i32, %c0_i32_0 : i32, i32
  }
  func.func @transform_3(%arg0: i32, %arg1: i32) -> (i32, i32, i32) {
    %c0_i32 = arith.constant 0 : i32
    %c0_i32_0 = arith.constant 0 : i32
    %c0_i32_1 = arith.constant 0 : i32
    %c0_i32_2 = arith.constant 0 : i32
    return %c0_i32, %c0_i32_0, %c0_i32_1 : i32, i32, i32
  }
  func.func @transform_4(%arg0: i32, %arg1: i32) -> (i32, i32) {
    %c0_i32 = arith.constant 0 : i32
    %c0_i32_0 = arith.constant 0 : i32
    %c0_i32_1 = arith.constant 0 : i32
    return %c0_i32, %c0_i32_0 : i32, i32
  }
  func.func @transform_5(%arg0: i32, %arg1: i32) -> (i32, i32) {
    %c0_i32 = arith.constant 0 : i32
    %c0_i32_0 = arith.constant 0 : i32
    %c0_i32_1 = arith.constant 0 : i32
    return %c0_i32, %c0_i32_0 : i32, i32
  }
  func.func @transform_6(%arg0: i32, %arg1: i32) -> (i32, i32) {
    %c0_i32 = arith.constant 0 : i32
    %c0_i32_0 = arith.constant 0 : i32
    %c0_i32_1 = arith.constant 0 : i32
    return %c0_i32, %c0_i32_0 : i32, i32
  }
  func.func @transform_7(%arg0: i32, %arg1: i32) -> (i32, i32) {
    %c0_i32 = arith.constant 0 : i32
    %c0_i32_0 = arith.constant 0 : i32
    return %arg0, %c0_i32 : i32, i32
  }
}

</mosaic_0001>

<llo_original>
// kernel: tpu_custom_call.1
$region0: #{tpu_custom_call.1}
  #allocation0 [shape = 'u32[]', space=smem, size = 0x4, offset = 0x4, fixed_abs, tag = 'smem constant byte address 0x4 - core index']
  #allocation1 [shape = 'u32[72,128]{1,0:T(1,128)}', space=vmem, size = 0x9000, scoped, tag = 'internal scratch']
  #allocation2 [shape = 'f32[16,512]{1,0:T(8,128)}', space=vmem, size = 0x8000, scoped, tag = 'scratch operand']
  #allocation3 [shape = 'f32[1,1]{1,0:T(1,128)S(1)}', space=vmem, size = 0x200, scoped, tag = 'scoped memory for tpu_custom_call.1']
  %s0 = inlined_call_operand.hbm [shape: bf16[2,8,768], index: 0, kind: input, shape index: {}]
  %s1 = inlined_call_operand.hbm [shape: bf16[768,512], index: 1, kind: input, shape index: {}]
  %s2 = inlined_call_operand.hbm [shape: f32[1,512], index: 2, kind: input, shape index: {}]
  %s3 = inlined_call_operand.hbm [shape: bf16[4,512,256], index: 3, kind: input, shape index: {}]
  %s4 = inlined_call_operand.vmem [shape: f32[1,256], index: 4, kind: input, shape index: {}]
  %s5 = inlined_call_operand.vmem [shape: f32[1,256], index: 5, kind: input, shape index: {}]
  %s6 = inlined_call_operand.<no memory space> [shape: f32[1,1], index: 6, kind: input, shape index: {}]
  %s7 = inlined_call_operand.hbm [shape: f32[8,128], index: 7, kind: output, shape index: {}]
  %s8 = sld [smem:[#allocation0]]
  $region62: #{tpu_custom_call.1} parent=0
    _
  %s10 = ssub.s32 1, %s8
  %s11 = scalar_select 0, %s10, %s8
  %v12 = vstv %s6
  %13 = vst [vmem:[#allocation3] sm:$0x1] %v12
  $region1: #{tpu_custom_call.1} parent=0
    #allocation4 [shape = 'u8[24576]{0}', space=vmem, size = 0x6000, scoped, tag = 'input window, operand 0, single buffered']
    #allocation5 [shape = 's32[1]{0}', space=sflag, size = 0x4, scoped, tag = 'scoped memory for tpu_custom_call.1']
    #allocation6 [shape = 's32[1]{0}', space=sflag, size = 0x4, scoped, tag = 'scoped memory for tpu_custom_call.1']
    #allocation7 [shape = 'u8[786432]{0}', space=vmem, size = 0xc0000, scoped, tag = 'input window, operand 1, single buffered']
    #allocation8 [shape = 's32[1]{0}', space=sflag, size = 0x4, scoped, tag = 'scoped memory for tpu_custom_call.1']
    #allocation9 [shape = 'u8[2048]{0}', space=vmem, size = 0x800, scoped, tag = 'input window, operand 2, single buffered']
    #allocation10 [shape = 'u8[1048576]{0}', space=vmem, size = 0x100000, scoped, tag = 'input window, operand 3, single buffered']
    #allocation11 [shape = 's32[1]{0}', space=sflag, size = 0x4, scoped, tag = 'scoped memory for tpu_custom_call.1']
    #allocation12 [shape = 'u8[4096]{0}', space=vmem, size = 0x1000, scoped, tag = 'output window, operand 0, single buffered']
    %14 = vsyncpa [#allocation5], 0
    %15 = vsyncpa [#allocation8], 0
    %16 = vsyncpa [#allocation11], 0
    %17 = vsyncpa [#allocation6], 0
    // Predicated region
    $region2: #{tpu_custom_call.1} parent=1 // pred_check
      _
    $region3: #{tpu_custom_call.1} parent=1 // pred_check_branch
      %19 = sbr.rel (0) target = $region5
    $region4: #{tpu_custom_call.1} parent=1 // pred_region
      %21 = vsyncadd [#allocation5], 0
      %s22 = sshll.u32 %s0, 4
      %s23 = int_to_ptr.hbm [resolvable:$true] %s22
      %s24 = sshll.u32 [#allocation4], 4
      %s25 = int_to_ptr.vmem [resolvable:$true] %s24
      %30 = dma.hbm_to_vmem [thread:$0]  %s23, 768, %s25, [#allocation5], 384, 384, 24
    $region5: #{tpu_custom_call.1} parent=1 // pred_fallthru
      _
    // Predicated region
    $region6: #{tpu_custom_call.1} parent=1 // pred_check
      _
    $region7: #{tpu_custom_call.1} parent=1 // pred_check_branch
      %32 = sbr.rel (0) target = $region9
    $region8: #{tpu_custom_call.1} parent=1 // pred_region
      %34 = vsyncadd [#allocation8], 0
      %s35 = sshll.u32 %s1, 4
      %s36 = int_to_ptr.hbm [resolvable:$true] %s35
      %s37 = sshll.u32 [#allocation7], 4
      %s38 = int_to_ptr.vmem [resolvable:$true] %s37
      %43 = dma.hbm_to_vmem [thread:$0]  %s36, 24576, %s38, [#allocation8], 256, 256, 16
    $region9: #{tpu_custom_call.1} parent=1 // pred_fallthru
      _
    // Predicated region
    $region10: #{tpu_custom_call.1} parent=1 // pred_check
      _
    $region11: #{tpu_custom_call.1} parent=1 // pred_check_branch
      %45 = sbr.rel (0) target = $region13
    $region12: #{tpu_custom_call.1} parent=1 // pred_region
      %47 = vsyncadd [#allocation8], 0
      %s49 = sshll.u32 %s2, 4
      %s50 = int_to_ptr.hbm [resolvable:$true] %s49
      %s51 = sshll.u32 [#allocation9], 4
      %s52 = int_to_ptr.vmem [resolvable:$true] %s51
      %54 = dma.hbm_to_vmem [thread:$0]  %s50, 64, %s52, [#allocation8]
    $region13: #{tpu_custom_call.1} parent=1 // pred_fallthru
      _
    // Predicated region
    $region14: #{tpu_custom_call.1} parent=1 // pred_check
      _
    $region15: #{tpu_custom_call.1} parent=1 // pred_check_branch
      %56 = sbr.rel (0) target = $region17
    $region16: #{tpu_custom_call.1} parent=1 // pred_region
      %58 = vsyncadd [#allocation11], 0
      %s59 = sshll.u32 %s3, 4
      %s60 = int_to_ptr.hbm [resolvable:$true] %s59
      %s61 = sshll.u32 [#allocation10], 4
      %s62 = int_to_ptr.vmem [resolvable:$true] %s61
      %67 = dma.hbm_to_vmem [thread:$0]  %s60, 32768, %s62, [#allocation11], 128, 128, 8
    $region17: #{tpu_custom_call.1} parent=1 // pred_fallthru
      _
    // Predicated region
    $region18: #{tpu_custom_call.1} parent=1 // pred_check
      _
    $region19: #{tpu_custom_call.1} parent=1 // pred_check_branch
      %69 = sbr.rel (0) target = $region21
    $region20: #{tpu_custom_call.1} parent=1 // pred_region
      _
    $region21: #{tpu_custom_call.1} parent=1 // pred_fallthru
      _
    // Predicated region
    $region22: #{tpu_custom_call.1} parent=1 // pred_check
      _
    $region23: #{tpu_custom_call.1} parent=1 // pred_check_branch
      %71 = sbr.rel (0) target = $region25
    $region24: #{tpu_custom_call.1} parent=1 // pred_region
      _
    $region25: #{tpu_custom_call.1} parent=1 // pred_fallthru
      _
    // Predicated region
    $region26: #{tpu_custom_call.1} parent=1 // pred_check
      _
    $region27: #{tpu_custom_call.1} parent=1 // pred_check_branch
      %73 = sbr.rel (0) target = $region29
    $region28: #{tpu_custom_call.1} parent=1 // pred_region
      _
    $region29: #{tpu_custom_call.1} parent=1 // pred_fallthru
      _
    // Predicated region
    $region30: #{tpu_custom_call.1} parent=1 // pred_check
      _
    $region31: #{tpu_custom_call.1} parent=1 // pred_check_branch
      %75 = sbr.rel (0) target = $region33
    $region32: #{tpu_custom_call.1} parent=1 // pred_region
      %77 = dma.done [#allocation5], 768
    $region33: #{tpu_custom_call.1} parent=1 // pred_fallthru
      _
    // Predicated region
    $region34: #{tpu_custom_call.1} parent=1 // pred_check
      _
    $region35: #{tpu_custom_call.1} parent=1 // pred_check_branch
      %79 = sbr.rel (0) target = $region37
    $region36: #{tpu_custom_call.1} parent=1 // pred_region
      %81 = dma.done [#allocation8], 24576
    $region37: #{tpu_custom_call.1} parent=1 // pred_fallthru
      _
    // Predicated region
    $region38: #{tpu_custom_call.1} parent=1 // pred_check
      _
    $region39: #{tpu_custom_call.1} parent=1 // pred_check_branch
      %83 = sbr.rel (0) target = $region41
    $region40: #{tpu_custom_call.1} parent=1 // pred_region
      %85 = dma.done [#allocation8], 64
    $region41: #{tpu_custom_call.1} parent=1 // pred_fallthru
      _
    // Predicated region
    $region42: #{tpu_custom_call.1} parent=1 // pred_check
      _
    $region43: #{tpu_custom_call.1} parent=1 // pred_check_branch
      %87 = sbr.rel (0) target = $region45
    $region44: #{tpu_custom_call.1} parent=1 // pred_region
      %89 = dma.done [#allocation11], 32768
    $region45: #{tpu_custom_call.1} parent=1 // pred_fallthru
      _
    %p90 = scmp.eq.s32.totalorder 0, 0
    // Predicated region
    $region46: #{tpu_custom_call.1} parent=1 // pred_check
      %p91 = pneg %p90
    $region47: #{tpu_custom_call.1} parent=1 // pred_check_branch
      %93 = sbr.rel (%p91) target = $region49
    $region48: #{tpu_custom_call.1} parent=1 // pred_region
      %94 = vst [vmem:[#allocation2] sm:$0xff] 0.0
      %95 = vst [vmem:[#allocation2 + $0x8] sm:$0xff] 0.0
      %96 = vst [vmem:[#allocation2 + $0x10] sm:$0xff] 0.0
      %97 = vst [vmem:[#allocation2 + $0x18] sm:$0xff] 0.0
      %98 = vst [vmem:[#allocation2 + $0x20] sm:$0xff] 0.0
      %99 = vst [vmem:[#allocation2 + $0x28] sm:$0xff] 0.0
      %100 = vst [vmem:[#allocation2 + $0x30] sm:$0xff] 0.0
      %101 = vst [vmem:[#allocation2 + $0x38] sm:$0xff] 0.0
    $region49: #{tpu_custom_call.1} parent=1 // pred_fallthru
      _
    %v102 = vld [vmem:[#allocation4] sm:$0xff]
    %v103 = vld [vmem:[#allocation4 + $0x8] sm:$0xff]
    %v104 = vld [vmem:[#allocation4 + $0x10] sm:$0xff]
    %v105 = vld [vmem:[#allocation4 + $0x18] sm:$0xff]
    %v106 = vld [vmem:[#allocation4 + $0x20] sm:$0xff]
    %v107 = vld [vmem:[#allocation4 + $0x28] sm:$0xff]
    %v108 = vld [vmem:[#allocation2] sm:$0xff]
    %v109 = vld [vmem:[#allocation2 + $0x8] sm:$0xff]
    %v110 = vld [vmem:[#allocation2 + $0x10] sm:$0xff]
    %v111 = vld [vmem:[#allocation2 + $0x18] sm:$0xff]
    %v112 = vld [vmem:[#allocation2 + $0x20] sm:$0xff]
    %v113 = vld [vmem:[#allocation2 + $0x28] sm:$0xff]
    %v114 = vld [vmem:[#allocation2 + $0x30] sm:$0xff]
    %v115 = vld [vmem:[#allocation2 + $0x38] sm:$0xff]
    %v116 = vld [vmem:[#allocation7] sm:$0xff]
    %v117 = vld [vmem:[#allocation7 + $0x8] sm:$0xff]
    %v118 = vld [vmem:[#allocation7 + $0x10] sm:$0xff]
    %v119 = vld [vmem:[#allocation7 + $0x18] sm:$0xff]
    %v120 = vld [vmem:[#allocation7 + $0x20] sm:$0xff]
    %v121 = vld [vmem:[#allocation7 + $0x28] sm:$0xff]
    %v122 = vld [vmem:[#allocation7 + $0x30] sm:$0xff]
    %v123 = vld [vmem:[#allocation7 + $0x38] sm:$0xff]
    %v124 = vld [vmem:[#allocation7 + $0x40] sm:$0xff]
    %v125 = vld [vmem:[#allocation7 + $0x48] sm:$0xff]
    %v126 = vld [vmem:[#allocation7 + $0x50] sm:$0xff]
    %v127 = vld [vmem:[#allocation7 + $0x58] sm:$0xff]
    %v128 = vld [vmem:[#allocation7 + $0x60] sm:$0xff]
    %v129 = vld [vmem:[#allocation7 + $0x68] sm:$0xff]
    %v130 = vld [vmem:[#allocation7 + $0x70] sm:$0xff]
    %v131 = vld [vmem:[#allocation7 + $0x78] sm:$0xff]
    %v132 = vld [vmem:[#allocation7 + $0x80] sm:$0xff]
    %v133 = vld [vmem:[#allocation7 + $0x88] sm:$0xff]
    %v134 = vld [vmem:[#allocation7 + $0x90] sm:$0xff]
    %v135 = vld [vmem:[#allocation7 + $0x98] sm:$0xff]
    %v136 = vld [vmem:[#allocation7 + $0xa0] sm:$0xff]
    %v137 = vld [vmem:[#allocation7 + $0xa8] sm:$0xff]
    %v138 = vld [vmem:[#allocation7 + $0xb0] sm:$0xff]
    %v139 = vld [vmem:[#allocation7 + $0xb8] sm:$0xff]
    %v140 = vld [vmem:[#allocation7 + $0xc0] sm:$0xff]
    %v141 = vld [vmem:[#allocation7 + $0xc8] sm:$0xff]
    %v142 = vld [vmem:[#allocation7 + $0xd0] sm:$0xff]
    %v143 = vld [vmem:[#allocation7 + $0xd8] sm:$0xff]
    %v144 = vld [vmem:[#allocation7 + $0xe0] sm:$0xff]
    %v145 = vld [vmem:[#allocation7 + $0xe8] sm:$0xff]
    %v146 = vld [vmem:[#allocation7 + $0xf0] sm:$0xff]
    %v147 = vld [vmem:[#allocation7 + $0xf8] sm:$0xff]
    %v148 = vld [vmem:[#allocation7 + $0x100] sm:$0xff]
    %v149 = vld [vmem:[#allocation7 + $0x108] sm:$0xff]
    %v150 = vld [vmem:[#allocation7 + $0x110] sm:$0xff]
    %v151 = vld [vmem:[#allocation7 + $0x118] sm:$0xff]
    %v152 = vld [vmem:[#allocation7 + $0x120] sm:$0xff]
    %v153 = vld [vmem:[#allocation7 + $0x128] sm:$0xff]
    %v154 = vld [vmem:[#allocation7 + $0x130] sm:$0xff]
    %v155 = vld [vmem:[#allocation7 + $0x138] sm:$0xff]
    %v156 = vld [vmem:[#allocation7 + $0x140] sm:$0xff]
    %v157 = vld [vmem:[#allocation7 + $0x148] sm:$0xff]
    %v158 = vld [vmem:[#allocation7 + $0x150] sm:$0xff]
    %v159 = vld [vmem:[#allocation7 + $0x158] sm:$0xff]
    %v160 = vld [vmem:[#allocation7 + $0x160] sm:$0xff]
    %v161 = vld [vmem:[#allocation7 + $0x168] sm:$0xff]
    %v162 = vld [vmem:[#allocation7 + $0x170] sm:$0xff]
    %v163 = vld [vmem:[#allocation7 + $0x178] sm:$0xff]
    %v164 = vld [vmem:[#allocation7 + $0x180] sm:$0xff]
    %v165 = vld [vmem:[#allocation7 + $0x188] sm:$0xff]
    %v166 = vld [vmem:[#allocation7 + $0x190] sm:$0xff]
    %v167 = vld [vmem:[#allocation7 + $0x198] sm:$0xff]
    %v168 = vld [vmem:[#allocation7 + $0x1a0] sm:$0xff]
    %v169 = vld [vmem:[#allocation7 + $0x1a8] sm:$0xff]
    %v170 = vld [vmem:[#allocation7 + $0x1b0] sm:$0xff]
    %v171 = vld [vmem:[#allocation7 + $0x1b8] sm:$0xff]
    %v172 = vld [vmem:[#allocation7 + $0x1c0] sm:$0xff]
    %v173 = vld [vmem:[#allocation7 + $0x1c8] sm:$0xff]
    %v174 = vld [vmem:[#allocation7 + $0x1d0] sm:$0xff]
    %v175 = vld [vmem:[#allocation7 + $0x1d8] sm:$0xff]
    %v176 = vld [vmem:[#allocation7 + $0x1e0] sm:$0xff]
    %v177 = vld [vmem:[#allocation7 + $0x1e8] sm:$0xff]
    %v178 = vld [vmem:[#allocation7 + $0x1f0] sm:$0xff]
    %v179 = vld [vmem:[#allocation7 + $0x1f8] sm:$0xff]
    %v180 = vld [vmem:[#allocation7 + $0x200] sm:$0xff]
    %v181 = vld [vmem:[#allocation7 + $0x208] sm:$0xff]
    %v182 = vld [vmem:[#allocation7 + $0x210] sm:$0xff]
    %v183 = vld [vmem:[#allocation7 + $0x218] sm:$0xff]
    %v184 = vld [vmem:[#allocation7 + $0x220] sm:$0xff]
    %v185 = vld [vmem:[#allocation7 + $0x228] sm:$0xff]
    %v186 = vld [vmem:[#allocation7 + $0x230] sm:$0xff]
    %v187 = vld [vmem:[#allocation7 + $0x238] sm:$0xff]
    %v188 = vld [vmem:[#allocation7 + $0x240] sm:$0xff]
    %v189 = vld [vmem:[#allocation7 + $0x248] sm:$0xff]
    %v190 = vld [vmem:[#allocation7 + $0x250] sm:$0xff]
    %v191 = vld [vmem:[#allocation7 + $0x258] sm:$0xff]
    %v192 = vld [vmem:[#allocation7 + $0x260] sm:$0xff]
    %v193 = vld [vmem:[#allocation7 + $0x268] sm:$0xff]
    %v194 = vld [vmem:[#allocation7 + $0x270] sm:$0xff]
    %v195 = vld [vmem:[#allocation7 + $0x278] sm:$0xff]
    %v196 = vld [vmem:[#allocation7 + $0x280] sm:$0xff]
    %v197 = vld [vmem:[#allocation7 + $0x288] sm:$0xff]
    %v198 = vld [vmem:[#allocation7 + $0x290] sm:$0xff]
    %v199 = vld [vmem:[#allocation7 + $0x298] sm:$0xff]
    %v200 = vld [vmem:[#allocation7 + $0x2a0] sm:$0xff]
    %v201 = vld [vmem:[#allocation7 + $0x2a8] sm:$0xff]
    %v202 = vld [vmem:[#allocation7 + $0x2b0] sm:$0xff]
    %v203 = vld [vmem:[#allocation7 + $0x2b8] sm:$0xff]
    %v204 = vld [vmem:[#allocation7 + $0x2c0] sm:$0xff]
    %v205 = vld [vmem:[#allocation7 + $0x2c8] sm:$0xff]
    %v206 = vld [vmem:[#allocation7 + $0x2d0] sm:$0xff]
    %v207 = vld [vmem:[#allocation7 + $0x2d8] sm:$0xff]
    %v208 = vld [vmem:[#allocation7 + $0x2e0] sm:$0xff]
    %v209 = vld [vmem:[#allocation7 + $0x2e8] sm:$0xff]
    %v210 = vld [vmem:[#allocation7 + $0x2f0] sm:$0xff]
    %v211 = vld [vmem:[#allocation7 + $0x2f8] sm:$0xff]
    %v212 = vld [vmem:[#allocation7 + $0x300] sm:$0xff]
    %v213 = vld [vmem:[#allocation7 + $0x308] sm:$0xff]
    %v214 = vld [vmem:[#allocation7 + $0x310] sm:$0xff]
    %v215 = vld [vmem:[#allocation7 + $0x318] sm:$0xff]
    %v216 = vld [vmem:[#allocation7 + $0x320] sm:$0xff]
    %v217 = vld [vmem:[#allocation7 + $0x328] sm:$0xff]
    %v218 = vld [vmem:[#allocation7 + $0x330] sm:$0xff]
    %v219 = vld [vmem:[#allocation7 + $0x338] sm:$0xff]
    %v220 = vld [vmem:[#allocation7 + $0x340] sm:$0xff]
    %v221 = vld [vmem:[#allocation7 + $0x348] sm:$0xff]
    %v222 = vld [vmem:[#allocation7 + $0x350] sm:$0xff]
    %v223 = vld [vmem:[#allocation7 + $0x358] sm:$0xff]
    %v224 = vld [vmem:[#allocation7 + $0x360] sm:$0xff]
    %v225 = vld [vmem:[#allocation7 + $0x368] sm:$0xff]
    %v226 = vld [vmem:[#allocation7 + $0x370] sm:$0xff]
    %v227 = vld [vmem:[#allocation7 + $0x378] sm:$0xff]
    %v228 = vld [vmem:[#allocation7 + $0x380] sm:$0xff]
    %v229 = vld [vmem:[#allocation7 + $0x388] sm:$0xff]
    %v230 = vld [vmem:[#allocation7 + $0x390] sm:$0xff]
    %v231 = vld [vmem:[#allocation7 + $0x398] sm:$0xff]
    %v232 = vld [vmem:[#allocation7 + $0x3a0] sm:$0xff]
    %v233 = vld [vmem:[#allocation7 + $0x3a8] sm:$0xff]
    %v234 = vld [vmem:[#allocation7 + $0x3b0] sm:$0xff]
    %v235 = vld [vmem:[#allocation7 + $0x3b8] sm:$0xff]
    %v236 = vld [vmem:[#allocation7 + $0x3c0] sm:$0xff]
    %v237 = vld [vmem:[#allocation7 + $0x3c8] sm:$0xff]
    %v238 = vld [vmem:[#allocation7 + $0x3d0] sm:$0xff]
    %v239 = vld [vmem:[#allocation7 + $0x3d8] sm:$0xff]
    %v240 = vld [vmem:[#allocation7 + $0x3e0] sm:$0xff]
    %v241 = vld [vmem:[#allocation7 + $0x3e8] sm:$0xff]
    %v242 = vld [vmem:[#allocation7 + $0x3f0] sm:$0xff]
    %v243 = vld [vmem:[#allocation7 + $0x3f8] sm:$0xff]
    %v244 = vld [vmem:[#allocation7 + $0x400] sm:$0xff]
    %v245 = vld [vmem:[#allocation7 + $0x408] sm:$0xff]
    %v246 = vld [vmem:[#allocation7 + $0x410] sm:$0xff]
    %v247 = vld [vmem:[#allocation7 + $0x418] sm:$0xff]
    %v248 = vld [vmem:[#allocation7 + $0x420] sm:$0xff]
    %v249 = vld [vmem:[#allocation7 + $0x428] sm:$0xff]
    %v250 = vld [vmem:[#allocation7 + $0x430] sm:$0xff]
    %v251 = vld [vmem:[#allocation7 + $0x438] sm:$0xff]
    %v252 = vld [vmem:[#allocation7 + $0x440] sm:$0xff]
    %v253 = vld [vmem:[#allocation7 + $0x448] sm:$0xff]
    %v254 = vld [vmem:[#allocation7 + $0x450] sm:$0xff]
    %v255 = vld [vmem:[#allocation7 + $0x458] sm:$0xff]
    %v256 = vld [vmem:[#allocation7 + $0x460] sm:$0xff]
    %v257 = vld [vmem:[#allocation7 + $0x468] sm:$0xff]
    %v258 = vld [vmem:[#allocation7 + $0x470] sm:$0xff]
    %v259 = vld [vmem:[#allocation7 + $0x478] sm:$0xff]
    %v260 = vld [vmem:[#allocation7 + $0x480] sm:$0xff]
    %v261 = vld [vmem:[#allocation7 + $0x488] sm:$0xff]
    %v262 = vld [vmem:[#allocation7 + $0x490] sm:$0xff]
    %v263 = vld [vmem:[#allocation7 + $0x498] sm:$0xff]
    %v264 = vld [vmem:[#allocation7 + $0x4a0] sm:$0xff]
    %v265 = vld [vmem:[#allocation7 + $0x4a8] sm:$0xff]
    %v266 = vld [vmem:[#allocation7 + $0x4b0] sm:$0xff]
    %v267 = vld [vmem:[#allocation7 + $0x4b8] sm:$0xff]
    %v268 = vld [vmem:[#allocation7 + $0x4c0] sm:$0xff]
    %v269 = vld [vmem:[#allocation7 + $0x4c8] sm:$0xff]
    %v270 = vld [vmem:[#allocation7 + $0x4d0] sm:$0xff]
    %v271 = vld [vmem:[#allocation7 + $0x4d8] sm:$0xff]
    %v272 = vld [vmem:[#allocation7 + $0x4e0] sm:$0xff]
    %v273 = vld [vmem:[#allocation7 + $0x4e8] sm:$0xff]
    %v274 = vld [vmem:[#allocation7 + $0x4f0] sm:$0xff]
    %v275 = vld [vmem:[#allocation7 + $0x4f8] sm:$0xff]
    %v276 = vld [vmem:[#allocation7 + $0x500] sm:$0xff]
    %v277 = vld [vmem:[#allocation7 + $0x508] sm:$0xff]
    %v278 = vld [vmem:[#allocation7 + $0x510] sm:$0xff]
    %v279 = vld [vmem:[#allocation7 + $0x518] sm:$0xff]
    %v280 = vld [vmem:[#allocation7 + $0x520] sm:$0xff]
    %v281 = vld [vmem:[#allocation7 + $0x528] sm:$0xff]
    %v282 = vld [vmem:[#allocation7 + $0x530] sm:$0xff]
    %v283 = vld [vmem:[#allocation7 + $0x538] sm:$0xff]
    %v284 = vld [vmem:[#allocation7 + $0x540] sm:$0xff]
    %v285 = vld [vmem:[#allocation7 + $0x548] sm:$0xff]
    %v286 = vld [vmem:[#allocation7 + $0x550] sm:$0xff]
    %v287 = vld [vmem:[#allocation7 + $0x558] sm:$0xff]
    %v288 = vld [vmem:[#allocation7 + $0x560] sm:$0xff]
    %v289 = vld [vmem:[#allocation7 + $0x568] sm:$0xff]
    %v290 = vld [vmem:[#allocation7 + $0x570] sm:$0xff]
    %v291 = vld [vmem:[#allocation7 + $0x578] sm:$0xff]
    %v292 = vld [vmem:[#allocation7 + $0x580] sm:$0xff]
    %v293 = vld [vmem:[#allocation7 + $0x588] sm:$0xff]
    %v294 = vld [vmem:[#allocation7 + $0x590] sm:$0xff]
    %v295 = vld [vmem:[#allocation7 + $0x598] sm:$0xff]
    %v296 = vld [vmem:[#allocation7 + $0x5a0] sm:$0xff]
    %v297 = vld [vmem:[#allocation7 + $0x5a8] sm:$0xff]
    %v298 = vld [vmem:[#allocation7 + $0x5b0] sm:$0xff]
    %v299 = vld [vmem:[#allocation7 + $0x5b8] sm:$0xff]
    %v300 = vld [vmem:[#allocation7 + $0x5c0] sm:$0xff]
    %v301 = vld [vmem:[#allocation7 + $0x5c8] sm:$0xff]
    %v302 = vld [vmem:[#allocation7 + $0x5d0] sm:$0xff]
    %v303 = vld [vmem:[#allocation7 + $0x5d8] sm:$0xff]
    %v304 = vld [vmem:[#allocation7 + $0x5e0] sm:$0xff]
    %v305 = vld [vmem:[#allocation7 + $0x5e8] sm:$0xff]
    %v306 = vld [vmem:[#allocation7 + $0x5f0] sm:$0xff]
    %v307 = vld [vmem:[#allocation7 + $0x5f8] sm:$0xff]
    %v314 = vunpack.c.l.b16 %v102
    %v315 = vunpack.c.h.b16 %v102
    %v316 = vunpack.c.l.b16 %v103
    %v317 = vunpack.c.h.b16 %v103
    %v318 = vunpack.c.l.b16 %v104
    %v319 = vunpack.c.h.b16 %v104
    %v320 = vunpack.c.l.b16 %v105
    %v321 = vunpack.c.h.b16 %v105
    %v322 = vunpack.c.l.b16 %v106
    %v323 = vunpack.c.h.b16 %v106
    %v324 = vunpack.c.l.b16 %v107
    %v325 = vunpack.c.h.b16 %v107
    %v326 = vpack.c.b16 %v320, %v314
    %v327 = vpack.c.b16 %v321, %v315
    %v328 = vpack.c.b16 %v322, %v316
    %v329 = vpack.c.b16 %v323, %v317
    %v330 = vpack.c.b16 %v324, %v318
    %v331 = vpack.c.b16 %v325, %v319
    %v530 = vunpack.c.l.b16 %v116
    %v531 = vunpack.c.h.b16 %v116
    %v532 = vunpack.c.l.b16 %v117
    %v533 = vunpack.c.h.b16 %v117
    %v534 = vunpack.c.l.b16 %v118
    %v535 = vunpack.c.h.b16 %v118
    %v536 = vunpack.c.l.b16 %v119
    %v537 = vunpack.c.h.b16 %v119
    %v538 = vunpack.c.l.b16 %v120
    %v539 = vunpack.c.h.b16 %v120
    %v540 = vunpack.c.l.b16 %v121
    %v541 = vunpack.c.h.b16 %v121
    %v542 = vunpack.c.l.b16 %v122
    %v543 = vunpack.c.h.b16 %v122
    %v544 = vunpack.c.l.b16 %v123
    %v545 = vunpack.c.h.b16 %v123
    %v546 = vunpack.c.l.b16 %v124
    %v547 = vunpack.c.h.b16 %v124
    %v548 = vunpack.c.l.b16 %v125
    %v549 = vunpack.c.h.b16 %v125
    %v550 = vunpack.c.l.b16 %v126
    %v551 = vunpack.c.h.b16 %v126
    %v552 = vunpack.c.l.b16 %v127
    %v553 = vunpack.c.h.b16 %v127
    %v554 = vunpack.c.l.b16 %v128
    %v555 = vunpack.c.h.b16 %v128
    %v556 = vunpack.c.l.b16 %v129
    %v557 = vunpack.c.h.b16 %v129
    %v558 = vunpack.c.l.b16 %v130
    %v559 = vunpack.c.h.b16 %v130
    %v560 = vunpack.c.l.b16 %v131
    %v561 = vunpack.c.h.b16 %v131
    %v562 = vunpack.c.l.b16 %v132
    %v563 = vunpack.c.h.b16 %v132
    %v564 = vunpack.c.l.b16 %v133
    %v565 = vunpack.c.h.b16 %v133
    %v566 = vunpack.c.l.b16 %v134
    %v567 = vunpack.c.h.b16 %v134
    %v568 = vunpack.c.l.b16 %v135
    %v569 = vunpack.c.h.b16 %v135
    %v570 = vunpack.c.l.b16 %v136
    %v571 = vunpack.c.h.b16 %v136
    %v572 = vunpack.c.l.b16 %v137
    %v573 = vunpack.c.h.b16 %v137
    %v574 = vunpack.c.l.b16 %v138
    %v575 = vunpack.c.h.b16 %v138
    %v576 = vunpack.c.l.b16 %v139
    %v577 = vunpack.c.h.b16 %v139
    %v578 = vunpack.c.l.b16 %v140
    %v579 = vunpack.c.h.b16 %v140
    %v580 = vunpack.c.l.b16 %v141
    %v581 = vunpack.c.h.b16 %v141
    %v582 = vunpack.c.l.b16 %v142
    %v583 = vunpack.c.h.b16 %v142
    %v584 = vunpack.c.l.b16 %v143
    %v585 = vunpack.c.h.b16 %v143
    %v586 = vunpack.c.l.b16 %v144
    %v587 = vunpack.c.h.b16 %v144
    %v588 = vunpack.c.l.b16 %v145
    %v589 = vunpack.c.h.b16 %v145
    %v590 = vunpack.c.l.b16 %v146
    %v591 = vunpack.c.h.b16 %v146
    %v592 = vunpack.c.l.b16 %v147
    %v593 = vunpack.c.h.b16 %v147
    %v594 = vunpack.c.l.b16 %v148
    %v595 = vunpack.c.h.b16 %v148
    %v596 = vunpack.c.l.b16 %v149
    %v597 = vunpack.c.h.b16 %v149
    %v598 = vunpack.c.l.b16 %v150
    %v599 = vunpack.c.h.b16 %v150
    %v600 = vunpack.c.l.b16 %v151
    %v601 = vunpack.c.h.b16 %v151
    %v602 = vunpack.c.l.b16 %v152
    %v603 = vunpack.c.h.b16 %v152
    %v604 = vunpack.c.l.b16 %v153
    %v605 = vunpack.c.h.b16 %v153
    %v606 = vunpack.c.l.b16 %v154
    %v607 = vunpack.c.h.b16 %v154
    %v608 = vunpack.c.l.b16 %v155
    %v609 = vunpack.c.h.b16 %v155
    %v610 = vunpack.c.l.b16 %v156
    %v611 = vunpack.c.h.b16 %v156
    %v612 = vunpack.c.l.b16 %v157
    %v613 = vunpack.c.h.b16 %v157
    %v614 = vunpack.c.l.b16 %v158
    %v615 = vunpack.c.h.b16 %v158
    %v616 = vunpack.c.l.b16 %v159
    %v617 = vunpack.c.h.b16 %v159
    %v618 = vunpack.c.l.b16 %v160
    %v619 = vunpack.c.h.b16 %v160
    %v620 = vunpack.c.l.b16 %v161
    %v621 = vunpack.c.h.b16 %v161
    %v622 = vunpack.c.l.b16 %v162
    %v623 = vunpack.c.h.b16 %v162
    %v624 = vunpack.c.l.b16 %v163
    %v625 = vunpack.c.h.b16 %v163
    %v626 = vunpack.c.l.b16 %v164
    %v627 = vunpack.c.h.b16 %v164
    %v628 = vunpack.c.l.b16 %v165
    %v629 = vunpack.c.h.b16 %v165
    %v630 = vunpack.c.l.b16 %v166
    %v631 = vunpack.c.h.b16 %v166
    %v632 = vunpack.c.l.b16 %v167
    %v633 = vunpack.c.h.b16 %v167
    %v634 = vunpack.c.l.b16 %v168
    %v635 = vunpack.c.h.b16 %v168
    %v636 = vunpack.c.l.b16 %v169
    %v637 = vunpack.c.h.b16 %v169
    %v638 = vunpack.c.l.b16 %v170
    %v639 = vunpack.c.h.b16 %v170
    %v640 = vunpack.c.l.b16 %v171
    %v641 = vunpack.c.h.b16 %v171
    %v642 = vunpack.c.l.b16 %v172
    %v643 = vunpack.c.h.b16 %v172
    %v644 = vunpack.c.l.b16 %v173
    %v645 = vunpack.c.h.b16 %v173
    %v646 = vunpack.c.l.b16 %v174
    %v647 = vunpack.c.h.b16 %v174
    %v648 = vunpack.c.l.b16 %v175
    %v649 = vunpack.c.h.b16 %v175
    %v650 = vunpack.c.l.b16 %v176
    %v651 = vunpack.c.h.b16 %v176
    %v652 = vunpack.c.l.b16 %v177
    %v653 = vunpack.c.h.b16 %v177
    %v654 = vunpack.c.l.b16 %v178
    %v655 = vunpack.c.h.b16 %v178
    %v656 = vunpack.c.l.b16 %v179
    %v657 = vunpack.c.h.b16 %v179
    %v658 = vunpack.c.l.b16 %v180
    %v659 = vunpack.c.h.b16 %v180
    %v660 = vunpack.c.l.b16 %v181
    %v661 = vunpack.c.h.b16 %v181
    %v662 = vunpack.c.l.b16 %v182
    %v663 = vunpack.c.h.b16 %v182
    %v664 = vunpack.c.l.b16 %v183
    %v665 = vunpack.c.h.b16 %v183
    %v666 = vunpack.c.l.b16 %v184
    %v667 = vunpack.c.h.b16 %v184
    %v668 = vunpack.c.l.b16 %v185
    %v669 = vunpack.c.h.b16 %v185
    %v670 = vunpack.c.l.b16 %v186
    %v671 = vunpack.c.h.b16 %v186
    %v672 = vunpack.c.l.b16 %v187
    %v673 = vunpack.c.h.b16 %v187
    %v674 = vunpack.c.l.b16 %v188
    %v675 = vunpack.c.h.b16 %v188
    %v676 = vunpack.c.l.b16 %v189
    %v677 = vunpack.c.h.b16 %v189
    %v678 = vunpack.c.l.b16 %v190
    %v679 = vunpack.c.h.b16 %v190
    %v680 = vunpack.c.l.b16 %v191
    %v681 = vunpack.c.h.b16 %v191
    %v682 = vunpack.c.l.b16 %v192
    %v683 = vunpack.c.h.b16 %v192
    %v684 = vunpack.c.l.b16 %v193
    %v685 = vunpack.c.h.b16 %v193
    %v686 = vunpack.c.l.b16 %v194
    %v687 = vunpack.c.h.b16 %v194
    %v688 = vunpack.c.l.b16 %v195
    %v689 = vunpack.c.h.b16 %v195
    %v690 = vunpack.c.l.b16 %v196
    %v691 = vunpack.c.h.b16 %v196
    %v692 = vunpack.c.l.b16 %v197
    %v693 = vunpack.c.h.b16 %v197
    %v694 = vunpack.c.l.b16 %v198
    %v695 = vunpack.c.h.b16 %v198
    %v696 = vunpack.c.l.b16 %v199
    %v697 = vunpack.c.h.b16 %v199
    %v698 = vunpack.c.l.b16 %v200
    %v699 = vunpack.c.h.b16 %v200
    %v700 = vunpack.c.l.b16 %v201
    %v701 = vunpack.c.h.b16 %v201
    %v702 = vunpack.c.l.b16 %v202
    %v703 = vunpack.c.h.b16 %v202
    %v704 = vunpack.c.l.b16 %v203
    %v705 = vunpack.c.h.b16 %v203
    %v706 = vunpack.c.l.b16 %v204
    %v707 = vunpack.c.h.b16 %v204
    %v708 = vunpack.c.l.b16 %v205
    %v709 = vunpack.c.h.b16 %v205
    %v710 = vunpack.c.l.b16 %v206
    %v711 = vunpack.c.h.b16 %v206
    %v712 = vunpack.c.l.b16 %v207
    %v713 = vunpack.c.h.b16 %v207
    %v714 = vunpack.c.l.b16 %v208
    %v715 = vunpack.c.h.b16 %v208
    %v716 = vunpack.c.l.b16 %v209
    %v717 = vunpack.c.h.b16 %v209
    %v718 = vunpack.c.l.b16 %v210
    %v719 = vunpack.c.h.b16 %v210
    %v720 = vunpack.c.l.b16 %v211
    %v721 = vunpack.c.h.b16 %v211
    %v722 = vunpack.c.l.b16 %v212
    %v723 = vunpack.c.h.b16 %v212
    %v724 = vunpack.c.l.b16 %v213
    %v725 = vunpack.c.h.b16 %v213
    %v726 = vunpack.c.l.b16 %v214
    %v727 = vunpack.c.h.b16 %v214
    %v728 = vunpack.c.l.b16 %v215
    %v729 = vunpack.c.h.b16 %v215
    %v730 = vunpack.c.l.b16 %v216
    %v731 = vunpack.c.h.b16 %v216
    %v732 = vunpack.c.l.b16 %v217
    %v733 = vunpack.c.h.b16 %v217
    %v734 = vunpack.c.l.b16 %v218
    %v735 = vunpack.c.h.b16 %v218
    %v736 = vunpack.c.l.b16 %v219
    %v737 = vunpack.c.h.b16 %v219
    %v738 = vunpack.c.l.b16 %v220
    %v739 = vunpack.c.h.b16 %v220
    %v740 = vunpack.c.l.b16 %v221
    %v741 = vunpack.c.h.b16 %v221
    %v742 = vunpack.c.l.b16 %v222
    %v743 = vunpack.c.h.b16 %v222
    %v744 = vunpack.c.l.b16 %v223
    %v745 = vunpack.c.h.b16 %v223
    %v746 = vunpack.c.l.b16 %v224
    %v747 = vunpack.c.h.b16 %v224
    %v748 = vunpack.c.l.b16 %v225
    %v749 = vunpack.c.h.b16 %v225
    %v750 = vunpack.c.l.b16 %v226
    %v751 = vunpack.c.h.b16 %v226
    %v752 = vunpack.c.l.b16 %v227
    %v753 = vunpack.c.h.b16 %v227
    %v754 = vunpack.c.l.b16 %v228
    %v755 = vunpack.c.h.b16 %v228
    %v756 = vunpack.c.l.b16 %v229
    %v757 = vunpack.c.h.b16 %v229
    %v758 = vunpack.c.l.b16 %v230
    %v759 = vunpack.c.h.b16 %v230
    %v760 = vunpack.c.l.b16 %v231
    %v761 = vunpack.c.h.b16 %v231
    %v762 = vunpack.c.l.b16 %v232
    %v763 = vunpack.c.h.b16 %v232
    %v764 = vunpack.c.l.b16 %v233
    %v765 = vunpack.c.h.b16 %v233
    %v766 = vunpack.c.l.b16 %v234
    %v767 = vunpack.c.h.b16 %v234
    %v768 = vunpack.c.l.b16 %v235
    %v769 = vunpack.c.h.b16 %v235
    %v770 = vunpack.c.l.b16 %v236
    %v771 = vunpack.c.h.b16 %v236
    %v772 = vunpack.c.l.b16 %v237
    %v773 = vunpack.c.h.b16 %v237
    %v774 = vunpack.c.l.b16 %v238
    %v775 = vunpack.c.h.b16 %v238
    %v776 = vunpack.c.l.b16 %v239
    %v777 = vunpack.c.h.b16 %v239
    %v778 = vunpack.c.l.b16 %v240
    %v779 = vunpack.c.h.b16 %v240
    %v780 = vunpack.c.l.b16 %v241
    %v781 = vunpack.c.h.b16 %v241
    %v782 = vunpack.c.l.b16 %v242
    %v783 = vunpack.c.h.b16 %v242
    %v784 = vunpack.c.l.b16 %v243
    %v785 = vunpack.c.h.b16 %v243
    %v786 = vunpack.c.l.b16 %v244
    %v787 = vunpack.c.h.b16 %v244
    %v788 = vunpack.c.l.b16 %v245
    %v789 = vunpack.c.h.b16 %v245
    %v790 = vunpack.c.l.b16 %v246
    %v791 = vunpack.c.h.b16 %v246
    %v792 = vunpack.c.l.b16 %v247
    %v793 = vunpack.c.h.b16 %v247
    %v794 = vunpack.c.l.b16 %v248
    %v795 = vunpack.c.h.b16 %v248
    %v796 = vunpack.c.l.b16 %v249
    %v797 = vunpack.c.h.b16 %v249
    %v798 = vunpack.c.l.b16 %v250
    %v799 = vunpack.c.h.b16 %v250
    %v800 = vunpack.c.l.b16 %v251
    %v801 = vunpack.c.h.b16 %v251
    %v802 = vunpack.c.l.b16 %v252
    %v803 = vunpack.c.h.b16 %v252
    %v804 = vunpack.c.l.b16 %v253
    %v805 = vunpack.c.h.b16 %v253
    %v806 = vunpack.c.l.b16 %v254
    %v807 = vunpack.c.h.b16 %v254
    %v808 = vunpack.c.l.b16 %v255
    %v809 = vunpack.c.h.b16 %v255
    %v810 = vunpack.c.l.b16 %v256
    %v811 = vunpack.c.h.b16 %v256
    %v812 = vunpack.c.l.b16 %v257
    %v813 = vunpack.c.h.b16 %v257
    %v814 = vunpack.c.l.b16 %v258
    %v815 = vunpack.c.h.b16 %v258
    %v816 = vunpack.c.l.b16 %v259
    %v817 = vunpack.c.h.b16 %v259
    %v818 = vunpack.c.l.b16 %v260
    %v819 = vunpack.c.h.b16 %v260
    %v820 = vunpack.c.l.b16 %v261
    %v821 = vunpack.c.h.b16 %v261
    %v822 = vunpack.c.l.b16 %v262
    %v823 = vunpack.c.h.b16 %v262
    %v824 = vunpack.c.l.b16 %v263
    %v825 = vunpack.c.h.b16 %v263
    %v826 = vunpack.c.l.b16 %v264
    %v827 = vunpack.c.h.b16 %v264
    %v828 = vunpack.c.l.b16 %v265
    %v829 = vunpack.c.h.b16 %v265
    %v830 = vunpack.c.l.b16 %v266
    %v831 = vunpack.c.h.b16 %v266
    %v832 = vunpack.c.l.b16 %v267
    %v833 = vunpack.c.h.b16 %v267
    %v834 = vunpack.c.l.b16 %v268
    %v835 = vunpack.c.h.b16 %v268
    %v836 = vunpack.c.l.b16 %v269
    %v837 = vunpack.c.h.b16 %v269
    %v838 = vunpack.c.l.b16 %v270
    %v839 = vunpack.c.h.b16 %v270
    %v840 = vunpack.c.l.b16 %v271
    %v841 = vunpack.c.h.b16 %v271
    %v842 = vunpack.c.l.b16 %v272
    %v843 = vunpack.c.h.b16 %v272
    %v844 = vunpack.c.l.b16 %v273
    %v845 = vunpack.c.h.b16 %v273
    %v846 = vunpack.c.l.b16 %v274
    %v847 = vunpack.c.h.b16 %v274
    %v848 = vunpack.c.l.b16 %v275
    %v849 = vunpack.c.h.b16 %v275
    %v850 = vunpack.c.l.b16 %v276
    %v851 = vunpack.c.h.b16 %v276
    %v852 = vunpack.c.l.b16 %v277
    %v853 = vunpack.c.h.b16 %v277
    %v854 = vunpack.c.l.b16 %v278
    %v855 = vunpack.c.h.b16 %v278
    %v856 = vunpack.c.l.b16 %v279
    %v857 = vunpack.c.h.b16 %v279
    %v858 = vunpack.c.l.b16 %v280
    %v859 = vunpack.c.h.b16 %v280
    %v860 = vunpack.c.l.b16 %v281
    %v861 = vunpack.c.h.b16 %v281
    %v862 = vunpack.c.l.b16 %v282
    %v863 = vunpack.c.h.b16 %v282
    %v864 = vunpack.c.l.b16 %v283
    %v865 = vunpack.c.h.b16 %v283
    %v866 = vunpack.c.l.b16 %v284
    %v867 = vunpack.c.h.b16 %v284
    %v868 = vunpack.c.l.b16 %v285
    %v869 = vunpack.c.h.b16 %v285
    %v870 = vunpack.c.l.b16 %v286
    %v871 = vunpack.c.h.b16 %v286
    %v872 = vunpack.c.l.b16 %v287
    %v873 = vunpack.c.h.b16 %v287
    %v874 = vunpack.c.l.b16 %v288
    %v875 = vunpack.c.h.b16 %v288
    %v876 = vunpack.c.l.b16 %v289
    %v877 = vunpack.c.h.b16 %v289
    %v878 = vunpack.c.l.b16 %v290
    %v879 = vunpack.c.h.b16 %v290
    %v880 = vunpack.c.l.b16 %v291
    %v881 = vunpack.c.h.b16 %v291
    %v882 = vunpack.c.l.b16 %v292
    %v883 = vunpack.c.h.b16 %v292
    %v884 = vunpack.c.l.b16 %v293
    %v885 = vunpack.c.h.b16 %v293
    %v886 = vunpack.c.l.b16 %v294
    %v887 = vunpack.c.h.b16 %v294
    %v888 = vunpack.c.l.b16 %v295
    %v889 = vunpack.c.h.b16 %v295
    %v890 = vunpack.c.l.b16 %v296
    %v891 = vunpack.c.h.b16 %v296
    %v892 = vunpack.c.l.b16 %v297
    %v893 = vunpack.c.h.b16 %v297
    %v894 = vunpack.c.l.b16 %v298
    %v895 = vunpack.c.h.b16 %v298
    %v896 = vunpack.c.l.b16 %v299
    %v897 = vunpack.c.h.b16 %v299
    %v898 = vunpack.c.l.b16 %v300
    %v899 = vunpack.c.h.b16 %v300
    %v900 = vunpack.c.l.b16 %v301
    %v901 = vunpack.c.h.b16 %v301
    %v902 = vunpack.c.l.b16 %v302
    %v903 = vunpack.c.h.b16 %v302
    %v904 = vunpack.c.l.b16 %v303
    %v905 = vunpack.c.h.b16 %v303
    %v906 = vunpack.c.l.b16 %v304
    %v907 = vunpack.c.h.b16 %v304
    %v908 = vunpack.c.l.b16 %v305
    %v909 = vunpack.c.h.b16 %v305
    %v910 = vunpack.c.l.b16 %v306
    %v911 = vunpack.c.h.b16 %v306
    %v912 = vunpack.c.l.b16 %v307
    %v913 = vunpack.c.h.b16 %v307
    %v914 = vpack.c.b16 %v534, %v530
    %v915 = vpack.c.b16 %v535, %v531
    %v916 = vpack.c.b16 %v536, %v532
    %v917 = vpack.c.b16 %v537, %v533
    %v918 = vpack.c.b16 %v542, %v538
    %v919 = vpack.c.b16 %v543, %v539
    %v920 = vpack.c.b16 %v544, %v540
    %v921 = vpack.c.b16 %v545, %v541
    %v922 = vpack.c.b16 %v550, %v546
    %v923 = vpack.c.b16 %v551, %v547
    %v924 = vpack.c.b16 %v552, %v548
    %v925 = vpack.c.b16 %v553, %v549
    %v926 = vpack.c.b16 %v558, %v554
    %v927 = vpack.c.b16 %v559, %v555
    %v928 = vpack.c.b16 %v560, %v556
    %v929 = vpack.c.b16 %v561, %v557
    %v930 = vpack.c.b16 %v566, %v562
    %v931 = vpack.c.b16 %v567, %v563
    %v932 = vpack.c.b16 %v568, %v564
    %v933 = vpack.c.b16 %v569, %v565
    %v934 = vpack.c.b16 %v574, %v570
    %v935 = vpack.c.b16 %v575, %v571
    %v936 = vpack.c.b16 %v576, %v572
    %v937 = vpack.c.b16 %v577, %v573
    %v938 = vpack.c.b16 %v582, %v578
    %v939 = vpack.c.b16 %v583, %v579
    %v940 = vpack.c.b16 %v584, %v580
    %v941 = vpack.c.b16 %v585, %v581
    %v942 = vpack.c.b16 %v590, %v586
    %v943 = vpack.c.b16 %v591, %v587
    %v944 = vpack.c.b16 %v592, %v588
    %v945 = vpack.c.b16 %v593, %v589
    %v946 = vpack.c.b16 %v598, %v594
    %v947 = vpack.c.b16 %v599, %v595
    %v948 = vpack.c.b16 %v600, %v596
    %v949 = vpack.c.b16 %v601, %v597
    %v950 = vpack.c.b16 %v606, %v602
    %v951 = vpack.c.b16 %v607, %v603
    %v952 = vpack.c.b16 %v608, %v604
    %v953 = vpack.c.b16 %v609, %v605
    %v954 = vpack.c.b16 %v614, %v610
    %v955 = vpack.c.b16 %v615, %v611
    %v956 = vpack.c.b16 %v616, %v612
    %v957 = vpack.c.b16 %v617, %v613
    %v958 = vpack.c.b16 %v622, %v618
    %v959 = vpack.c.b16 %v623, %v619
    %v960 = vpack.c.b16 %v624, %v620
    %v961 = vpack.c.b16 %v625, %v621
    %v962 = vpack.c.b16 %v630, %v626
    %v963 = vpack.c.b16 %v631, %v627
    %v964 = vpack.c.b16 %v632, %v628
    %v965 = vpack.c.b16 %v633, %v629
    %v966 = vpack.c.b16 %v638, %v634
    %v967 = vpack.c.b16 %v639, %v635
    %v968 = vpack.c.b16 %v640, %v636
    %v969 = vpack.c.b16 %v641, %v637
    %v970 = vpack.c.b16 %v646, %v642
    %v971 = vpack.c.b16 %v647, %v643
    %v972 = vpack.c.b16 %v648, %v644
    %v973 = vpack.c.b16 %v649, %v645
    %v974 = vpack.c.b16 %v654, %v650
    %v975 = vpack.c.b16 %v655, %v651
    %v976 = vpack.c.b16 %v656, %v652
    %v977 = vpack.c.b16 %v657, %v653
    %v978 = vpack.c.b16 %v662, %v658
    %v979 = vpack.c.b16 %v663, %v659
    %v980 = vpack.c.b16 %v664, %v660
    %v981 = vpack.c.b16 %v665, %v661
    %v982 = vpack.c.b16 %v670, %v666
    %v983 = vpack.c.b16 %v671, %v667
    %v984 = vpack.c.b16 %v672, %v668
    %v985 = vpack.c.b16 %v673, %v669
    %v986 = vpack.c.b16 %v678, %v674
    %v987 = vpack.c.b16 %v679, %v675
    %v988 = vpack.c.b16 %v680, %v676
    %v989 = vpack.c.b16 %v681, %v677
    %v990 = vpack.c.b16 %v686, %v682
    %v991 = vpack.c.b16 %v687, %v683
    %v992 = vpack.c.b16 %v688, %v684
    %v993 = vpack.c.b16 %v689, %v685
    %v994 = vpack.c.b16 %v694, %v690
    %v995 = vpack.c.b16 %v695, %v691
    %v996 = vpack.c.b16 %v696, %v692
    %v997 = vpack.c.b16 %v697, %v693
    %v998 = vpack.c.b16 %v702, %v698
    %v999 = vpack.c.b16 %v703, %v699
    %v1000 = vpack.c.b16 %v704, %v700
    %v1001 = vpack.c.b16 %v705, %v701
    %v1002 = vpack.c.b16 %v710, %v706
    %v1003 = vpack.c.b16 %v711, %v707
    %v1004 = vpack.c.b16 %v712, %v708
    %v1005 = vpack.c.b16 %v713, %v709
    %v1006 = vpack.c.b16 %v718, %v714
    %v1007 = vpack.c.b16 %v719, %v715
    %v1008 = vpack.c.b16 %v720, %v716
    %v1009 = vpack.c.b16 %v721, %v717
    %v1010 = vpack.c.b16 %v726, %v722
    %v1011 = vpack.c.b16 %v727, %v723
    %v1012 = vpack.c.b16 %v728, %v724
    %v1013 = vpack.c.b16 %v729, %v725
    %v1014 = vpack.c.b16 %v734, %v730
    %v1015 = vpack.c.b16 %v735, %v731
    %v1016 = vpack.c.b16 %v736, %v732
    %v1017 = vpack.c.b16 %v737, %v733
    %v1018 = vpack.c.b16 %v742, %v738
    %v1019 = vpack.c.b16 %v743, %v739
    %v1020 = vpack.c.b16 %v744, %v740
    %v1021 = vpack.c.b16 %v745, %v741
    %v1022 = vpack.c.b16 %v750, %v746
    %v1023 = vpack.c.b16 %v751, %v747
    %v1024 = vpack.c.b16 %v752, %v748
    %v1025 = vpack.c.b16 %v753, %v749
    %v1026 = vpack.c.b16 %v758, %v754
    %v1027 = vpack.c.b16 %v759, %v755
    %v1028 = vpack.c.b16 %v760, %v756
    %v1029 = vpack.c.b16 %v761, %v757
    %v1030 = vpack.c.b16 %v766, %v762
    %v1031 = vpack.c.b16 %v767, %v763
    %v1032 = vpack.c.b16 %v768, %v764
    %v1033 = vpack.c.b16 %v769, %v765
    %v1034 = vpack.c.b16 %v774, %v770
    %v1035 = vpack.c.b16 %v775, %v771
    %v1036 = vpack.c.b16 %v776, %v772
    %v1037 = vpack.c.b16 %v777, %v773
    %v1038 = vpack.c.b16 %v782, %v778
    %v1039 = vpack.c.b16 %v783, %v779
    %v1040 = vpack.c.b16 %v784, %v780
    %v1041 = vpack.c.b16 %v785, %v781
    %v1042 = vpack.c.b16 %v790, %v786
    %v1043 = vpack.c.b16 %v791, %v787
    %v1044 = vpack.c.b16 %v792, %v788
    %v1045 = vpack.c.b16 %v793, %v789
    %v1046 = vpack.c.b16 %v798, %v794
    %v1047 = vpack.c.b16 %v799, %v795
    %v1048 = vpack.c.b16 %v800, %v796
    %v1049 = vpack.c.b16 %v801, %v797
    %v1050 = vpack.c.b16 %v806, %v802
    %v1051 = vpack.c.b16 %v807, %v803
    %v1052 = vpack.c.b16 %v808, %v804
    %v1053 = vpack.c.b16 %v809, %v805
    %v1054 = vpack.c.b16 %v814, %v810
    %v1055 = vpack.c.b16 %v815, %v811
    %v1056 = vpack.c.b16 %v816, %v812
    %v1057 = vpack.c.b16 %v817, %v813
    %v1058 = vpack.c.b16 %v822, %v818
    %v1059 = vpack.c.b16 %v823, %v819
    %v1060 = vpack.c.b16 %v824, %v820
    %v1061 = vpack.c.b16 %v825, %v821
    %v1062 = vpack.c.b16 %v830, %v826
    %v1063 = vpack.c.b16 %v831, %v827
    %v1064 = vpack.c.b16 %v832, %v828
    %v1065 = vpack.c.b16 %v833, %v829
    %v1066 = vpack.c.b16 %v838, %v834
    %v1067 = vpack.c.b16 %v839, %v835
    %v1068 = vpack.c.b16 %v840, %v836
    %v1069 = vpack.c.b16 %v841, %v837
    %v1070 = vpack.c.b16 %v846, %v842
    %v1071 = vpack.c.b16 %v847, %v843
    %v1072 = vpack.c.b16 %v848, %v844
    %v1073 = vpack.c.b16 %v849, %v845
    %v1074 = vpack.c.b16 %v854, %v850
    %v1075 = vpack.c.b16 %v855, %v851
    %v1076 = vpack.c.b16 %v856, %v852
    %v1077 = vpack.c.b16 %v857, %v853
    %v1078 = vpack.c.b16 %v862, %v858
    %v1079 = vpack.c.b16 %v863, %v859
    %v1080 = vpack.c.b16 %v864, %v860
    %v1081 = vpack.c.b16 %v865, %v861
    %v1082 = vpack.c.b16 %v870, %v866
    %v1083 = vpack.c.b16 %v871, %v867
    %v1084 = vpack.c.b16 %v872, %v868
    %v1085 = vpack.c.b16 %v873, %v869
    %v1086 = vpack.c.b16 %v878, %v874
    %v1087 = vpack.c.b16 %v879, %v875
    %v1088 = vpack.c.b16 %v880, %v876
    %v1089 = vpack.c.b16 %v881, %v877
    %v1090 = vpack.c.b16 %v886, %v882
    %v1091 = vpack.c.b16 %v887, %v883
    %v1092 = vpack.c.b16 %v888, %v884
    %v1093 = vpack.c.b16 %v889, %v885
    %v1094 = vpack.c.b16 %v894, %v890
    %v1095 = vpack.c.b16 %v895, %v891
    %v1096 = vpack.c.b16 %v896, %v892
    %v1097 = vpack.c.b16 %v897, %v893
    %v1098 = vpack.c.b16 %v902, %v898
    %v1099 = vpack.c.b16 %v903, %v899
    %v1100 = vpack.c.b16 %v904, %v900
    %v1101 = vpack.c.b16 %v905, %v901
    %v1102 = vpack.c.b16 %v910, %v906
    %v1103 = vpack.c.b16 %v911, %v907
    %v1104 = vpack.c.b16 %v912, %v908
    %v1105 = vpack.c.b16 %v913, %v909
    %1298 = vmatpush.bf16.msra.mxu0 %v942
    %1299 = vmatpush.bf16.msra.mxu0 %v938
    %1300 = vmatpush.bf16.msra.mxu0 %v934
    %1301 = vmatpush.bf16.msra.mxu0 %v930
    %1302 = vmatpush.bf16.msra.mxu0 %v926
    %1303 = vmatpush.bf16.msra.mxu0 %v922
    %1304 = vmatpush.bf16.msra.mxu0 %v918
    %1305 = vmatpush.bf16.msra.mxu0 %v914
    %1306 = vmatmul.bf16.gmra.mxu0 %v326
    %v1307 = vpop.f32.mrf.mxu0
    %v1308 = vadd.f32 0.0, %v1307
    %v1309 = vpop.f32.mrf.mxu0
    %v1310 = vadd.f32 0.0, %v1309
    %1311 = vdwg.mxu0
    %1312 = vmatpush.bf16.msra.mxu0 %v974
    %1313 = vmatpush.bf16.msra.mxu0 %v970
    %1314 = vmatpush.bf16.msra.mxu0 %v966
    %1315 = vmatpush.bf16.msra.mxu0 %v962
    %1316 = vmatpush.bf16.msra.mxu0 %v958
    %1317 = vmatpush.bf16.msra.mxu0 %v954
    %1318 = vmatpush.bf16.msra.mxu0 %v950
    %1319 = vmatpush.bf16.msra.mxu0 %v946
    %1320 = vmatmul.bf16.gmra.mxu0 %v327
    %v1321 = vpop.f32.mrf.mxu0
    %v1322 = vadd.f32 %v1308, %v1321
    %v1323 = vpop.f32.mrf.mxu0
    %v1324 = vadd.f32 %v1310, %v1323
    %1325 = vdwg.mxu0
    %1326 = vmatpush.bf16.msra.mxu0 %v1006
    %1327 = vmatpush.bf16.msra.mxu0 %v1002
    %1328 = vmatpush.bf16.msra.mxu0 %v998
    %1329 = vmatpush.bf16.msra.mxu0 %v994
    %1330 = vmatpush.bf16.msra.mxu0 %v990
    %1331 = vmatpush.bf16.msra.mxu0 %v986
    %1332 = vmatpush.bf16.msra.mxu0 %v982
    %1333 = vmatpush.bf16.msra.mxu0 %v978
    %1334 = vmatmul.bf16.gmra.mxu0 %v328
    %v1335 = vpop.f32.mrf.mxu0
    %v1336 = vadd.f32 %v1322, %v1335
    %v1337 = vpop.f32.mrf.mxu0
    %v1338 = vadd.f32 %v1324, %v1337
    %1339 = vdwg.mxu0
    %1340 = vmatpush.bf16.msra.mxu0 %v1038
    %1341 = vmatpush.bf16.msra.mxu0 %v1034
    %1342 = vmatpush.bf16.msra.mxu0 %v1030
    %1343 = vmatpush.bf16.msra.mxu0 %v1026
    %1344 = vmatpush.bf16.msra.mxu0 %v1022
    %1345 = vmatpush.bf16.msra.mxu0 %v1018
    %1346 = vmatpush.bf16.msra.mxu0 %v1014
    %1347 = vmatpush.bf16.msra.mxu0 %v1010
    %1348 = vmatmul.bf16.gmra.mxu0 %v329
    %v1349 = vpop.f32.mrf.mxu0
    %v1350 = vadd.f32 %v1336, %v1349
    %v1351 = vpop.f32.mrf.mxu0
    %v1352 = vadd.f32 %v1338, %v1351
    %1353 = vdwg.mxu0
    %1354 = vmatpush.bf16.msra.mxu0 %v1070
    %1355 = vmatpush.bf16.msra.mxu0 %v1066
    %1356 = vmatpush.bf16.msra.mxu0 %v1062
    %1357 = vmatpush.bf16.msra.mxu0 %v1058
    %1358 = vmatpush.bf16.msra.mxu0 %v1054
    %1359 = vmatpush.bf16.msra.mxu0 %v1050
    %1360 = vmatpush.bf16.msra.mxu0 %v1046
    %1361 = vmatpush.bf16.msra.mxu0 %v1042
    %1362 = vmatmul.bf16.gmra.mxu0 %v330
    %v1363 = vpop.f32.mrf.mxu0
    %v1364 = vadd.f32 %v1350, %v1363
    %v1365 = vpop.f32.mrf.mxu0
    %v1366 = vadd.f32 %v1352, %v1365
    %1367 = vdwg.mxu0
    %1368 = vmatpush.bf16.msra.mxu0 %v1102
    %1369 = vmatpush.bf16.msra.mxu0 %v1098
    %1370 = vmatpush.bf16.msra.mxu0 %v1094
    %1371 = vmatpush.bf16.msra.mxu0 %v1090
    %1372 = vmatpush.bf16.msra.mxu0 %v1086
    %1373 = vmatpush.bf16.msra.mxu0 %v1082
    %1374 = vmatpush.bf16.msra.mxu0 %v1078
    %1375 = vmatpush.bf16.msra.mxu0 %v1074
    %1376 = vmatmul.bf16.gmra.mxu0 %v331
    %v1377 = vpop.f32.mrf.mxu0
    %v1378 = vadd.f32 %v1364, %v1377
    %v1379 = vpop.f32.mrf.mxu0
    %v1380 = vadd.f32 %v1366, %v1379
    %1381 = vdwg.mxu0
    %1382 = vmatpush.bf16.msra.mxu0 %v943
    %1383 = vmatpush.bf16.msra.mxu0 %v939
    %1384 = vmatpush.bf16.msra.mxu0 %v935
    %1385 = vmatpush.bf16.msra.mxu0 %v931
    %1386 = vmatpush.bf16.msra.mxu0 %v927
    %1387 = vmatpush.bf16.msra.mxu0 %v923
    %1388 = vmatpush.bf16.msra.mxu0 %v919
    %1389 = vmatpush.bf16.msra.mxu0 %v915
    %1390 = vmatmul.bf16.gmra.mxu0 %v326
    %v1391 = vpop.f32.mrf.mxu0
    %v1392 = vadd.f32 0.0, %v1391
    %v1393 = vpop.f32.mrf.mxu0
    %v1394 = vadd.f32 0.0, %v1393
    %1395 = vdwg.mxu0
    %1396 = vmatpush.bf16.msra.mxu0 %v975
    %1397 = vmatpush.bf16.msra.mxu0 %v971
    %1398 = vmatpush.bf16.msra.mxu0 %v967
    %1399 = vmatpush.bf16.msra.mxu0 %v963
    %1400 = vmatpush.bf16.msra.mxu0 %v959
    %1401 = vmatpush.bf16.msra.mxu0 %v955
    %1402 = vmatpush.bf16.msra.mxu0 %v951
    %1403 = vmatpush.bf16.msra.mxu0 %v947
    %1404 = vmatmul.bf16.gmra.mxu0 %v327
    %v1405 = vpop.f32.mrf.mxu0
    %v1406 = vadd.f32 %v1392, %v1405
    %v1407 = vpop.f32.mrf.mxu0
    %v1408 = vadd.f32 %v1394, %v1407
    %1409 = vdwg.mxu0
    %1410 = vmatpush.bf16.msra.mxu0 %v1007
    %1411 = vmatpush.bf16.msra.mxu0 %v1003
    %1412 = vmatpush.bf16.msra.mxu0 %v999
    %1413 = vmatpush.bf16.msra.mxu0 %v995
    %1414 = vmatpush.bf16.msra.mxu0 %v991
    %1415 = vmatpush.bf16.msra.mxu0 %v987
    %1416 = vmatpush.bf16.msra.mxu0 %v983
    %1417 = vmatpush.bf16.msra.mxu0 %v979
    %1418 = vmatmul.bf16.gmra.mxu0 %v328
    %v1419 = vpop.f32.mrf.mxu0
    %v1420 = vadd.f32 %v1406, %v1419
    %v1421 = vpop.f32.mrf.mxu0
    %v1422 = vadd.f32 %v1408, %v1421
    %1423 = vdwg.mxu0
    %1424 = vmatpush.bf16.msra.mxu0 %v1039
    %1425 = vmatpush.bf16.msra.mxu0 %v1035
    %1426 = vmatpush.bf16.msra.mxu0 %v1031
    %1427 = vmatpush.bf16.msra.mxu0 %v1027
    %1428 = vmatpush.bf16.msra.mxu0 %v1023
    %1429 = vmatpush.bf16.msra.mxu0 %v1019
    %1430 = vmatpush.bf16.msra.mxu0 %v1015
    %1431 = vmatpush.bf16.msra.mxu0 %v1011
    %1432 = vmatmul.bf16.gmra.mxu0 %v329
    %v1433 = vpop.f32.mrf.mxu0
    %v1434 = vadd.f32 %v1420, %v1433
    %v1435 = vpop.f32.mrf.mxu0
    %v1436 = vadd.f32 %v1422, %v1435
    %1437 = vdwg.mxu0
    %1438 = vmatpush.bf16.msra.mxu0 %v1071
    %1439 = vmatpush.bf16.msra.mxu0 %v1067
    %1440 = vmatpush.bf16.msra.mxu0 %v1063
    %1441 = vmatpush.bf16.msra.mxu0 %v1059
    %1442 = vmatpush.bf16.msra.mxu0 %v1055
    %1443 = vmatpush.bf16.msra.mxu0 %v1051
    %1444 = vmatpush.bf16.msra.mxu0 %v1047
    %1445 = vmatpush.bf16.msra.mxu0 %v1043
    %1446 = vmatmul.bf16.gmra.mxu0 %v330
    %v1447 = vpop.f32.mrf.mxu0
    %v1448 = vadd.f32 %v1434, %v1447
    %v1449 = vpop.f32.mrf.mxu0
    %v1450 = vadd.f32 %v1436, %v1449
    %1451 = vdwg.mxu0
    %1452 = vmatpush.bf16.msra.mxu0 %v1103
    %1453 = vmatpush.bf16.msra.mxu0 %v1099
    %1454 = vmatpush.bf16.msra.mxu0 %v1095
    %1455 = vmatpush.bf16.msra.mxu0 %v1091
    %1456 = vmatpush.bf16.msra.mxu0 %v1087
    %1457 = vmatpush.bf16.msra.mxu0 %v1083
    %1458 = vmatpush.bf16.msra.mxu0 %v1079
    %1459 = vmatpush.bf16.msra.mxu0 %v1075
    %1460 = vmatmul.bf16.gmra.mxu0 %v331
    %v1461 = vpop.f32.mrf.mxu0
    %v1462 = vadd.f32 %v1448, %v1461
    %v1463 = vpop.f32.mrf.mxu0
    %v1464 = vadd.f32 %v1450, %v1463
    %1465 = vdwg.mxu0
    %1466 = vmatpush.bf16.msra.mxu0 %v944
    %1467 = vmatpush.bf16.msra.mxu0 %v940
    %1468 = vmatpush.bf16.msra.mxu0 %v936
    %1469 = vmatpush.bf16.msra.mxu0 %v932
    %1470 = vmatpush.bf16.msra.mxu0 %v928
    %1471 = vmatpush.bf16.msra.mxu0 %v924
    %1472 = vmatpush.bf16.msra.mxu0 %v920
    %1473 = vmatpush.bf16.msra.mxu0 %v916
    %1474 = vmatmul.bf16.gmra.mxu0 %v326
    %v1475 = vpop.f32.mrf.mxu0
    %v1476 = vadd.f32 0.0, %v1475
    %v1477 = vpop.f32.mrf.mxu0
    %v1478 = vadd.f32 0.0, %v1477
    %1479 = vdwg.mxu0
    %1480 = vmatpush.bf16.msra.mxu0 %v976
    %1481 = vmatpush.bf16.msra.mxu0 %v972
    %1482 = vmatpush.bf16.msra.mxu0 %v968
    %1483 = vmatpush.bf16.msra.mxu0 %v964
    %1484 = vmatpush.bf16.msra.mxu0 %v960
    %1485 = vmatpush.bf16.msra.mxu0 %v956
    %1486 = vmatpush.bf16.msra.mxu0 %v952
    %1487 = vmatpush.bf16.msra.mxu0 %v948
    %1488 = vmatmul.bf16.gmra.mxu0 %v327
    %v1489 = vpop.f32.mrf.mxu0
    %v1490 = vadd.f32 %v1476, %v1489
    %v1491 = vpop.f32.mrf.mxu0
    %v1492 = vadd.f32 %v1478, %v1491
    %1493 = vdwg.mxu0
    %1494 = vmatpush.bf16.msra.mxu0 %v1008
    %1495 = vmatpush.bf16.msra.mxu0 %v1004
    %1496 = vmatpush.bf16.msra.mxu0 %v1000
    %1497 = vmatpush.bf16.msra.mxu0 %v996
    %1498 = vmatpush.bf16.msra.mxu0 %v992
    %1499 = vmatpush.bf16.msra.mxu0 %v988
    %1500 = vmatpush.bf16.msra.mxu0 %v984
    %1501 = vmatpush.bf16.msra.mxu0 %v980
    %1502 = vmatmul.bf16.gmra.mxu0 %v328
    %v1503 = vpop.f32.mrf.mxu0
    %v1504 = vadd.f32 %v1490, %v1503
    %v1505 = vpop.f32.mrf.mxu0
    %v1506 = vadd.f32 %v1492, %v1505
    %1507 = vdwg.mxu0
    %1508 = vmatpush.bf16.msra.mxu0 %v1040
    %1509 = vmatpush.bf16.msra.mxu0 %v1036
    %1510 = vmatpush.bf16.msra.mxu0 %v1032
    %1511 = vmatpush.bf16.msra.mxu0 %v1028
    %1512 = vmatpush.bf16.msra.mxu0 %v1024
    %1513 = vmatpush.bf16.msra.mxu0 %v1020
    %1514 = vmatpush.bf16.msra.mxu0 %v1016
    %1515 = vmatpush.bf16.msra.mxu0 %v1012
    %1516 = vmatmul.bf16.gmra.mxu0 %v329
    %v1517 = vpop.f32.mrf.mxu0
    %v1518 = vadd.f32 %v1504, %v1517
    %v1519 = vpop.f32.mrf.mxu0
    %v1520 = vadd.f32 %v1506, %v1519
    %1521 = vdwg.mxu0
    %1522 = vmatpush.bf16.msra.mxu0 %v1072
    %1523 = vmatpush.bf16.msra.mxu0 %v1068
    %1524 = vmatpush.bf16.msra.mxu0 %v1064
    %1525 = vmatpush.bf16.msra.mxu0 %v1060
    %1526 = vmatpush.bf16.msra.mxu0 %v1056
    %1527 = vmatpush.bf16.msra.mxu0 %v1052
    %1528 = vmatpush.bf16.msra.mxu0 %v1048
    %1529 = vmatpush.bf16.msra.mxu0 %v1044
    %1530 = vmatmul.bf16.gmra.mxu0 %v330
    %v1531 = vpop.f32.mrf.mxu0
    %v1532 = vadd.f32 %v1518, %v1531
    %v1533 = vpop.f32.mrf.mxu0
    %v1534 = vadd.f32 %v1520, %v1533
    %1535 = vdwg.mxu0
    %1536 = vmatpush.bf16.msra.mxu0 %v1104
    %1537 = vmatpush.bf16.msra.mxu0 %v1100
    %1538 = vmatpush.bf16.msra.mxu0 %v1096
    %1539 = vmatpush.bf16.msra.mxu0 %v1092
    %1540 = vmatpush.bf16.msra.mxu0 %v1088
    %1541 = vmatpush.bf16.msra.mxu0 %v1084
    %1542 = vmatpush.bf16.msra.mxu0 %v1080
    %1543 = vmatpush.bf16.msra.mxu0 %v1076
    %1544 = vmatmul.bf16.gmra.mxu0 %v331
    %v1545 = vpop.f32.mrf.mxu0
    %v1546 = vadd.f32 %v1532, %v1545
    %v1547 = vpop.f32.mrf.mxu0
    %v1548 = vadd.f32 %v1534, %v1547
    %1549 = vdwg.mxu0
    %1550 = vmatpush.bf16.msra.mxu0 %v945
    %1551 = vmatpush.bf16.msra.mxu0 %v941
    %1552 = vmatpush.bf16.msra.mxu0 %v937
    %1553 = vmatpush.bf16.msra.mxu0 %v933
    %1554 = vmatpush.bf16.msra.mxu0 %v929
    %1555 = vmatpush.bf16.msra.mxu0 %v925
    %1556 = vmatpush.bf16.msra.mxu0 %v921
    %1557 = vmatpush.bf16.msra.mxu0 %v917
    %1558 = vmatmul.bf16.gmra.mxu0 %v326
    %v1559 = vpop.f32.mrf.mxu0
    %v1560 = vadd.f32 0.0, %v1559
    %v1561 = vpop.f32.mrf.mxu0
    %v1562 = vadd.f32 0.0, %v1561
    %1563 = vdwg.mxu0
    %1564 = vmatpush.bf16.msra.mxu0 %v977
    %1565 = vmatpush.bf16.msra.mxu0 %v973
    %1566 = vmatpush.bf16.msra.mxu0 %v969
    %1567 = vmatpush.bf16.msra.mxu0 %v965
    %1568 = vmatpush.bf16.msra.mxu0 %v961
    %1569 = vmatpush.bf16.msra.mxu0 %v957
    %1570 = vmatpush.bf16.msra.mxu0 %v953
    %1571 = vmatpush.bf16.msra.mxu0 %v949
    %1572 = vmatmul.bf16.gmra.mxu0 %v327
    %v1573 = vpop.f32.mrf.mxu0
    %v1574 = vadd.f32 %v1560, %v1573
    %v1575 = vpop.f32.mrf.mxu0
    %v1576 = vadd.f32 %v1562, %v1575
    %1577 = vdwg.mxu0
    %1578 = vmatpush.bf16.msra.mxu0 %v1009
    %1579 = vmatpush.bf16.msra.mxu0 %v1005
    %1580 = vmatpush.bf16.msra.mxu0 %v1001
    %1581 = vmatpush.bf16.msra.mxu0 %v997
    %1582 = vmatpush.bf16.msra.mxu0 %v993
    %1583 = vmatpush.bf16.msra.mxu0 %v989
    %1584 = vmatpush.bf16.msra.mxu0 %v985
    %1585 = vmatpush.bf16.msra.mxu0 %v981
    %1586 = vmatmul.bf16.gmra.mxu0 %v328
    %v1587 = vpop.f32.mrf.mxu0
    %v1588 = vadd.f32 %v1574, %v1587
    %v1589 = vpop.f32.mrf.mxu0
    %v1590 = vadd.f32 %v1576, %v1589
    %1591 = vdwg.mxu0
    %1592 = vmatpush.bf16.msra.mxu0 %v1041
    %1593 = vmatpush.bf16.msra.mxu0 %v1037
    %1594 = vmatpush.bf16.msra.mxu0 %v1033
    %1595 = vmatpush.bf16.msra.mxu0 %v1029
    %1596 = vmatpush.bf16.msra.mxu0 %v1025
    %1597 = vmatpush.bf16.msra.mxu0 %v1021
    %1598 = vmatpush.bf16.msra.mxu0 %v1017
    %1599 = vmatpush.bf16.msra.mxu0 %v1013
    %1600 = vmatmul.bf16.gmra.mxu0 %v329
    %v1601 = vpop.f32.mrf.mxu0
    %v1602 = vadd.f32 %v1588, %v1601
    %v1603 = vpop.f32.mrf.mxu0
    %v1604 = vadd.f32 %v1590, %v1603
    %1605 = vdwg.mxu0
    %1606 = vmatpush.bf16.msra.mxu0 %v1073
    %1607 = vmatpush.bf16.msra.mxu0 %v1069
    %1608 = vmatpush.bf16.msra.mxu0 %v1065
    %1609 = vmatpush.bf16.msra.mxu0 %v1061
    %1610 = vmatpush.bf16.msra.mxu0 %v1057
    %1611 = vmatpush.bf16.msra.mxu0 %v1053
    %1612 = vmatpush.bf16.msra.mxu0 %v1049
    %1613 = vmatpush.bf16.msra.mxu0 %v1045
    %1614 = vmatmul.bf16.gmra.mxu0 %v330
    %v1615 = vpop.f32.mrf.mxu0
    %v1616 = vadd.f32 %v1602, %v1615
    %v1617 = vpop.f32.mrf.mxu0
    %v1618 = vadd.f32 %v1604, %v1617
    %1619 = vdwg.mxu0
    %1620 = vmatpush.bf16.msra.mxu0 %v1105
    %1621 = vmatpush.bf16.msra.mxu0 %v1101
    %1622 = vmatpush.bf16.msra.mxu0 %v1097
    %1623 = vmatpush.bf16.msra.mxu0 %v1093
    %1624 = vmatpush.bf16.msra.mxu0 %v1089
    %1625 = vmatpush.bf16.msra.mxu0 %v1085
    %1626 = vmatpush.bf16.msra.mxu0 %v1081
    %1627 = vmatpush.bf16.msra.mxu0 %v1077
    %1628 = vmatmul.bf16.gmra.mxu0 %v331
    %v1629 = vpop.f32.mrf.mxu0
    %v1630 = vadd.f32 %v1616, %v1629
    %v1631 = vpop.f32.mrf.mxu0
    %v1632 = vadd.f32 %v1618, %v1631
    %1633 = vdwg.mxu0
    %v1634 = vadd.f32 %v108, %v1378
    %v1635 = vadd.f32 %v109, %v1462
    %v1636 = vadd.f32 %v110, %v1546
    %v1637 = vadd.f32 %v111, %v1630
    %v1638 = vadd.f32 %v112, %v1380
    %v1639 = vadd.f32 %v113, %v1464
    %v1640 = vadd.f32 %v114, %v1548
    %v1641 = vadd.f32 %v115, %v1632
    %1642 = vst [vmem:[#allocation2] sm:$0xff] %v1634
    %1643 = vst [vmem:[#allocation2 + $0x8] sm:$0xff] %v1635
    %1644 = vst [vmem:[#allocation2 + $0x10] sm:$0xff] %v1636
    %1645 = vst [vmem:[#allocation2 + $0x18] sm:$0xff] %v1637
    %1646 = vst [vmem:[#allocation2 + $0x20] sm:$0xff] %v1638
    %1647 = vst [vmem:[#allocation2 + $0x28] sm:$0xff] %v1639
    %1648 = vst [vmem:[#allocation2 + $0x30] sm:$0xff] %v1640
    %1649 = vst [vmem:[#allocation2 + $0x38] sm:$0xff] %v1641
    // Predicated region
    $region50: #{tpu_custom_call.1} parent=1 // pred_check
      %p1650 = pneg %p90
    $region51: #{tpu_custom_call.1} parent=1 // pred_check_branch
      %1652 = sbr.rel (%p1650) target = $region53
    $region52: #{tpu_custom_call.1} parent=1 // pred_region
      %v1653 = vld [vmem:[#allocation2] sm:$0xff]
      %v1654 = vld [vmem:[#allocation2 + $0x8] sm:$0xff]
      %v1655 = vld [vmem:[#allocation2 + $0x10] sm:$0xff]
      %v1656 = vld [vmem:[#allocation2 + $0x18] sm:$0xff]
      %v1657 = vld [vmem:[#allocation2 + $0x20] sm:$0xff]
      %v1658 = vld [vmem:[#allocation2 + $0x28] sm:$0xff]
      %v1659 = vld [vmem:[#allocation2 + $0x30] sm:$0xff]
      %v1660 = vld [vmem:[#allocation2 + $0x38] sm:$0xff]
      %v1661 = vld [vmem:[#allocation9] sm:$0xf]
      %v1663 = vperm.slane %v1661, 0
      %v1664 = vperm.slane %v1661, 1
      %v1665 = vperm.slane %v1661, 2
      %v1666 = vperm.slane %v1661, 3
      %v1671 = vadd.f32 %v1653, %v1663
      %v1672 = vadd.f32 %v1654, %v1664
      %v1673 = vadd.f32 %v1655, %v1665
      %v1674 = vadd.f32 %v1656, %v1666
      %v1675 = vadd.f32 %v1657, %v1663
      %v1676 = vadd.f32 %v1658, %v1664
      %v1677 = vadd.f32 %v1659, %v1665
      %v1678 = vadd.f32 %v1660, %v1666
      %v1679 = vmul.f32 %v1671, %v1671
      %v1680 = vmul.f32 %v1672, %v1672
      %v1681 = vmul.f32 %v1673, %v1673
      %v1682 = vmul.f32 %v1674, %v1674
      %v1683 = vmul.f32 %v1675, %v1675
      %v1684 = vmul.f32 %v1676, %v1676
      %v1685 = vmul.f32 %v1677, %v1677
      %v1686 = vmul.f32 %v1678, %v1678
      %v1687 = vadd.f32 %v1679, %v1680
      %v1688 = vadd.f32 %v1687, %v1681
      %v1689 = vadd.f32 %v1688, %v1682
      %1690 = vadd.xlane.f32.xlu0 %v1689
      %v1691 = vpop.xlane.xlu0 %1690
      %v1692 = vadd.f32 %v1683, %v1684
      %v1693 = vadd.f32 %v1692, %v1685
      %v1694 = vadd.f32 %v1693, %v1686
      %1695 = vadd.xlane.f32.xlu0 %v1694
      %v1696 = vpop.xlane.xlu0 %1695
      %v1697 = vmax.f32 %v1691, 1e-24
      %v1698 = vmax.f32 %v1696, 1e-24
      %v1699 = vrsqrt.pop %v1697
      %v1700 = vmul.f32 %v1699, %v1697
      %v1701 = vmul.f32 %v1700, %v1699
      %v1702 = vmul.f32 0.5, %v1701
      %v1703 = vsub.f32 1.5, %v1702
      %v1704 = vmul.f32 %v1699, %v1703
      %vm1705 = vweird.f32 %v1697
      %vm1706 = vweird.f32 %v1699
      %vm1707 = vmor %vm1705, %vm1706
      %v1708 = vsel %vm1707, %v1699, %v1704
      %v1709 = vrsqrt.pop %v1698
      %v1710 = vmul.f32 %v1709, %v1698
      %v1711 = vmul.f32 %v1710, %v1709
      %v1712 = vmul.f32 0.5, %v1711
      %v1713 = vsub.f32 1.5, %v1712
      %v1714 = vmul.f32 %v1709, %v1713
      %vm1715 = vweird.f32 %v1698
      %vm1716 = vweird.f32 %v1709
      %vm1717 = vmor %vm1715, %vm1716
      %v1718 = vsel %vm1717, %v1709, %v1714
      %v1719 = vmul.f32 %v1671, %v1708
      %v1720 = vmul.f32 %v1672, %v1708
      %v1721 = vmul.f32 %v1673, %v1708
      %v1722 = vmul.f32 %v1674, %v1708
      %v1723 = vmul.f32 %v1675, %v1718
      %v1724 = vmul.f32 %v1676, %v1718
      %v1725 = vmul.f32 %v1677, %v1718
      %v1726 = vmul.f32 %v1678, %v1718
      %v1727 = vsub.f32 %v1719, %v1723
      %v1728 = vsub.f32 %v1720, %v1724
      %v1729 = vsub.f32 %v1721, %v1725
      %v1730 = vsub.f32 %v1722, %v1726
      %v1731 = vadd.f32 %v1719, %v1723
      %v1732 = vadd.f32 %v1720, %v1724
      %v1733 = vadd.f32 %v1721, %v1725
      %v1734 = vadd.f32 %v1722, %v1726
      %v1735 = vmul.f32 %v1727, %v1731
      %v1736 = vmul.f32 %v1728, %v1732
      %v1737 = vmul.f32 %v1729, %v1733
      %v1738 = vmul.f32 %v1730, %v1734
      %v1739 = vmul.f32 %v1727, %v1727
      %v1740 = vmul.f32 %v1728, %v1728
      %v1741 = vmul.f32 %v1729, %v1729
      %v1742 = vmul.f32 %v1730, %v1730
      %v1743 = vmul.f32 %v1719, %v1723
      %v1744 = vmul.f32 %v1720, %v1724
      %v1745 = vmul.f32 %v1721, %v1725
      %v1746 = vmul.f32 %v1722, %v1726
      %v1747 = vpack.c.bf16 %v1735, %v1735
      %v1748 = vpack.c.bf16 %v1736, %v1736
      %v1749 = vpack.c.bf16 %v1737, %v1737
      %v1750 = vpack.c.bf16 %v1738, %v1738
      %v1751 = vld [vmem:[#allocation10] sm:$0xff]
      %v1752 = vld [vmem:[#allocation10 + $0x8] sm:$0xff]
      %v1753 = vld [vmem:[#allocation10 + $0x10] sm:$0xff]
      %v1754 = vld [vmem:[#allocation10 + $0x18] sm:$0xff]
      %v1755 = vld [vmem:[#allocation10 + $0x20] sm:$0xff]
      %v1756 = vld [vmem:[#allocation10 + $0x28] sm:$0xff]
      %v1757 = vld [vmem:[#allocation10 + $0x30] sm:$0xff]
      %v1758 = vld [vmem:[#allocation10 + $0x38] sm:$0xff]
      %v1759 = vld [vmem:[#allocation10 + $0x40] sm:$0xff]
      %v1760 = vld [vmem:[#allocation10 + $0x48] sm:$0xff]
      %v1761 = vld [vmem:[#allocation10 + $0x50] sm:$0xff]
      %v1762 = vld [vmem:[#allocation10 + $0x58] sm:$0xff]
      %v1763 = vld [vmem:[#allocation10 + $0x60] sm:$0xff]
      %v1764 = vld [vmem:[#allocation10 + $0x68] sm:$0xff]
      %v1765 = vld [vmem:[#allocation10 + $0x70] sm:$0xff]
      %v1766 = vld [vmem:[#allocation10 + $0x78] sm:$0xff]
      %v1767 = vld [vmem:[#allocation10 + $0x80] sm:$0xff]
      %v1768 = vld [vmem:[#allocation10 + $0x88] sm:$0xff]
      %v1769 = vld [vmem:[#allocation10 + $0x90] sm:$0xff]
      %v1770 = vld [vmem:[#allocation10 + $0x98] sm:$0xff]
      %v1771 = vld [vmem:[#allocation10 + $0xa0] sm:$0xff]
      %v1772 = vld [vmem:[#allocation10 + $0xa8] sm:$0xff]
      %v1773 = vld [vmem:[#allocation10 + $0xb0] sm:$0xff]
      %v1774 = vld [vmem:[#allocation10 + $0xb8] sm:$0xff]
      %v1775 = vld [vmem:[#allocation10 + $0xc0] sm:$0xff]
      %v1776 = vld [vmem:[#allocation10 + $0xc8] sm:$0xff]
      %v1777 = vld [vmem:[#allocation10 + $0xd0] sm:$0xff]
      %v1778 = vld [vmem:[#allocation10 + $0xd8] sm:$0xff]
      %v1779 = vld [vmem:[#allocation10 + $0xe0] sm:$0xff]
      %v1780 = vld [vmem:[#allocation10 + $0xe8] sm:$0xff]
      %v1781 = vld [vmem:[#allocation10 + $0xf0] sm:$0xff]
      %v1782 = vld [vmem:[#allocation10 + $0xf8] sm:$0xff]
      %v1783 = vld [vmem:[#allocation10 + $0x100] sm:$0xff]
      %v1784 = vld [vmem:[#allocation10 + $0x108] sm:$0xff]
      %v1785 = vld [vmem:[#allocation10 + $0x110] sm:$0xff]
      %v1786 = vld [vmem:[#allocation10 + $0x118] sm:$0xff]
      %v1787 = vld [vmem:[#allocation10 + $0x120] sm:$0xff]
      %v1788 = vld [vmem:[#allocation10 + $0x128] sm:$0xff]
      %v1789 = vld [vmem:[#allocation10 + $0x130] sm:$0xff]
      %v1790 = vld [vmem:[#allocation10 + $0x138] sm:$0xff]
      %v1791 = vld [vmem:[#allocation10 + $0x140] sm:$0xff]
      %v1792 = vld [vmem:[#allocation10 + $0x148] sm:$0xff]
      %v1793 = vld [vmem:[#allocation10 + $0x150] sm:$0xff]
      %v1794 = vld [vmem:[#allocation10 + $0x158] sm:$0xff]
      %v1795 = vld [vmem:[#allocation10 + $0x160] sm:$0xff]
      %v1796 = vld [vmem:[#allocation10 + $0x168] sm:$0xff]
      %v1797 = vld [vmem:[#allocation10 + $0x170] sm:$0xff]
      %v1798 = vld [vmem:[#allocation10 + $0x178] sm:$0xff]
      %v1799 = vld [vmem:[#allocation10 + $0x180] sm:$0xff]
      %v1800 = vld [vmem:[#allocation10 + $0x188] sm:$0xff]
      %v1801 = vld [vmem:[#allocation10 + $0x190] sm:$0xff]
      %v1802 = vld [vmem:[#allocation10 + $0x198] sm:$0xff]
      %v1803 = vld [vmem:[#allocation10 + $0x1a0] sm:$0xff]
      %v1804 = vld [vmem:[#allocation10 + $0x1a8] sm:$0xff]
      %v1805 = vld [vmem:[#allocation10 + $0x1b0] sm:$0xff]
      %v1806 = vld [vmem:[#allocation10 + $0x1b8] sm:$0xff]
      %v1807 = vld [vmem:[#allocation10 + $0x1c0] sm:$0xff]
      %v1808 = vld [vmem:[#allocation10 + $0x1c8] sm:$0xff]
      %v1809 = vld [vmem:[#allocation10 + $0x1d0] sm:$0xff]
      %v1810 = vld [vmem:[#allocation10 + $0x1d8] sm:$0xff]
      %v1811 = vld [vmem:[#allocation10 + $0x1e0] sm:$0xff]
      %v1812 = vld [vmem:[#allocation10 + $0x1e8] sm:$0xff]
      %v1813 = vld [vmem:[#allocation10 + $0x1f0] sm:$0xff]
      %v1814 = vld [vmem:[#allocation10 + $0x1f8] sm:$0xff]
      %v1815 = vpack.c.bf16 %v1739, %v1739
      %v1816 = vpack.c.bf16 %v1740, %v1740
      %v1817 = vpack.c.bf16 %v1741, %v1741
      %v1818 = vpack.c.bf16 %v1742, %v1742
      %s1819 = scalar_lea.vmem [#allocation10], 512
      %v1820 = vld [vmem:[%s1819] sm:$0xff]
      %v1821 = vld [vmem:[%s1819 + $0x8] sm:$0xff]
      %v1822 = vld [vmem:[%s1819 + $0x10] sm:$0xff]
      %v1823 = vld [vmem:[%s1819 + $0x18] sm:$0xff]
      %v1824 = vld [vmem:[%s1819 + $0x20] sm:$0xff]
      %v1825 = vld [vmem:[%s1819 + $0x28] sm:$0xff]
      %v1826 = vld [vmem:[%s1819 + $0x30] sm:$0xff]
      %v1827 = vld [vmem:[%s1819 + $0x38] sm:$0xff]
      %v1828 = vld [vmem:[%s1819 + $0x40] sm:$0xff]
      %v1829 = vld [vmem:[%s1819 + $0x48] sm:$0xff]
      %v1830 = vld [vmem:[%s1819 + $0x50] sm:$0xff]
      %v1831 = vld [vmem:[%s1819 + $0x58] sm:$0xff]
      %v1832 = vld [vmem:[%s1819 + $0x60] sm:$0xff]
      %v1833 = vld [vmem:[%s1819 + $0x68] sm:$0xff]
      %v1834 = vld [vmem:[%s1819 + $0x70] sm:$0xff]
      %v1835 = vld [vmem:[%s1819 + $0x78] sm:$0xff]
      %v1836 = vld [vmem:[%s1819 + $0x80] sm:$0xff]
      %v1837 = vld [vmem:[%s1819 + $0x88] sm:$0xff]
      %v1838 = vld [vmem:[%s1819 + $0x90] sm:$0xff]
      %v1839 = vld [vmem:[%s1819 + $0x98] sm:$0xff]
      %v1840 = vld [vmem:[%s1819 + $0xa0] sm:$0xff]
      %v1841 = vld [vmem:[%s1819 + $0xa8] sm:$0xff]
      %v1842 = vld [vmem:[%s1819 + $0xb0] sm:$0xff]
      %v1843 = vld [vmem:[%s1819 + $0xb8] sm:$0xff]
      %v1844 = vld [vmem:[%s1819 + $0xc0] sm:$0xff]
      %v1845 = vld [vmem:[%s1819 + $0xc8] sm:$0xff]
      %v1846 = vld [vmem:[%s1819 + $0xd0] sm:$0xff]
      %v1847 = vld [vmem:[%s1819 + $0xd8] sm:$0xff]
      %v1848 = vld [vmem:[%s1819 + $0xe0] sm:$0xff]
      %v1849 = vld [vmem:[%s1819 + $0xe8] sm:$0xff]
      %v1850 = vld [vmem:[%s1819 + $0xf0] sm:$0xff]
      %v1851 = vld [vmem:[%s1819 + $0xf8] sm:$0xff]
      %v1852 = vld [vmem:[%s1819 + $0x100] sm:$0xff]
      %v1853 = vld [vmem:[%s1819 + $0x108] sm:$0xff]
      %v1854 = vld [vmem:[%s1819 + $0x110] sm:$0xff]
      %v1855 = vld [vmem:[%s1819 + $0x118] sm:$0xff]
      %v1856 = vld [vmem:[%s1819 + $0x120] sm:$0xff]
      %v1857 = vld [vmem:[%s1819 + $0x128] sm:$0xff]
      %v1858 = vld [vmem:[%s1819 + $0x130] sm:$0xff]
      %v1859 = vld [vmem:[%s1819 + $0x138] sm:$0xff]
      %v1860 = vld [vmem:[%s1819 + $0x140] sm:$0xff]
      %v1861 = vld [vmem:[%s1819 + $0x148] sm:$0xff]
      %v1862 = vld [vmem:[%s1819 + $0x150] sm:$0xff]
      %v1863 = vld [vmem:[%s1819 + $0x158] sm:$0xff]
      %v1864 = vld [vmem:[%s1819 + $0x160] sm:$0xff]
      %v1865 = vld [vmem:[%s1819 + $0x168] sm:$0xff]
      %v1866 = vld [vmem:[%s1819 + $0x170] sm:$0xff]
      %v1867 = vld [vmem:[%s1819 + $0x178] sm:$0xff]
      %v1868 = vld [vmem:[%s1819 + $0x180] sm:$0xff]
      %v1869 = vld [vmem:[%s1819 + $0x188] sm:$0xff]
      %v1870 = vld [vmem:[%s1819 + $0x190] sm:$0xff]
      %v1871 = vld [vmem:[%s1819 + $0x198] sm:$0xff]
      %v1872 = vld [vmem:[%s1819 + $0x1a0] sm:$0xff]
      %v1873 = vld [vmem:[%s1819 + $0x1a8] sm:$0xff]
      %v1874 = vld [vmem:[%s1819 + $0x1b0] sm:$0xff]
      %v1875 = vld [vmem:[%s1819 + $0x1b8] sm:$0xff]
      %v1876 = vld [vmem:[%s1819 + $0x1c0] sm:$0xff]
      %v1877 = vld [vmem:[%s1819 + $0x1c8] sm:$0xff]
      %v1878 = vld [vmem:[%s1819 + $0x1d0] sm:$0xff]
      %v1879 = vld [vmem:[%s1819 + $0x1d8] sm:$0xff]
      %v1880 = vld [vmem:[%s1819 + $0x1e0] sm:$0xff]
      %v1881 = vld [vmem:[%s1819 + $0x1e8] sm:$0xff]
      %v1882 = vld [vmem:[%s1819 + $0x1f0] sm:$0xff]
      %v1883 = vld [vmem:[%s1819 + $0x1f8] sm:$0xff]
      %v1948 = vunpack.c.l.b16 %v1820
      %v1949 = vunpack.c.h.b16 %v1820
      %v1950 = vunpack.c.l.b16 %v1821
      %v1951 = vunpack.c.h.b16 %v1821
      %v1952 = vunpack.c.l.b16 %v1822
      %v1953 = vunpack.c.h.b16 %v1822
      %v1954 = vunpack.c.l.b16 %v1823
      %v1955 = vunpack.c.h.b16 %v1823
      %v1956 = vunpack.c.l.b16 %v1824
      %v1957 = vunpack.c.h.b16 %v1824
      %v1958 = vunpack.c.l.b16 %v1825
      %v1959 = vunpack.c.h.b16 %v1825
      %v1960 = vunpack.c.l.b16 %v1826
      %v1961 = vunpack.c.h.b16 %v1826
      %v1962 = vunpack.c.l.b16 %v1827
      %v1963 = vunpack.c.h.b16 %v1827
      %v1964 = vunpack.c.l.b16 %v1828
      %v1965 = vunpack.c.h.b16 %v1828
      %v1966 = vunpack.c.l.b16 %v1829
      %v1967 = vunpack.c.h.b16 %v1829
      %v1968 = vunpack.c.l.b16 %v1830
      %v1969 = vunpack.c.h.b16 %v1830
      %v1970 = vunpack.c.l.b16 %v1831
      %v1971 = vunpack.c.h.b16 %v1831
      %v1972 = vunpack.c.l.b16 %v1832
      %v1973 = vunpack.c.h.b16 %v1832
      %v1974 = vunpack.c.l.b16 %v1833
      %v1975 = vunpack.c.h.b16 %v1833
      %v1976 = vunpack.c.l.b16 %v1834
      %v1977 = vunpack.c.h.b16 %v1834
      %v1978 = vunpack.c.l.b16 %v1835
      %v1979 = vunpack.c.h.b16 %v1835
      %v1980 = vunpack.c.l.b16 %v1836
      %v1981 = vunpack.c.h.b16 %v1836
      %v1982 = vunpack.c.l.b16 %v1837
      %v1983 = vunpack.c.h.b16 %v1837
      %v1984 = vunpack.c.l.b16 %v1838
      %v1985 = vunpack.c.h.b16 %v1838
      %v1986 = vunpack.c.l.b16 %v1839
      %v1987 = vunpack.c.h.b16 %v1839
      %v1988 = vunpack.c.l.b16 %v1840
      %v1989 = vunpack.c.h.b16 %v1840
      %v1990 = vunpack.c.l.b16 %v1841
      %v1991 = vunpack.c.h.b16 %v1841
      %v1992 = vunpack.c.l.b16 %v1842
      %v1993 = vunpack.c.h.b16 %v1842
      %v1994 = vunpack.c.l.b16 %v1843
      %v1995 = vunpack.c.h.b16 %v1843
      %v1996 = vunpack.c.l.b16 %v1844
      %v1997 = vunpack.c.h.b16 %v1844
      %v1998 = vunpack.c.l.b16 %v1845
      %v1999 = vunpack.c.h.b16 %v1845
      %v2000 = vunpack.c.l.b16 %v1846
      %v2001 = vunpack.c.h.b16 %v1846
      %v2002 = vunpack.c.l.b16 %v1847
      %v2003 = vunpack.c.h.b16 %v1847
      %v2004 = vunpack.c.l.b16 %v1848
      %v2005 = vunpack.c.h.b16 %v1848
      %v2006 = vunpack.c.l.b16 %v1849
      %v2007 = vunpack.c.h.b16 %v1849
      %v2008 = vunpack.c.l.b16 %v1850
      %v2009 = vunpack.c.h.b16 %v1850
      %v2010 = vunpack.c.l.b16 %v1851
      %v2011 = vunpack.c.h.b16 %v1851
      %v2012 = vunpack.c.l.b16 %v1852
      %v2013 = vunpack.c.h.b16 %v1852
      %v2014 = vunpack.c.l.b16 %v1853
      %v2015 = vunpack.c.h.b16 %v1853
      %v2016 = vunpack.c.l.b16 %v1854
      %v2017 = vunpack.c.h.b16 %v1854
      %v2018 = vunpack.c.l.b16 %v1855
      %v2019 = vunpack.c.h.b16 %v1855
      %v2020 = vunpack.c.l.b16 %v1856
      %v2021 = vunpack.c.h.b16 %v1856
      %v2022 = vunpack.c.l.b16 %v1857
      %v2023 = vunpack.c.h.b16 %v1857
      %v2024 = vunpack.c.l.b16 %v1858
      %v2025 = vunpack.c.h.b16 %v1858
      %v2026 = vunpack.c.l.b16 %v1859
      %v2027 = vunpack.c.h.b16 %v1859
      %v2028 = vunpack.c.l.b16 %v1860
      %v2029 = vunpack.c.h.b16 %v1860
      %v2030 = vunpack.c.l.b16 %v1861
      %v2031 = vunpack.c.h.b16 %v1861
      %v2032 = vunpack.c.l.b16 %v1862
      %v2033 = vunpack.c.h.b16 %v1862
      %v2034 = vunpack.c.l.b16 %v1863
      %v2035 = vunpack.c.h.b16 %v1863
      %v2036 = vunpack.c.l.b16 %v1864
      %v2037 = vunpack.c.h.b16 %v1864
      %v2038 = vunpack.c.l.b16 %v1865
      %v2039 = vunpack.c.h.b16 %v1865
      %v2040 = vunpack.c.l.b16 %v1866
      %v2041 = vunpack.c.h.b16 %v1866
      %v2042 = vunpack.c.l.b16 %v1867
      %v2043 = vunpack.c.h.b16 %v1867
      %v2044 = vunpack.c.l.b16 %v1868
      %v2045 = vunpack.c.h.b16 %v1868
      %v2046 = vunpack.c.l.b16 %v1869
      %v2047 = vunpack.c.h.b16 %v1869
      %v2048 = vunpack.c.l.b16 %v1870
      %v2049 = vunpack.c.h.b16 %v1870
      %v2050 = vunpack.c.l.b16 %v1871
      %v2051 = vunpack.c.h.b16 %v1871
      %v2052 = vunpack.c.l.b16 %v1872
      %v2053 = vunpack.c.h.b16 %v1872
      %v2054 = vunpack.c.l.b16 %v1873
      %v2055 = vunpack.c.h.b16 %v1873
      %v2056 = vunpack.c.l.b16 %v1874
      %v2057 = vunpack.c.h.b16 %v1874
      %v2058 = vunpack.c.l.b16 %v1875
      %v2059 = vunpack.c.h.b16 %v1875
      %v2060 = vunpack.c.l.b16 %v1876
      %v2061 = vunpack.c.h.b16 %v1876
      %v2062 = vunpack.c.l.b16 %v1877
      %v2063 = vunpack.c.h.b16 %v1877
      %v2064 = vunpack.c.l.b16 %v1878
      %v2065 = vunpack.c.h.b16 %v1878
      %v2066 = vunpack.c.l.b16 %v1879
      %v2067 = vunpack.c.h.b16 %v1879
      %v2068 = vunpack.c.l.b16 %v1880
      %v2069 = vunpack.c.h.b16 %v1880
      %v2070 = vunpack.c.l.b16 %v1881
      %v2071 = vunpack.c.h.b16 %v1881
      %v2072 = vunpack.c.l.b16 %v1882
      %v2073 = vunpack.c.h.b16 %v1882
      %v2074 = vunpack.c.l.b16 %v1883
      %v2075 = vunpack.c.h.b16 %v1883
      %v2076 = vpack.c.b16 %v1950, %v1948
      %v2077 = vpack.c.b16 %v1951, %v1949
      %v2078 = vpack.c.b16 %v1954, %v1952
      %v2079 = vpack.c.b16 %v1955, %v1953
      %v2080 = vpack.c.b16 %v1958, %v1956
      %v2081 = vpack.c.b16 %v1959, %v1957
      %v2082 = vpack.c.b16 %v1962, %v1960
      %v2083 = vpack.c.b16 %v1963, %v1961
      %v2084 = vpack.c.b16 %v1966, %v1964
      %v2085 = vpack.c.b16 %v1967, %v1965
      %v2086 = vpack.c.b16 %v1970, %v1968
      %v2087 = vpack.c.b16 %v1971, %v1969
      %v2088 = vpack.c.b16 %v1974, %v1972
      %v2089 = vpack.c.b16 %v1975, %v1973
      %v2090 = vpack.c.b16 %v1978, %v1976
      %v2091 = vpack.c.b16 %v1979, %v1977
      %v2092 = vpack.c.b16 %v1982, %v1980
      %v2093 = vpack.c.b16 %v1983, %v1981
      %v2094 = vpack.c.b16 %v1986, %v1984
      %v2095 = vpack.c.b16 %v1987, %v1985
      %v2096 = vpack.c.b16 %v1990, %v1988
      %v2097 = vpack.c.b16 %v1991, %v1989
      %v2098 = vpack.c.b16 %v1994, %v1992
      %v2099 = vpack.c.b16 %v1995, %v1993
      %v2100 = vpack.c.b16 %v1998, %v1996
      %v2101 = vpack.c.b16 %v1999, %v1997
      %v2102 = vpack.c.b16 %v2002, %v2000
      %v2103 = vpack.c.b16 %v2003, %v2001
      %v2104 = vpack.c.b16 %v2006, %v2004
      %v2105 = vpack.c.b16 %v2007, %v2005
      %v2106 = vpack.c.b16 %v2010, %v2008
      %v2107 = vpack.c.b16 %v2011, %v2009
      %v2108 = vpack.c.b16 %v2014, %v2012
      %v2109 = vpack.c.b16 %v2015, %v2013
      %v2110 = vpack.c.b16 %v2018, %v2016
      %v2111 = vpack.c.b16 %v2019, %v2017
      %v2112 = vpack.c.b16 %v2022, %v2020
      %v2113 = vpack.c.b16 %v2023, %v2021
      %v2114 = vpack.c.b16 %v2026, %v2024
      %v2115 = vpack.c.b16 %v2027, %v2025
      %v2116 = vpack.c.b16 %v2030, %v2028
      %v2117 = vpack.c.b16 %v2031, %v2029
      %v2118 = vpack.c.b16 %v2034, %v2032
      %v2119 = vpack.c.b16 %v2035, %v2033
      %v2120 = vpack.c.b16 %v2038, %v2036
      %v2121 = vpack.c.b16 %v2039, %v2037
      %v2122 = vpack.c.b16 %v2042, %v2040
      %v2123 = vpack.c.b16 %v2043, %v2041
      %v2124 = vpack.c.b16 %v2046, %v2044
      %v2125 = vpack.c.b16 %v2047, %v2045
      %v2126 = vpack.c.b16 %v2050, %v2048
      %v2127 = vpack.c.b16 %v2051, %v2049
      %v2128 = vpack.c.b16 %v2054, %v2052
      %v2129 = vpack.c.b16 %v2055, %v2053
      %v2130 = vpack.c.b16 %v2058, %v2056
      %v2131 = vpack.c.b16 %v2059, %v2057
      %v2132 = vpack.c.b16 %v2062, %v2060
      %v2133 = vpack.c.b16 %v2063, %v2061
      %v2134 = vpack.c.b16 %v2066, %v2064
      %v2135 = vpack.c.b16 %v2067, %v2065
      %v2136 = vpack.c.b16 %v2070, %v2068
      %v2137 = vpack.c.b16 %v2071, %v2069
      %v2138 = vpack.c.b16 %v2074, %v2072
      %v2139 = vpack.c.b16 %v2075, %v2073
      %2204 = vmatpush.bf16.msra.mxu0 %v2090
      %2205 = vmatpush.bf16.msra.mxu0 %v2088
      %2206 = vmatpush.bf16.msra.mxu0 %v2086
      %2207 = vmatpush.bf16.msra.mxu0 %v2084
      %2208 = vmatpush.bf16.msra.mxu0 %v2082
      %2209 = vmatpush.bf16.msra.mxu0 %v2080
      %2210 = vmatpush.bf16.msra.mxu0 %v2078
      %2211 = vmatpush.bf16.msra.mxu0 %v2076
      %2212 = vmatmul.bf16.gmra.mxu0 %v1815
      %v2213 = vpop.f32.mrf.mxu0
      %v2214 = vadd.f32 0.0, %v2213
      %v2215 = vpop.f32.mrf.mxu0
      %2216 = vdwg.mxu0
      %2217 = vmatpush.bf16.msra.mxu0 %v2106
      %2218 = vmatpush.bf16.msra.mxu0 %v2104
      %2219 = vmatpush.bf16.msra.mxu0 %v2102
      %2220 = vmatpush.bf16.msra.mxu0 %v2100
      %2221 = vmatpush.bf16.msra.mxu0 %v2098
      %2222 = vmatpush.bf16.msra.mxu0 %v2096
      %2223 = vmatpush.bf16.msra.mxu0 %v2094
      %2224 = vmatpush.bf16.msra.mxu0 %v2092
      %2225 = vmatmul.bf16.gmra.mxu0 %v1816
      %v2226 = vpop.f32.mrf.mxu0
      %v2227 = vadd.f32 %v2214, %v2226
      %v2228 = vpop.f32.mrf.mxu0
      %2229 = vdwg.mxu0
      %2230 = vmatpush.bf16.msra.mxu0 %v2122
      %2231 = vmatpush.bf16.msra.mxu0 %v2120
      %2232 = vmatpush.bf16.msra.mxu0 %v2118
      %2233 = vmatpush.bf16.msra.mxu0 %v2116
      %2234 = vmatpush.bf16.msra.mxu0 %v2114
      %2235 = vmatpush.bf16.msra.mxu0 %v2112
      %2236 = vmatpush.bf16.msra.mxu0 %v2110
      %2237 = vmatpush.bf16.msra.mxu0 %v2108
      %2238 = vmatmul.bf16.gmra.mxu0 %v1817
      %v2239 = vpop.f32.mrf.mxu0
      %v2240 = vadd.f32 %v2227, %v2239
      %v2241 = vpop.f32.mrf.mxu0
      %2242 = vdwg.mxu0
      %2243 = vmatpush.bf16.msra.mxu0 %v2138
      %2244 = vmatpush.bf16.msra.mxu0 %v2136
      %2245 = vmatpush.bf16.msra.mxu0 %v2134
      %2246 = vmatpush.bf16.msra.mxu0 %v2132
      %2247 = vmatpush.bf16.msra.mxu0 %v2130
      %2248 = vmatpush.bf16.msra.mxu0 %v2128
      %2249 = vmatpush.bf16.msra.mxu0 %v2126
      %2250 = vmatpush.bf16.msra.mxu0 %v2124
      %2251 = vmatmul.bf16.gmra.mxu0 %v1818
      %v2252 = vpop.f32.mrf.mxu0
      %v2253 = vadd.f32 %v2240, %v2252
      %v2254 = vpop.f32.mrf.mxu0
      %2255 = vdwg.mxu0
      %2256 = vmatpush.bf16.msra.mxu0 %v2091
      %2257 = vmatpush.bf16.msra.mxu0 %v2089
      %2258 = vmatpush.bf16.msra.mxu0 %v2087
      %2259 = vmatpush.bf16.msra.mxu0 %v2085
      %2260 = vmatpush.bf16.msra.mxu0 %v2083
      %2261 = vmatpush.bf16.msra.mxu0 %v2081
      %2262 = vmatpush.bf16.msra.mxu0 %v2079
      %2263 = vmatpush.bf16.msra.mxu0 %v2077
      %2264 = vmatmul.bf16.gmra.mxu0 %v1815
      %v2265 = vpop.f32.mrf.mxu0
      %v2266 = vadd.f32 0.0, %v2265
      %v2267 = vpop.f32.mrf.mxu0
      %2268 = vdwg.mxu0
      %2269 = vmatpush.bf16.msra.mxu0 %v2107
      %2270 = vmatpush.bf16.msra.mxu0 %v2105
      %2271 = vmatpush.bf16.msra.mxu0 %v2103
      %2272 = vmatpush.bf16.msra.mxu0 %v2101
      %2273 = vmatpush.bf16.msra.mxu0 %v2099
      %2274 = vmatpush.bf16.msra.mxu0 %v2097
      %2275 = vmatpush.bf16.msra.mxu0 %v2095
      %2276 = vmatpush.bf16.msra.mxu0 %v2093
      %2277 = vmatmul.bf16.gmra.mxu0 %v1816
      %v2278 = vpop.f32.mrf.mxu0
      %v2279 = vadd.f32 %v2266, %v2278
      %v2280 = vpop.f32.mrf.mxu0
      %2281 = vdwg.mxu0
      %2282 = vmatpush.bf16.msra.mxu0 %v2123
      %2283 = vmatpush.bf16.msra.mxu0 %v2121
      %2284 = vmatpush.bf16.msra.mxu0 %v2119
      %2285 = vmatpush.bf16.msra.mxu0 %v2117
      %2286 = vmatpush.bf16.msra.mxu0 %v2115
      %2287 = vmatpush.bf16.msra.mxu0 %v2113
      %2288 = vmatpush.bf16.msra.mxu0 %v2111
      %2289 = vmatpush.bf16.msra.mxu0 %v2109
      %2290 = vmatmul.bf16.gmra.mxu0 %v1817
      %v2291 = vpop.f32.mrf.mxu0
      %v2292 = vadd.f32 %v2279, %v2291
      %v2293 = vpop.f32.mrf.mxu0
      %2294 = vdwg.mxu0
      %2295 = vmatpush.bf16.msra.mxu0 %v2139
      %2296 = vmatpush.bf16.msra.mxu0 %v2137
      %2297 = vmatpush.bf16.msra.mxu0 %v2135
      %2298 = vmatpush.bf16.msra.mxu0 %v2133
      %2299 = vmatpush.bf16.msra.mxu0 %v2131
      %2300 = vmatpush.bf16.msra.mxu0 %v2129
      %2301 = vmatpush.bf16.msra.mxu0 %v2127
      %2302 = vmatpush.bf16.msra.mxu0 %v2125
      %2303 = vmatmul.bf16.gmra.mxu0 %v1818
      %v2304 = vpop.f32.mrf.mxu0
      %v2305 = vadd.f32 %v2292, %v2304
      %v2306 = vpop.f32.mrf.mxu0
      %2307 = vdwg.mxu0
      %v2372 = vunpack.c.l.b16 %v1751
      %v2373 = vunpack.c.h.b16 %v1751
      %v2374 = vunpack.c.l.b16 %v1752
      %v2375 = vunpack.c.h.b16 %v1752
      %v2376 = vunpack.c.l.b16 %v1753
      %v2377 = vunpack.c.h.b16 %v1753
      %v2378 = vunpack.c.l.b16 %v1754
      %v2379 = vunpack.c.h.b16 %v1754
      %v2380 = vunpack.c.l.b16 %v1755
      %v2381 = vunpack.c.h.b16 %v1755
      %v2382 = vunpack.c.l.b16 %v1756
      %v2383 = vunpack.c.h.b16 %v1756
      %v2384 = vunpack.c.l.b16 %v1757
      %v2385 = vunpack.c.h.b16 %v1757
      %v2386 = vunpack.c.l.b16 %v1758
      %v2387 = vunpack.c.h.b16 %v1758
      %v2388 = vunpack.c.l.b16 %v1759
      %v2389 = vunpack.c.h.b16 %v1759
      %v2390 = vunpack.c.l.b16 %v1760
      %v2391 = vunpack.c.h.b16 %v1760
      %v2392 = vunpack.c.l.b16 %v1761
      %v2393 = vunpack.c.h.b16 %v1761
      %v2394 = vunpack.c.l.b16 %v1762
      %v2395 = vunpack.c.h.b16 %v1762
      %v2396 = vunpack.c.l.b16 %v1763
      %v2397 = vunpack.c.h.b16 %v1763
      %v2398 = vunpack.c.l.b16 %v1764
      %v2399 = vunpack.c.h.b16 %v1764
      %v2400 = vunpack.c.l.b16 %v1765
      %v2401 = vunpack.c.h.b16 %v1765
      %v2402 = vunpack.c.l.b16 %v1766
      %v2403 = vunpack.c.h.b16 %v1766
      %v2404 = vunpack.c.l.b16 %v1767
      %v2405 = vunpack.c.h.b16 %v1767
      %v2406 = vunpack.c.l.b16 %v1768
      %v2407 = vunpack.c.h.b16 %v1768
      %v2408 = vunpack.c.l.b16 %v1769
      %v2409 = vunpack.c.h.b16 %v1769
      %v2410 = vunpack.c.l.b16 %v1770
      %v2411 = vunpack.c.h.b16 %v1770
      %v2412 = vunpack.c.l.b16 %v1771
      %v2413 = vunpack.c.h.b16 %v1771
      %v2414 = vunpack.c.l.b16 %v1772
      %v2415 = vunpack.c.h.b16 %v1772
      %v2416 = vunpack.c.l.b16 %v1773
      %v2417 = vunpack.c.h.b16 %v1773
      %v2418 = vunpack.c.l.b16 %v1774
      %v2419 = vunpack.c.h.b16 %v1774
      %v2420 = vunpack.c.l.b16 %v1775
      %v2421 = vunpack.c.h.b16 %v1775
      %v2422 = vunpack.c.l.b16 %v1776
      %v2423 = vunpack.c.h.b16 %v1776
      %v2424 = vunpack.c.l.b16 %v1777
      %v2425 = vunpack.c.h.b16 %v1777
      %v2426 = vunpack.c.l.b16 %v1778
      %v2427 = vunpack.c.h.b16 %v1778
      %v2428 = vunpack.c.l.b16 %v1779
      %v2429 = vunpack.c.h.b16 %v1779
      %v2430 = vunpack.c.l.b16 %v1780
      %v2431 = vunpack.c.h.b16 %v1780
      %v2432 = vunpack.c.l.b16 %v1781
      %v2433 = vunpack.c.h.b16 %v1781
      %v2434 = vunpack.c.l.b16 %v1782
      %v2435 = vunpack.c.h.b16 %v1782
      %v2436 = vunpack.c.l.b16 %v1783
      %v2437 = vunpack.c.h.b16 %v1783
      %v2438 = vunpack.c.l.b16 %v1784
      %v2439 = vunpack.c.h.b16 %v1784
      %v2440 = vunpack.c.l.b16 %v1785
      %v2441 = vunpack.c.h.b16 %v1785
      %v2442 = vunpack.c.l.b16 %v1786
      %v2443 = vunpack.c.h.b16 %v1786
      %v2444 = vunpack.c.l.b16 %v1787
      %v2445 = vunpack.c.h.b16 %v1787
      %v2446 = vunpack.c.l.b16 %v1788
      %v2447 = vunpack.c.h.b16 %v1788
      %v2448 = vunpack.c.l.b16 %v1789
      %v2449 = vunpack.c.h.b16 %v1789
      %v2450 = vunpack.c.l.b16 %v1790
      %v2451 = vunpack.c.h.b16 %v1790
      %v2452 = vunpack.c.l.b16 %v1791
      %v2453 = vunpack.c.h.b16 %v1791
      %v2454 = vunpack.c.l.b16 %v1792
      %v2455 = vunpack.c.h.b16 %v1792
      %v2456 = vunpack.c.l.b16 %v1793
      %v2457 = vunpack.c.h.b16 %v1793
      %v2458 = vunpack.c.l.b16 %v1794
      %v2459 = vunpack.c.h.b16 %v1794
      %v2460 = vunpack.c.l.b16 %v1795
      %v2461 = vunpack.c.h.b16 %v1795
      %v2462 = vunpack.c.l.b16 %v1796
      %v2463 = vunpack.c.h.b16 %v1796
      %v2464 = vunpack.c.l.b16 %v1797
      %v2465 = vunpack.c.h.b16 %v1797
      %v2466 = vunpack.c.l.b16 %v1798
      %v2467 = vunpack.c.h.b16 %v1798
      %v2468 = vunpack.c.l.b16 %v1799
      %v2469 = vunpack.c.h.b16 %v1799
      %v2470 = vunpack.c.l.b16 %v1800
      %v2471 = vunpack.c.h.b16 %v1800
      %v2472 = vunpack.c.l.b16 %v1801
      %v2473 = vunpack.c.h.b16 %v1801
      %v2474 = vunpack.c.l.b16 %v1802
      %v2475 = vunpack.c.h.b16 %v1802
      %v2476 = vunpack.c.l.b16 %v1803
      %v2477 = vunpack.c.h.b16 %v1803
      %v2478 = vunpack.c.l.b16 %v1804
      %v2479 = vunpack.c.h.b16 %v1804
      %v2480 = vunpack.c.l.b16 %v1805
      %v2481 = vunpack.c.h.b16 %v1805
      %v2482 = vunpack.c.l.b16 %v1806
      %v2483 = vunpack.c.h.b16 %v1806
      %v2484 = vunpack.c.l.b16 %v1807
      %v2485 = vunpack.c.h.b16 %v1807
      %v2486 = vunpack.c.l.b16 %v1808
      %v2487 = vunpack.c.h.b16 %v1808
      %v2488 = vunpack.c.l.b16 %v1809
      %v2489 = vunpack.c.h.b16 %v1809
      %v2490 = vunpack.c.l.b16 %v1810
      %v2491 = vunpack.c.h.b16 %v1810
      %v2492 = vunpack.c.l.b16 %v1811
      %v2493 = vunpack.c.h.b16 %v1811
      %v2494 = vunpack.c.l.b16 %v1812
      %v2495 = vunpack.c.h.b16 %v1812
      %v2496 = vunpack.c.l.b16 %v1813
      %v2497 = vunpack.c.h.b16 %v1813
      %v2498 = vunpack.c.l.b16 %v1814
      %v2499 = vunpack.c.h.b16 %v1814
      %v2500 = vpack.c.b16 %v2374, %v2372
      %v2501 = vpack.c.b16 %v2375, %v2373
      %v2502 = vpack.c.b16 %v2378, %v2376
      %v2503 = vpack.c.b16 %v2379, %v2377
      %v2504 = vpack.c.b16 %v2382, %v2380
      %v2505 = vpack.c.b16 %v2383, %v2381
      %v2506 = vpack.c.b16 %v2386, %v2384
      %v2507 = vpack.c.b16 %v2387, %v2385
      %v2508 = vpack.c.b16 %v2390, %v2388
      %v2509 = vpack.c.b16 %v2391, %v2389
      %v2510 = vpack.c.b16 %v2394, %v2392
      %v2511 = vpack.c.b16 %v2395, %v2393
      %v2512 = vpack.c.b16 %v2398, %v2396
      %v2513 = vpack.c.b16 %v2399, %v2397
      %v2514 = vpack.c.b16 %v2402, %v2400
      %v2515 = vpack.c.b16 %v2403, %v2401
      %v2516 = vpack.c.b16 %v2406, %v2404
      %v2517 = vpack.c.b16 %v2407, %v2405
      %v2518 = vpack.c.b16 %v2410, %v2408
      %v2519 = vpack.c.b16 %v2411, %v2409
      %v2520 = vpack.c.b16 %v2414, %v2412
      %v2521 = vpack.c.b16 %v2415, %v2413
      %v2522 = vpack.c.b16 %v2418, %v2416
      %v2523 = vpack.c.b16 %v2419, %v2417
      %v2524 = vpack.c.b16 %v2422, %v2420
      %v2525 = vpack.c.b16 %v2423, %v2421
      %v2526 = vpack.c.b16 %v2426, %v2424
      %v2527 = vpack.c.b16 %v2427, %v2425
      %v2528 = vpack.c.b16 %v2430, %v2428
      %v2529 = vpack.c.b16 %v2431, %v2429
      %v2530 = vpack.c.b16 %v2434, %v2432
      %v2531 = vpack.c.b16 %v2435, %v2433
      %v2532 = vpack.c.b16 %v2438, %v2436
      %v2533 = vpack.c.b16 %v2439, %v2437
      %v2534 = vpack.c.b16 %v2442, %v2440
      %v2535 = vpack.c.b16 %v2443, %v2441
      %v2536 = vpack.c.b16 %v2446, %v2444
      %v2537 = vpack.c.b16 %v2447, %v2445
      %v2538 = vpack.c.b16 %v2450, %v2448
      %v2539 = vpack.c.b16 %v2451, %v2449
      %v2540 = vpack.c.b16 %v2454, %v2452
      %v2541 = vpack.c.b16 %v2455, %v2453
      %v2542 = vpack.c.b16 %v2458, %v2456
      %v2543 = vpack.c.b16 %v2459, %v2457
      %v2544 = vpack.c.b16 %v2462, %v2460
      %v2545 = vpack.c.b16 %v2463, %v2461
      %v2546 = vpack.c.b16 %v2466, %v2464
      %v2547 = vpack.c.b16 %v2467, %v2465
      %v2548 = vpack.c.b16 %v2470, %v2468
      %v2549 = vpack.c.b16 %v2471, %v2469
      %v2550 = vpack.c.b16 %v2474, %v2472
      %v2551 = vpack.c.b16 %v2475, %v2473
      %v2552 = vpack.c.b16 %v2478, %v2476
      %v2553 = vpack.c.b16 %v2479, %v2477
      %v2554 = vpack.c.b16 %v2482, %v2480
      %v2555 = vpack.c.b16 %v2483, %v2481
      %v2556 = vpack.c.b16 %v2486, %v2484
      %v2557 = vpack.c.b16 %v2487, %v2485
      %v2558 = vpack.c.b16 %v2490, %v2488
      %v2559 = vpack.c.b16 %v2491, %v2489
      %v2560 = vpack.c.b16 %v2494, %v2492
      %v2561 = vpack.c.b16 %v2495, %v2493
      %v2562 = vpack.c.b16 %v2498, %v2496
      %v2563 = vpack.c.b16 %v2499, %v2497
      %2628 = vmatpush.bf16.msra.mxu0 %v2514
      %2629 = vmatpush.bf16.msra.mxu0 %v2512
      %2630 = vmatpush.bf16.msra.mxu0 %v2510
      %2631 = vmatpush.bf16.msra.mxu0 %v2508
      %2632 = vmatpush.bf16.msra.mxu0 %v2506
      %2633 = vmatpush.bf16.msra.mxu0 %v2504
      %2634 = vmatpush.bf16.msra.mxu0 %v2502
      %2635 = vmatpush.bf16.msra.mxu0 %v2500
      %2636 = vmatmul.bf16.gmra.mxu0 %v1747
      %v2637 = vpop.f32.mrf.mxu0
      %v2638 = vadd.f32 %v2253, %v2637
      %v2639 = vpop.f32.mrf.mxu0
      %2640 = vdwg.mxu0
      %2641 = vmatpush.bf16.msra.mxu0 %v2530
      %2642 = vmatpush.bf16.msra.mxu0 %v2528
      %2643 = vmatpush.bf16.msra.mxu0 %v2526
      %2644 = vmatpush.bf16.msra.mxu0 %v2524
      %2645 = vmatpush.bf16.msra.mxu0 %v2522
      %2646 = vmatpush.bf16.msra.mxu0 %v2520
      %2647 = vmatpush.bf16.msra.mxu0 %v2518
      %2648 = vmatpush.bf16.msra.mxu0 %v2516
      %2649 = vmatmul.bf16.gmra.mxu0 %v1748
      %v2650 = vpop.f32.mrf.mxu0
      %v2651 = vadd.f32 %v2638, %v2650
      %v2652 = vpop.f32.mrf.mxu0
      %2653 = vdwg.mxu0
      %2654 = vmatpush.bf16.msra.mxu0 %v2546
      %2655 = vmatpush.bf16.msra.mxu0 %v2544
      %2656 = vmatpush.bf16.msra.mxu0 %v2542
      %2657 = vmatpush.bf16.msra.mxu0 %v2540
      %2658 = vmatpush.bf16.msra.mxu0 %v2538
      %2659 = vmatpush.bf16.msra.mxu0 %v2536
      %2660 = vmatpush.bf16.msra.mxu0 %v2534
      %2661 = vmatpush.bf16.msra.mxu0 %v2532
      %2662 = vmatmul.bf16.gmra.mxu0 %v1749
      %v2663 = vpop.f32.mrf.mxu0
      %v2664 = vadd.f32 %v2651, %v2663
      %v2665 = vpop.f32.mrf.mxu0
      %2666 = vdwg.mxu0
      %2667 = vmatpush.bf16.msra.mxu0 %v2562
      %2668 = vmatpush.bf16.msra.mxu0 %v2560
      %2669 = vmatpush.bf16.msra.mxu0 %v2558
      %2670 = vmatpush.bf16.msra.mxu0 %v2556
      %2671 = vmatpush.bf16.msra.mxu0 %v2554
      %2672 = vmatpush.bf16.msra.mxu0 %v2552
      %2673 = vmatpush.bf16.msra.mxu0 %v2550
      %2674 = vmatpush.bf16.msra.mxu0 %v2548
      %2675 = vmatmul.bf16.gmra.mxu0 %v1750
      %v2676 = vpop.f32.mrf.mxu0
      %v2677 = vadd.f32 %v2664, %v2676
      %v2678 = vpop.f32.mrf.mxu0
      %2679 = vdwg.mxu0
      %2680 = vmatpush.bf16.msra.mxu0 %v2515
      %2681 = vmatpush.bf16.msra.mxu0 %v2513
      %2682 = vmatpush.bf16.msra.mxu0 %v2511
      %2683 = vmatpush.bf16.msra.mxu0 %v2509
      %2684 = vmatpush.bf16.msra.mxu0 %v2507
      %2685 = vmatpush.bf16.msra.mxu0 %v2505
      %2686 = vmatpush.bf16.msra.mxu0 %v2503
      %2687 = vmatpush.bf16.msra.mxu0 %v2501
      %2688 = vmatmul.bf16.gmra.mxu0 %v1747
      %v2689 = vpop.f32.mrf.mxu0
      %v2690 = vadd.f32 %v2305, %v2689
      %v2691 = vpop.f32.mrf.mxu0
      %2692 = vdwg.mxu0
      %2693 = vmatpush.bf16.msra.mxu0 %v2531
      %2694 = vmatpush.bf16.msra.mxu0 %v2529
      %2695 = vmatpush.bf16.msra.mxu0 %v2527
      %2696 = vmatpush.bf16.msra.mxu0 %v2525
      %2697 = vmatpush.bf16.msra.mxu0 %v2523
      %2698 = vmatpush.bf16.msra.mxu0 %v2521
      %2699 = vmatpush.bf16.msra.mxu0 %v2519
      %2700 = vmatpush.bf16.msra.mxu0 %v2517
      %2701 = vmatmul.bf16.gmra.mxu0 %v1748
      %v2702 = vpop.f32.mrf.mxu0
      %v2703 = vadd.f32 %v2690, %v2702
      %v2704 = vpop.f32.mrf.mxu0
      %2705 = vdwg.mxu0
      %2706 = vmatpush.bf16.msra.mxu0 %v2547
      %2707 = vmatpush.bf16.msra.mxu0 %v2545
      %2708 = vmatpush.bf16.msra.mxu0 %v2543
      %2709 = vmatpush.bf16.msra.mxu0 %v2541
      %2710 = vmatpush.bf16.msra.mxu0 %v2539
      %2711 = vmatpush.bf16.msra.mxu0 %v2537
      %2712 = vmatpush.bf16.msra.mxu0 %v2535
      %2713 = vmatpush.bf16.msra.mxu0 %v2533
      %2714 = vmatmul.bf16.gmra.mxu0 %v1749
      %v2715 = vpop.f32.mrf.mxu0
      %v2716 = vadd.f32 %v2703, %v2715
      %v2717 = vpop.f32.mrf.mxu0
      %2718 = vdwg.mxu0
      %2719 = vmatpush.bf16.msra.mxu0 %v2563
      %2720 = vmatpush.bf16.msra.mxu0 %v2561
      %2721 = vmatpush.bf16.msra.mxu0 %v2559
      %2722 = vmatpush.bf16.msra.mxu0 %v2557
      %2723 = vmatpush.bf16.msra.mxu0 %v2555
      %2724 = vmatpush.bf16.msra.mxu0 %v2553
      %2725 = vmatpush.bf16.msra.mxu0 %v2551
      %2726 = vmatpush.bf16.msra.mxu0 %v2549
      %2727 = vmatmul.bf16.gmra.mxu0 %v1750
      %v2728 = vpop.f32.mrf.mxu0
      %v2729 = vadd.f32 %v2716, %v2728
      %v2730 = vpop.f32.mrf.mxu0
      %2731 = vdwg.mxu0
      %v2732 = vpack.c.bf16 %v1743, %v1743
      %v2733 = vpack.c.bf16 %v1744, %v1744
      %v2734 = vpack.c.bf16 %v1745, %v1745
      %v2735 = vpack.c.bf16 %v1746, %v1746
      %s2736 = scalar_lea.vmem [#allocation10], 1024
      %v2737 = vld [vmem:[%s2736] sm:$0xff]
      %v2738 = vld [vmem:[%s2736 + $0x8] sm:$0xff]
      %v2739 = vld [vmem:[%s2736 + $0x10] sm:$0xff]
      %v2740 = vld [vmem:[%s2736 + $0x18] sm:$0xff]
      %v2741 = vld [vmem:[%s2736 + $0x20] sm:$0xff]
      %v2742 = vld [vmem:[%s2736 + $0x28] sm:$0xff]
      %v2743 = vld [vmem:[%s2736 + $0x30] sm:$0xff]
      %v2744 = vld [vmem:[%s2736 + $0x38] sm:$0xff]
      %v2745 = vld [vmem:[%s2736 + $0x40] sm:$0xff]
      %v2746 = vld [vmem:[%s2736 + $0x48] sm:$0xff]
      %v2747 = vld [vmem:[%s2736 + $0x50] sm:$0xff]
      %v2748 = vld [vmem:[%s2736 + $0x58] sm:$0xff]
      %v2749 = vld [vmem:[%s2736 + $0x60] sm:$0xff]
      %v2750 = vld [vmem:[%s2736 + $0x68] sm:$0xff]
      %v2751 = vld [vmem:[%s2736 + $0x70] sm:$0xff]
      %v2752 = vld [vmem:[%s2736 + $0x78] sm:$0xff]
      %v2753 = vld [vmem:[%s2736 + $0x80] sm:$0xff]
      %v2754 = vld [vmem:[%s2736 + $0x88] sm:$0xff]
      %v2755 = vld [vmem:[%s2736 + $0x90] sm:$0xff]
      %v2756 = vld [vmem:[%s2736 + $0x98] sm:$0xff]
      %v2757 = vld [vmem:[%s2736 + $0xa0] sm:$0xff]
      %v2758 = vld [vmem:[%s2736 + $0xa8] sm:$0xff]
      %v2759 = vld [vmem:[%s2736 + $0xb0] sm:$0xff]
      %v2760 = vld [vmem:[%s2736 + $0xb8] sm:$0xff]
      %v2761 = vld [vmem:[%s2736 + $0xc0] sm:$0xff]
      %v2762 = vld [vmem:[%s2736 + $0xc8] sm:$0xff]
      %v2763 = vld [vmem:[%s2736 + $0xd0] sm:$0xff]
      %v2764 = vld [vmem:[%s2736 + $0xd8] sm:$0xff]
      %v2765 = vld [vmem:[%s2736 + $0xe0] sm:$0xff]
      %v2766 = vld [vmem:[%s2736 + $0xe8] sm:$0xff]
      %v2767 = vld [vmem:[%s2736 + $0xf0] sm:$0xff]
      %v2768 = vld [vmem:[%s2736 + $0xf8] sm:$0xff]
      %v2769 = vld [vmem:[%s2736 + $0x100] sm:$0xff]
      %v2770 = vld [vmem:[%s2736 + $0x108] sm:$0xff]
      %v2771 = vld [vmem:[%s2736 + $0x110] sm:$0xff]
      %v2772 = vld [vmem:[%s2736 + $0x118] sm:$0xff]
      %v2773 = vld [vmem:[%s2736 + $0x120] sm:$0xff]
      %v2774 = vld [vmem:[%s2736 + $0x128] sm:$0xff]
      %v2775 = vld [vmem:[%s2736 + $0x130] sm:$0xff]
      %v2776 = vld [vmem:[%s2736 + $0x138] sm:$0xff]
      %v2777 = vld [vmem:[%s2736 + $0x140] sm:$0xff]
      %v2778 = vld [vmem:[%s2736 + $0x148] sm:$0xff]
      %v2779 = vld [vmem:[%s2736 + $0x150] sm:$0xff]
      %v2780 = vld [vmem:[%s2736 + $0x158] sm:$0xff]
      %v2781 = vld [vmem:[%s2736 + $0x160] sm:$0xff]
      %v2782 = vld [vmem:[%s2736 + $0x168] sm:$0xff]
      %v2783 = vld [vmem:[%s2736 + $0x170] sm:$0xff]
      %v2784 = vld [vmem:[%s2736 + $0x178] sm:$0xff]
      %v2785 = vld [vmem:[%s2736 + $0x180] sm:$0xff]
      %v2786 = vld [vmem:[%s2736 + $0x188] sm:$0xff]
      %v2787 = vld [vmem:[%s2736 + $0x190] sm:$0xff]
      %v2788 = vld [vmem:[%s2736 + $0x198] sm:$0xff]
      %v2789 = vld [vmem:[%s2736 + $0x1a0] sm:$0xff]
      %v2790 = vld [vmem:[%s2736 + $0x1a8] sm:$0xff]
      %v2791 = vld [vmem:[%s2736 + $0x1b0] sm:$0xff]
      %v2792 = vld [vmem:[%s2736 + $0x1b8] sm:$0xff]
      %v2793 = vld [vmem:[%s2736 + $0x1c0] sm:$0xff]
      %v2794 = vld [vmem:[%s2736 + $0x1c8] sm:$0xff]
      %v2795 = vld [vmem:[%s2736 + $0x1d0] sm:$0xff]
      %v2796 = vld [vmem:[%s2736 + $0x1d8] sm:$0xff]
      %v2797 = vld [vmem:[%s2736 + $0x1e0] sm:$0xff]
      %v2798 = vld [vmem:[%s2736 + $0x1e8] sm:$0xff]
      %v2799 = vld [vmem:[%s2736 + $0x1f0] sm:$0xff]
      %v2800 = vld [vmem:[%s2736 + $0x1f8] sm:$0xff]
      %v2865 = vunpack.c.l.b16 %v2737
      %v2866 = vunpack.c.h.b16 %v2737
      %v2867 = vunpack.c.l.b16 %v2738
      %v2868 = vunpack.c.h.b16 %v2738
      %v2869 = vunpack.c.l.b16 %v2739
      %v2870 = vunpack.c.h.b16 %v2739
      %v2871 = vunpack.c.l.b16 %v2740
      %v2872 = vunpack.c.h.b16 %v2740
      %v2873 = vunpack.c.l.b16 %v2741
      %v2874 = vunpack.c.h.b16 %v2741
      %v2875 = vunpack.c.l.b16 %v2742
      %v2876 = vunpack.c.h.b16 %v2742
      %v2877 = vunpack.c.l.b16 %v2743
      %v2878 = vunpack.c.h.b16 %v2743
      %v2879 = vunpack.c.l.b16 %v2744
      %v2880 = vunpack.c.h.b16 %v2744
      %v2881 = vunpack.c.l.b16 %v2745
      %v2882 = vunpack.c.h.b16 %v2745
      %v2883 = vunpack.c.l.b16 %v2746
      %v2884 = vunpack.c.h.b16 %v2746
      %v2885 = vunpack.c.l.b16 %v2747
      %v2886 = vunpack.c.h.b16 %v2747
      %v2887 = vunpack.c.l.b16 %v2748
      %v2888 = vunpack.c.h.b16 %v2748
      %v2889 = vunpack.c.l.b16 %v2749
      %v2890 = vunpack.c.h.b16 %v2749
      %v2891 = vunpack.c.l.b16 %v2750
      %v2892 = vunpack.c.h.b16 %v2750
      %v2893 = vunpack.c.l.b16 %v2751
      %v2894 = vunpack.c.h.b16 %v2751
      %v2895 = vunpack.c.l.b16 %v2752
      %v2896 = vunpack.c.h.b16 %v2752
      %v2897 = vunpack.c.l.b16 %v2753
      %v2898 = vunpack.c.h.b16 %v2753
      %v2899 = vunpack.c.l.b16 %v2754
      %v2900 = vunpack.c.h.b16 %v2754
      %v2901 = vunpack.c.l.b16 %v2755
      %v2902 = vunpack.c.h.b16 %v2755
      %v2903 = vunpack.c.l.b16 %v2756
      %v2904 = vunpack.c.h.b16 %v2756
      %v2905 = vunpack.c.l.b16 %v2757
      %v2906 = vunpack.c.h.b16 %v2757
      %v2907 = vunpack.c.l.b16 %v2758
      %v2908 = vunpack.c.h.b16 %v2758
      %v2909 = vunpack.c.l.b16 %v2759
      %v2910 = vunpack.c.h.b16 %v2759
      %v2911 = vunpack.c.l.b16 %v2760
      %v2912 = vunpack.c.h.b16 %v2760
      %v2913 = vunpack.c.l.b16 %v2761
      %v2914 = vunpack.c.h.b16 %v2761
      %v2915 = vunpack.c.l.b16 %v2762
      %v2916 = vunpack.c.h.b16 %v2762
      %v2917 = vunpack.c.l.b16 %v2763
      %v2918 = vunpack.c.h.b16 %v2763
      %v2919 = vunpack.c.l.b16 %v2764
      %v2920 = vunpack.c.h.b16 %v2764
      %v2921 = vunpack.c.l.b16 %v2765
      %v2922 = vunpack.c.h.b16 %v2765
      %v2923 = vunpack.c.l.b16 %v2766
      %v2924 = vunpack.c.h.b16 %v2766
      %v2925 = vunpack.c.l.b16 %v2767
      %v2926 = vunpack.c.h.b16 %v2767
      %v2927 = vunpack.c.l.b16 %v2768
      %v2928 = vunpack.c.h.b16 %v2768
      %v2929 = vunpack.c.l.b16 %v2769
      %v2930 = vunpack.c.h.b16 %v2769
      %v2931 = vunpack.c.l.b16 %v2770
      %v2932 = vunpack.c.h.b16 %v2770
      %v2933 = vunpack.c.l.b16 %v2771
      %v2934 = vunpack.c.h.b16 %v2771
      %v2935 = vunpack.c.l.b16 %v2772
      %v2936 = vunpack.c.h.b16 %v2772
      %v2937 = vunpack.c.l.b16 %v2773
      %v2938 = vunpack.c.h.b16 %v2773
      %v2939 = vunpack.c.l.b16 %v2774
      %v2940 = vunpack.c.h.b16 %v2774
      %v2941 = vunpack.c.l.b16 %v2775
      %v2942 = vunpack.c.h.b16 %v2775
      %v2943 = vunpack.c.l.b16 %v2776
      %v2944 = vunpack.c.h.b16 %v2776
      %v2945 = vunpack.c.l.b16 %v2777
      %v2946 = vunpack.c.h.b16 %v2777
      %v2947 = vunpack.c.l.b16 %v2778
      %v2948 = vunpack.c.h.b16 %v2778
      %v2949 = vunpack.c.l.b16 %v2779
      %v2950 = vunpack.c.h.b16 %v2779
      %v2951 = vunpack.c.l.b16 %v2780
      %v2952 = vunpack.c.h.b16 %v2780
      %v2953 = vunpack.c.l.b16 %v2781
      %v2954 = vunpack.c.h.b16 %v2781
      %v2955 = vunpack.c.l.b16 %v2782
      %v2956 = vunpack.c.h.b16 %v2782
      %v2957 = vunpack.c.l.b16 %v2783
      %v2958 = vunpack.c.h.b16 %v2783
      %v2959 = vunpack.c.l.b16 %v2784
      %v2960 = vunpack.c.h.b16 %v2784
      %v2961 = vunpack.c.l.b16 %v2785
      %v2962 = vunpack.c.h.b16 %v2785
      %v2963 = vunpack.c.l.b16 %v2786
      %v2964 = vunpack.c.h.b16 %v2786
      %v2965 = vunpack.c.l.b16 %v2787
      %v2966 = vunpack.c.h.b16 %v2787
      %v2967 = vunpack.c.l.b16 %v2788
      %v2968 = vunpack.c.h.b16 %v2788
      %v2969 = vunpack.c.l.b16 %v2789
      %v2970 = vunpack.c.h.b16 %v2789
      %v2971 = vunpack.c.l.b16 %v2790
      %v2972 = vunpack.c.h.b16 %v2790
      %v2973 = vunpack.c.l.b16 %v2791
      %v2974 = vunpack.c.h.b16 %v2791
      %v2975 = vunpack.c.l.b16 %v2792
      %v2976 = vunpack.c.h.b16 %v2792
      %v2977 = vunpack.c.l.b16 %v2793
      %v2978 = vunpack.c.h.b16 %v2793
      %v2979 = vunpack.c.l.b16 %v2794
      %v2980 = vunpack.c.h.b16 %v2794
      %v2981 = vunpack.c.l.b16 %v2795
      %v2982 = vunpack.c.h.b16 %v2795
      %v2983 = vunpack.c.l.b16 %v2796
      %v2984 = vunpack.c.h.b16 %v2796
      %v2985 = vunpack.c.l.b16 %v2797
      %v2986 = vunpack.c.h.b16 %v2797
      %v2987 = vunpack.c.l.b16 %v2798
      %v2988 = vunpack.c.h.b16 %v2798
      %v2989 = vunpack.c.l.b16 %v2799
      %v2990 = vunpack.c.h.b16 %v2799
      %v2991 = vunpack.c.l.b16 %v2800
      %v2992 = vunpack.c.h.b16 %v2800
      %v2993 = vpack.c.b16 %v2867, %v2865
      %v2994 = vpack.c.b16 %v2868, %v2866
      %v2995 = vpack.c.b16 %v2871, %v2869
      %v2996 = vpack.c.b16 %v2872, %v2870
      %v2997 = vpack.c.b16 %v2875, %v2873
      %v2998 = vpack.c.b16 %v2876, %v2874
      %v2999 = vpack.c.b16 %v2879, %v2877
      %v3000 = vpack.c.b16 %v2880, %v2878
      %v3001 = vpack.c.b16 %v2883, %v2881
      %v3002 = vpack.c.b16 %v2884, %v2882
      %v3003 = vpack.c.b16 %v2887, %v2885
      %v3004 = vpack.c.b16 %v2888, %v2886
      %v3005 = vpack.c.b16 %v2891, %v2889
      %v3006 = vpack.c.b16 %v2892, %v2890
      %v3007 = vpack.c.b16 %v2895, %v2893
      %v3008 = vpack.c.b16 %v2896, %v2894
      %v3009 = vpack.c.b16 %v2899, %v2897
      %v3010 = vpack.c.b16 %v2900, %v2898
      %v3011 = vpack.c.b16 %v2903, %v2901
      %v3012 = vpack.c.b16 %v2904, %v2902
      %v3013 = vpack.c.b16 %v2907, %v2905
      %v3014 = vpack.c.b16 %v2908, %v2906
      %v3015 = vpack.c.b16 %v2911, %v2909
      %v3016 = vpack.c.b16 %v2912, %v2910
      %v3017 = vpack.c.b16 %v2915, %v2913
      %v3018 = vpack.c.b16 %v2916, %v2914
      %v3019 = vpack.c.b16 %v2919, %v2917
      %v3020 = vpack.c.b16 %v2920, %v2918
      %v3021 = vpack.c.b16 %v2923, %v2921
      %v3022 = vpack.c.b16 %v2924, %v2922
      %v3023 = vpack.c.b16 %v2927, %v2925
      %v3024 = vpack.c.b16 %v2928, %v2926
      %v3025 = vpack.c.b16 %v2931, %v2929
      %v3026 = vpack.c.b16 %v2932, %v2930
      %v3027 = vpack.c.b16 %v2935, %v2933
      %v3028 = vpack.c.b16 %v2936, %v2934
      %v3029 = vpack.c.b16 %v2939, %v2937
      %v3030 = vpack.c.b16 %v2940, %v2938
      %v3031 = vpack.c.b16 %v2943, %v2941
      %v3032 = vpack.c.b16 %v2944, %v2942
      %v3033 = vpack.c.b16 %v2947, %v2945
      %v3034 = vpack.c.b16 %v2948, %v2946
      %v3035 = vpack.c.b16 %v2951, %v2949
      %v3036 = vpack.c.b16 %v2952, %v2950
      %v3037 = vpack.c.b16 %v2955, %v2953
      %v3038 = vpack.c.b16 %v2956, %v2954
      %v3039 = vpack.c.b16 %v2959, %v2957
      %v3040 = vpack.c.b16 %v2960, %v2958
      %v3041 = vpack.c.b16 %v2963, %v2961
      %v3042 = vpack.c.b16 %v2964, %v2962
      %v3043 = vpack.c.b16 %v2967, %v2965
      %v3044 = vpack.c.b16 %v2968, %v2966
      %v3045 = vpack.c.b16 %v2971, %v2969
      %v3046 = vpack.c.b16 %v2972, %v2970
      %v3047 = vpack.c.b16 %v2975, %v2973
      %v3048 = vpack.c.b16 %v2976, %v2974
      %v3049 = vpack.c.b16 %v2979, %v2977
      %v3050 = vpack.c.b16 %v2980, %v2978
      %v3051 = vpack.c.b16 %v2983, %v2981
      %v3052 = vpack.c.b16 %v2984, %v2982
      %v3053 = vpack.c.b16 %v2987, %v2985
      %v3054 = vpack.c.b16 %v2988, %v2986
      %v3055 = vpack.c.b16 %v2991, %v2989
      %v3056 = vpack.c.b16 %v2992, %v2990
      %3121 = vmatpush.bf16.msra.mxu0 %v3007
      %3122 = vmatpush.bf16.msra.mxu0 %v3005
      %3123 = vmatpush.bf16.msra.mxu0 %v3003
      %3124 = vmatpush.bf16.msra.mxu0 %v3001
      %3125 = vmatpush.bf16.msra.mxu0 %v2999
      %3126 = vmatpush.bf16.msra.mxu0 %v2997
      %3127 = vmatpush.bf16.msra.mxu0 %v2995
      %3128 = vmatpush.bf16.msra.mxu0 %v2993
      %3129 = vmatmul.bf16.gmra.mxu0 %v2732
      %v3130 = vpop.f32.mrf.mxu0
      %v3131 = vadd.f32 0.0, %v3130
      %v3132 = vpop.f32.mrf.mxu0
      %3133 = vdwg.mxu0
      %3134 = vmatpush.bf16.msra.mxu0 %v3023
      %3135 = vmatpush.bf16.msra.mxu0 %v3021
      %3136 = vmatpush.bf16.msra.mxu0 %v3019
      %3137 = vmatpush.bf16.msra.mxu0 %v3017
      %3138 = vmatpush.bf16.msra.mxu0 %v3015
      %3139 = vmatpush.bf16.msra.mxu0 %v3013
      %3140 = vmatpush.bf16.msra.mxu0 %v3011
      %3141 = vmatpush.bf16.msra.mxu0 %v3009
      %3142 = vmatmul.bf16.gmra.mxu0 %v2733
      %v3143 = vpop.f32.mrf.mxu0
      %v3144 = vadd.f32 %v3131, %v3143
      %v3145 = vpop.f32.mrf.mxu0
      %3146 = vdwg.mxu0
      %3147 = vmatpush.bf16.msra.mxu0 %v3039
      %3148 = vmatpush.bf16.msra.mxu0 %v3037
      %3149 = vmatpush.bf16.msra.mxu0 %v3035
      %3150 = vmatpush.bf16.msra.mxu0 %v3033
      %3151 = vmatpush.bf16.msra.mxu0 %v3031
      %3152 = vmatpush.bf16.msra.mxu0 %v3029
      %3153 = vmatpush.bf16.msra.mxu0 %v3027
      %3154 = vmatpush.bf16.msra.mxu0 %v3025
      %3155 = vmatmul.bf16.gmra.mxu0 %v2734
      %v3156 = vpop.f32.mrf.mxu0
      %v3157 = vadd.f32 %v3144, %v3156
      %v3158 = vpop.f32.mrf.mxu0
      %3159 = vdwg.mxu0
      %3160 = vmatpush.bf16.msra.mxu0 %v3055
      %3161 = vmatpush.bf16.msra.mxu0 %v3053
      %3162 = vmatpush.bf16.msra.mxu0 %v3051
      %3163 = vmatpush.bf16.msra.mxu0 %v3049
      %3164 = vmatpush.bf16.msra.mxu0 %v3047
      %3165 = vmatpush.bf16.msra.mxu0 %v3045
      %3166 = vmatpush.bf16.msra.mxu0 %v3043
      %3167 = vmatpush.bf16.msra.mxu0 %v3041
      %3168 = vmatmul.bf16.gmra.mxu0 %v2735
      %v3169 = vpop.f32.mrf.mxu0
      %v3170 = vadd.f32 %v3157, %v3169
      %v3171 = vpop.f32.mrf.mxu0
      %3172 = vdwg.mxu0
      %3173 = vmatpush.bf16.msra.mxu0 %v3008
      %3174 = vmatpush.bf16.msra.mxu0 %v3006
      %3175 = vmatpush.bf16.msra.mxu0 %v3004
      %3176 = vmatpush.bf16.msra.mxu0 %v3002
      %3177 = vmatpush.bf16.msra.mxu0 %v3000
      %3178 = vmatpush.bf16.msra.mxu0 %v2998
      %3179 = vmatpush.bf16.msra.mxu0 %v2996
      %3180 = vmatpush.bf16.msra.mxu0 %v2994
      %3181 = vmatmul.bf16.gmra.mxu0 %v2732
      %v3182 = vpop.f32.mrf.mxu0
      %v3183 = vadd.f32 0.0, %v3182
      %v3184 = vpop.f32.mrf.mxu0
      %3185 = vdwg.mxu0
      %3186 = vmatpush.bf16.msra.mxu0 %v3024
      %3187 = vmatpush.bf16.msra.mxu0 %v3022
      %3188 = vmatpush.bf16.msra.mxu0 %v3020
      %3189 = vmatpush.bf16.msra.mxu0 %v3018
      %3190 = vmatpush.bf16.msra.mxu0 %v3016
      %3191 = vmatpush.bf16.msra.mxu0 %v3014
      %3192 = vmatpush.bf16.msra.mxu0 %v3012
      %3193 = vmatpush.bf16.msra.mxu0 %v3010
      %3194 = vmatmul.bf16.gmra.mxu0 %v2733
      %v3195 = vpop.f32.mrf.mxu0
      %v3196 = vadd.f32 %v3183, %v3195
      %v3197 = vpop.f32.mrf.mxu0
      %3198 = vdwg.mxu0
      %3199 = vmatpush.bf16.msra.mxu0 %v3040
      %3200 = vmatpush.bf16.msra.mxu0 %v3038
      %3201 = vmatpush.bf16.msra.mxu0 %v3036
      %3202 = vmatpush.bf16.msra.mxu0 %v3034
      %3203 = vmatpush.bf16.msra.mxu0 %v3032
      %3204 = vmatpush.bf16.msra.mxu0 %v3030
      %3205 = vmatpush.bf16.msra.mxu0 %v3028
      %3206 = vmatpush.bf16.msra.mxu0 %v3026
      %3207 = vmatmul.bf16.gmra.mxu0 %v2734
      %v3208 = vpop.f32.mrf.mxu0
      %v3209 = vadd.f32 %v3196, %v3208
      %v3210 = vpop.f32.mrf.mxu0
      %3211 = vdwg.mxu0
      %3212 = vmatpush.bf16.msra.mxu0 %v3056
      %3213 = vmatpush.bf16.msra.mxu0 %v3054
      %3214 = vmatpush.bf16.msra.mxu0 %v3052
      %3215 = vmatpush.bf16.msra.mxu0 %v3050
      %3216 = vmatpush.bf16.msra.mxu0 %v3048
      %3217 = vmatpush.bf16.msra.mxu0 %v3046
      %3218 = vmatpush.bf16.msra.mxu0 %v3044
      %3219 = vmatpush.bf16.msra.mxu0 %v3042
      %3220 = vmatmul.bf16.gmra.mxu0 %v2735
      %v3221 = vpop.f32.mrf.mxu0
      %v3222 = vadd.f32 %v3209, %v3221
      %v3223 = vpop.f32.mrf.mxu0
      %3224 = vdwg.mxu0
      %v3225 = vadd.f32 %v2677, %v3170
      %v3226 = vadd.f32 %v2729, %v3222
      %v3227 = vpack.c.bf16 %v1731, %v1731
      %v3228 = vpack.c.bf16 %v1732, %v1732
      %v3229 = vpack.c.bf16 %v1733, %v1733
      %v3230 = vpack.c.bf16 %v1734, %v1734
      %s3231 = scalar_lea.vmem [#allocation10], 1536
      %v3232 = vld [vmem:[%s3231] sm:$0xff]
      %v3233 = vld [vmem:[%s3231 + $0x8] sm:$0xff]
      %v3234 = vld [vmem:[%s3231 + $0x10] sm:$0xff]
      %v3235 = vld [vmem:[%s3231 + $0x18] sm:$0xff]
      %v3236 = vld [vmem:[%s3231 + $0x20] sm:$0xff]
      %v3237 = vld [vmem:[%s3231 + $0x28] sm:$0xff]
      %v3238 = vld [vmem:[%s3231 + $0x30] sm:$0xff]
      %v3239 = vld [vmem:[%s3231 + $0x38] sm:$0xff]
      %v3240 = vld [vmem:[%s3231 + $0x40] sm:$0xff]
      %v3241 = vld [vmem:[%s3231 + $0x48] sm:$0xff]
      %v3242 = vld [vmem:[%s3231 + $0x50] sm:$0xff]
      %v3243 = vld [vmem:[%s3231 + $0x58] sm:$0xff]
      %v3244 = vld [vmem:[%s3231 + $0x60] sm:$0xff]
      %v3245 = vld [vmem:[%s3231 + $0x68] sm:$0xff]
      %v3246 = vld [vmem:[%s3231 + $0x70] sm:$0xff]
      %v3247 = vld [vmem:[%s3231 + $0x78] sm:$0xff]
      %v3248 = vld [vmem:[%s3231 + $0x80] sm:$0xff]
      %v3249 = vld [vmem:[%s3231 + $0x88] sm:$0xff]
      %v3250 = vld [vmem:[%s3231 + $0x90] sm:$0xff]
      %v3251 = vld [vmem:[%s3231 + $0x98] sm:$0xff]
      %v3252 = vld [vmem:[%s3231 + $0xa0] sm:$0xff]
      %v3253 = vld [vmem:[%s3231 + $0xa8] sm:$0xff]
      %v3254 = vld [vmem:[%s3231 + $0xb0] sm:$0xff]
      %v3255 = vld [vmem:[%s3231 + $0xb8] sm:$0xff]
      %v3256 = vld [vmem:[%s3231 + $0xc0] sm:$0xff]
      %v3257 = vld [vmem:[%s3231 + $0xc8] sm:$0xff]
      %v3258 = vld [vmem:[%s3231 + $0xd0] sm:$0xff]
      %v3259 = vld [vmem:[%s3231 + $0xd8] sm:$0xff]
      %v3260 = vld [vmem:[%s3231 + $0xe0] sm:$0xff]
      %v3261 = vld [vmem:[%s3231 + $0xe8] sm:$0xff]
      %v3262 = vld [vmem:[%s3231 + $0xf0] sm:$0xff]
      %v3263 = vld [vmem:[%s3231 + $0xf8] sm:$0xff]
      %v3264 = vld [vmem:[%s3231 + $0x100] sm:$0xff]
      %v3265 = vld [vmem:[%s3231 + $0x108] sm:$0xff]
      %v3266 = vld [vmem:[%s3231 + $0x110] sm:$0xff]
      %v3267 = vld [vmem:[%s3231 + $0x118] sm:$0xff]
      %v3268 = vld [vmem:[%s3231 + $0x120] sm:$0xff]
      %v3269 = vld [vmem:[%s3231 + $0x128] sm:$0xff]
      %v3270 = vld [vmem:[%s3231 + $0x130] sm:$0xff]
      %v3271 = vld [vmem:[%s3231 + $0x138] sm:$0xff]
      %v3272 = vld [vmem:[%s3231 + $0x140] sm:$0xff]
      %v3273 = vld [vmem:[%s3231 + $0x148] sm:$0xff]
      %v3274 = vld [vmem:[%s3231 + $0x150] sm:$0xff]
      %v3275 = vld [vmem:[%s3231 + $0x158] sm:$0xff]
      %v3276 = vld [vmem:[%s3231 + $0x160] sm:$0xff]
      %v3277 = vld [vmem:[%s3231 + $0x168] sm:$0xff]
      %v3278 = vld [vmem:[%s3231 + $0x170] sm:$0xff]
      %v3279 = vld [vmem:[%s3231 + $0x178] sm:$0xff]
      %v3280 = vld [vmem:[%s3231 + $0x180] sm:$0xff]
      %v3281 = vld [vmem:[%s3231 + $0x188] sm:$0xff]
      %v3282 = vld [vmem:[%s3231 + $0x190] sm:$0xff]
      %v3283 = vld [vmem:[%s3231 + $0x198] sm:$0xff]
      %v3284 = vld [vmem:[%s3231 + $0x1a0] sm:$0xff]
      %v3285 = vld [vmem:[%s3231 + $0x1a8] sm:$0xff]
      %v3286 = vld [vmem:[%s3231 + $0x1b0] sm:$0xff]
      %v3287 = vld [vmem:[%s3231 + $0x1b8] sm:$0xff]
      %v3288 = vld [vmem:[%s3231 + $0x1c0] sm:$0xff]
      %v3289 = vld [vmem:[%s3231 + $0x1c8] sm:$0xff]
      %v3290 = vld [vmem:[%s3231 + $0x1d0] sm:$0xff]
      %v3291 = vld [vmem:[%s3231 + $0x1d8] sm:$0xff]
      %v3292 = vld [vmem:[%s3231 + $0x1e0] sm:$0xff]
      %v3293 = vld [vmem:[%s3231 + $0x1e8] sm:$0xff]
      %v3294 = vld [vmem:[%s3231 + $0x1f0] sm:$0xff]
      %v3295 = vld [vmem:[%s3231 + $0x1f8] sm:$0xff]
      %v3360 = vunpack.c.l.b16 %v3232
      %v3361 = vunpack.c.h.b16 %v3232
      %v3362 = vunpack.c.l.b16 %v3233
      %v3363 = vunpack.c.h.b16 %v3233
      %v3364 = vunpack.c.l.b16 %v3234
      %v3365 = vunpack.c.h.b16 %v3234
      %v3366 = vunpack.c.l.b16 %v3235
      %v3367 = vunpack.c.h.b16 %v3235
      %v3368 = vunpack.c.l.b16 %v3236
      %v3369 = vunpack.c.h.b16 %v3236
      %v3370 = vunpack.c.l.b16 %v3237
      %v3371 = vunpack.c.h.b16 %v3237
      %v3372 = vunpack.c.l.b16 %v3238
      %v3373 = vunpack.c.h.b16 %v3238
      %v3374 = vunpack.c.l.b16 %v3239
      %v3375 = vunpack.c.h.b16 %v3239
      %v3376 = vunpack.c.l.b16 %v3240
      %v3377 = vunpack.c.h.b16 %v3240
      %v3378 = vunpack.c.l.b16 %v3241
      %v3379 = vunpack.c.h.b16 %v3241
      %v3380 = vunpack.c.l.b16 %v3242
      %v3381 = vunpack.c.h.b16 %v3242
      %v3382 = vunpack.c.l.b16 %v3243
      %v3383 = vunpack.c.h.b16 %v3243
      %v3384 = vunpack.c.l.b16 %v3244
      %v3385 = vunpack.c.h.b16 %v3244
      %v3386 = vunpack.c.l.b16 %v3245
      %v3387 = vunpack.c.h.b16 %v3245
      %v3388 = vunpack.c.l.b16 %v3246
      %v3389 = vunpack.c.h.b16 %v3246
      %v3390 = vunpack.c.l.b16 %v3247
      %v3391 = vunpack.c.h.b16 %v3247
      %v3392 = vunpack.c.l.b16 %v3248
      %v3393 = vunpack.c.h.b16 %v3248
      %v3394 = vunpack.c.l.b16 %v3249
      %v3395 = vunpack.c.h.b16 %v3249
      %v3396 = vunpack.c.l.b16 %v3250
      %v3397 = vunpack.c.h.b16 %v3250
      %v3398 = vunpack.c.l.b16 %v3251
      %v3399 = vunpack.c.h.b16 %v3251
      %v3400 = vunpack.c.l.b16 %v3252
      %v3401 = vunpack.c.h.b16 %v3252
      %v3402 = vunpack.c.l.b16 %v3253
      %v3403 = vunpack.c.h.b16 %v3253
      %v3404 = vunpack.c.l.b16 %v3254
      %v3405 = vunpack.c.h.b16 %v3254
      %v3406 = vunpack.c.l.b16 %v3255
      %v3407 = vunpack.c.h.b16 %v3255
      %v3408 = vunpack.c.l.b16 %v3256
      %v3409 = vunpack.c.h.b16 %v3256
      %v3410 = vunpack.c.l.b16 %v3257
      %v3411 = vunpack.c.h.b16 %v3257
      %v3412 = vunpack.c.l.b16 %v3258
      %v3413 = vunpack.c.h.b16 %v3258
      %v3414 = vunpack.c.l.b16 %v3259
      %v3415 = vunpack.c.h.b16 %v3259
      %v3416 = vunpack.c.l.b16 %v3260
      %v3417 = vunpack.c.h.b16 %v3260
      %v3418 = vunpack.c.l.b16 %v3261
      %v3419 = vunpack.c.h.b16 %v3261
      %v3420 = vunpack.c.l.b16 %v3262
      %v3421 = vunpack.c.h.b16 %v3262
      %v3422 = vunpack.c.l.b16 %v3263
      %v3423 = vunpack.c.h.b16 %v3263
      %v3424 = vunpack.c.l.b16 %v3264
      %v3425 = vunpack.c.h.b16 %v3264
      %v3426 = vunpack.c.l.b16 %v3265
      %v3427 = vunpack.c.h.b16 %v3265
      %v3428 = vunpack.c.l.b16 %v3266
      %v3429 = vunpack.c.h.b16 %v3266
      %v3430 = vunpack.c.l.b16 %v3267
      %v3431 = vunpack.c.h.b16 %v3267
      %v3432 = vunpack.c.l.b16 %v3268
      %v3433 = vunpack.c.h.b16 %v3268
      %v3434 = vunpack.c.l.b16 %v3269
      %v3435 = vunpack.c.h.b16 %v3269
      %v3436 = vunpack.c.l.b16 %v3270
      %v3437 = vunpack.c.h.b16 %v3270
      %v3438 = vunpack.c.l.b16 %v3271
      %v3439 = vunpack.c.h.b16 %v3271
      %v3440 = vunpack.c.l.b16 %v3272
      %v3441 = vunpack.c.h.b16 %v3272
      %v3442 = vunpack.c.l.b16 %v3273
      %v3443 = vunpack.c.h.b16 %v3273
      %v3444 = vunpack.c.l.b16 %v3274
      %v3445 = vunpack.c.h.b16 %v3274
      %v3446 = vunpack.c.l.b16 %v3275
      %v3447 = vunpack.c.h.b16 %v3275
      %v3448 = vunpack.c.l.b16 %v3276
      %v3449 = vunpack.c.h.b16 %v3276
      %v3450 = vunpack.c.l.b16 %v3277
      %v3451 = vunpack.c.h.b16 %v3277
      %v3452 = vunpack.c.l.b16 %v3278
      %v3453 = vunpack.c.h.b16 %v3278
      %v3454 = vunpack.c.l.b16 %v3279
      %v3455 = vunpack.c.h.b16 %v3279
      %v3456 = vunpack.c.l.b16 %v3280
      %v3457 = vunpack.c.h.b16 %v3280
      %v3458 = vunpack.c.l.b16 %v3281
      %v3459 = vunpack.c.h.b16 %v3281
      %v3460 = vunpack.c.l.b16 %v3282
      %v3461 = vunpack.c.h.b16 %v3282
      %v3462 = vunpack.c.l.b16 %v3283
      %v3463 = vunpack.c.h.b16 %v3283
      %v3464 = vunpack.c.l.b16 %v3284
      %v3465 = vunpack.c.h.b16 %v3284
      %v3466 = vunpack.c.l.b16 %v3285
      %v3467 = vunpack.c.h.b16 %v3285
      %v3468 = vunpack.c.l.b16 %v3286
      %v3469 = vunpack.c.h.b16 %v3286
      %v3470 = vunpack.c.l.b16 %v3287
      %v3471 = vunpack.c.h.b16 %v3287
      %v3472 = vunpack.c.l.b16 %v3288
      %v3473 = vunpack.c.h.b16 %v3288
      %v3474 = vunpack.c.l.b16 %v3289
      %v3475 = vunpack.c.h.b16 %v3289
      %v3476 = vunpack.c.l.b16 %v3290
      %v3477 = vunpack.c.h.b16 %v3290
      %v3478 = vunpack.c.l.b16 %v3291
      %v3479 = vunpack.c.h.b16 %v3291
      %v3480 = vunpack.c.l.b16 %v3292
      %v3481 = vunpack.c.h.b16 %v3292
      %v3482 = vunpack.c.l.b16 %v3293
      %v3483 = vunpack.c.h.b16 %v3293
      %v3484 = vunpack.c.l.b16 %v3294
      %v3485 = vunpack.c.h.b16 %v3294
      %v3486 = vunpack.c.l.b16 %v3295
      %v3487 = vunpack.c.h.b16 %v3295
      %v3488 = vpack.c.b16 %v3362, %v3360
      %v3489 = vpack.c.b16 %v3363, %v3361
      %v3490 = vpack.c.b16 %v3366, %v3364
      %v3491 = vpack.c.b16 %v3367, %v3365
      %v3492 = vpack.c.b16 %v3370, %v3368
      %v3493 = vpack.c.b16 %v3371, %v3369
      %v3494 = vpack.c.b16 %v3374, %v3372
      %v3495 = vpack.c.b16 %v3375, %v3373
      %v3496 = vpack.c.b16 %v3378, %v3376
      %v3497 = vpack.c.b16 %v3379, %v3377
      %v3498 = vpack.c.b16 %v3382, %v3380
      %v3499 = vpack.c.b16 %v3383, %v3381
      %v3500 = vpack.c.b16 %v3386, %v3384
      %v3501 = vpack.c.b16 %v3387, %v3385
      %v3502 = vpack.c.b16 %v3390, %v3388
      %v3503 = vpack.c.b16 %v3391, %v3389
      %v3504 = vpack.c.b16 %v3394, %v3392
      %v3505 = vpack.c.b16 %v3395, %v3393
      %v3506 = vpack.c.b16 %v3398, %v3396
      %v3507 = vpack.c.b16 %v3399, %v3397
      %v3508 = vpack.c.b16 %v3402, %v3400
      %v3509 = vpack.c.b16 %v3403, %v3401
      %v3510 = vpack.c.b16 %v3406, %v3404
      %v3511 = vpack.c.b16 %v3407, %v3405
      %v3512 = vpack.c.b16 %v3410, %v3408
      %v3513 = vpack.c.b16 %v3411, %v3409
      %v3514 = vpack.c.b16 %v3414, %v3412
      %v3515 = vpack.c.b16 %v3415, %v3413
      %v3516 = vpack.c.b16 %v3418, %v3416
      %v3517 = vpack.c.b16 %v3419, %v3417
      %v3518 = vpack.c.b16 %v3422, %v3420
      %v3519 = vpack.c.b16 %v3423, %v3421
      %v3520 = vpack.c.b16 %v3426, %v3424
      %v3521 = vpack.c.b16 %v3427, %v3425
      %v3522 = vpack.c.b16 %v3430, %v3428
      %v3523 = vpack.c.b16 %v3431, %v3429
      %v3524 = vpack.c.b16 %v3434, %v3432
      %v3525 = vpack.c.b16 %v3435, %v3433
      %v3526 = vpack.c.b16 %v3438, %v3436
      %v3527 = vpack.c.b16 %v3439, %v3437
      %v3528 = vpack.c.b16 %v3442, %v3440
      %v3529 = vpack.c.b16 %v3443, %v3441
      %v3530 = vpack.c.b16 %v3446, %v3444
      %v3531 = vpack.c.b16 %v3447, %v3445
      %v3532 = vpack.c.b16 %v3450, %v3448
      %v3533 = vpack.c.b16 %v3451, %v3449
      %v3534 = vpack.c.b16 %v3454, %v3452
      %v3535 = vpack.c.b16 %v3455, %v3453
      %v3536 = vpack.c.b16 %v3458, %v3456
      %v3537 = vpack.c.b16 %v3459, %v3457
      %v3538 = vpack.c.b16 %v3462, %v3460
      %v3539 = vpack.c.b16 %v3463, %v3461
      %v3540 = vpack.c.b16 %v3466, %v3464
      %v3541 = vpack.c.b16 %v3467, %v3465
      %v3542 = vpack.c.b16 %v3470, %v3468
      %v3543 = vpack.c.b16 %v3471, %v3469
      %v3544 = vpack.c.b16 %v3474, %v3472
      %v3545 = vpack.c.b16 %v3475, %v3473
      %v3546 = vpack.c.b16 %v3478, %v3476
      %v3547 = vpack.c.b16 %v3479, %v3477
      %v3548 = vpack.c.b16 %v3482, %v3480
      %v3549 = vpack.c.b16 %v3483, %v3481
      %v3550 = vpack.c.b16 %v3486, %v3484
      %v3551 = vpack.c.b16 %v3487, %v3485
      %3616 = vmatpush.bf16.msra.mxu0 %v3502
      %3617 = vmatpush.bf16.msra.mxu0 %v3500
      %3618 = vmatpush.bf16.msra.mxu0 %v3498
      %3619 = vmatpush.bf16.msra.mxu0 %v3496
      %3620 = vmatpush.bf16.msra.mxu0 %v3494
      %3621 = vmatpush.bf16.msra.mxu0 %v3492
      %3622 = vmatpush.bf16.msra.mxu0 %v3490
      %3623 = vmatpush.bf16.msra.mxu0 %v3488
      %3624 = vmatmul.bf16.gmra.mxu0 %v3227
      %v3625 = vpop.f32.mrf.mxu0
      %v3626 = vadd.f32 0.0, %v3625
      %v3627 = vpop.f32.mrf.mxu0
      %3628 = vdwg.mxu0
      %3629 = vmatpush.bf16.msra.mxu0 %v3518
      %3630 = vmatpush.bf16.msra.mxu0 %v3516
      %3631 = vmatpush.bf16.msra.mxu0 %v3514
      %3632 = vmatpush.bf16.msra.mxu0 %v3512
      %3633 = vmatpush.bf16.msra.mxu0 %v3510
      %3634 = vmatpush.bf16.msra.mxu0 %v3508
      %3635 = vmatpush.bf16.msra.mxu0 %v3506
      %3636 = vmatpush.bf16.msra.mxu0 %v3504
      %3637 = vmatmul.bf16.gmra.mxu0 %v3228
      %v3638 = vpop.f32.mrf.mxu0
      %v3639 = vadd.f32 %v3626, %v3638
      %v3640 = vpop.f32.mrf.mxu0
      %3641 = vdwg.mxu0
      %3642 = vmatpush.bf16.msra.mxu0 %v3534
      %3643 = vmatpush.bf16.msra.mxu0 %v3532
      %3644 = vmatpush.bf16.msra.mxu0 %v3530
      %3645 = vmatpush.bf16.msra.mxu0 %v3528
      %3646 = vmatpush.bf16.msra.mxu0 %v3526
      %3647 = vmatpush.bf16.msra.mxu0 %v3524
      %3648 = vmatpush.bf16.msra.mxu0 %v3522
      %3649 = vmatpush.bf16.msra.mxu0 %v3520
      %3650 = vmatmul.bf16.gmra.mxu0 %v3229
      %v3651 = vpop.f32.mrf.mxu0
      %v3652 = vadd.f32 %v3639, %v3651
      %v3653 = vpop.f32.mrf.mxu0
      %3654 = vdwg.mxu0
      %3655 = vmatpush.bf16.msra.mxu0 %v3550
      %3656 = vmatpush.bf16.msra.mxu0 %v3548
      %3657 = vmatpush.bf16.msra.mxu0 %v3546
      %3658 = vmatpush.bf16.msra.mxu0 %v3544
      %3659 = vmatpush.bf16.msra.mxu0 %v3542
      %3660 = vmatpush.bf16.msra.mxu0 %v3540
      %3661 = vmatpush.bf16.msra.mxu0 %v3538
      %3662 = vmatpush.bf16.msra.mxu0 %v3536
      %3663 = vmatmul.bf16.gmra.mxu0 %v3230
      %v3664 = vpop.f32.mrf.mxu0
      %v3665 = vadd.f32 %v3652, %v3664
      %v3666 = vpop.f32.mrf.mxu0
      %3667 = vdwg.mxu0
      %3668 = vmatpush.bf16.msra.mxu0 %v3503
      %3669 = vmatpush.bf16.msra.mxu0 %v3501
      %3670 = vmatpush.bf16.msra.mxu0 %v3499
      %3671 = vmatpush.bf16.msra.mxu0 %v3497
      %3672 = vmatpush.bf16.msra.mxu0 %v3495
      %3673 = vmatpush.bf16.msra.mxu0 %v3493
      %3674 = vmatpush.bf16.msra.mxu0 %v3491
      %3675 = vmatpush.bf16.msra.mxu0 %v3489
      %3676 = vmatmul.bf16.gmra.mxu0 %v3227
      %v3677 = vpop.f32.mrf.mxu0
      %v3678 = vadd.f32 0.0, %v3677
      %v3679 = vpop.f32.mrf.mxu0
      %3680 = vdwg.mxu0
      %3681 = vmatpush.bf16.msra.mxu0 %v3519
      %3682 = vmatpush.bf16.msra.mxu0 %v3517
      %3683 = vmatpush.bf16.msra.mxu0 %v3515
      %3684 = vmatpush.bf16.msra.mxu0 %v3513
      %3685 = vmatpush.bf16.msra.mxu0 %v3511
      %3686 = vmatpush.bf16.msra.mxu0 %v3509
      %3687 = vmatpush.bf16.msra.mxu0 %v3507
      %3688 = vmatpush.bf16.msra.mxu0 %v3505
      %3689 = vmatmul.bf16.gmra.mxu0 %v3228
      %v3690 = vpop.f32.mrf.mxu0
      %v3691 = vadd.f32 %v3678, %v3690
      %v3692 = vpop.f32.mrf.mxu0
      %3693 = vdwg.mxu0
      %3694 = vmatpush.bf16.msra.mxu0 %v3535
      %3695 = vmatpush.bf16.msra.mxu0 %v3533
      %3696 = vmatpush.bf16.msra.mxu0 %v3531
      %3697 = vmatpush.bf16.msra.mxu0 %v3529
      %3698 = vmatpush.bf16.msra.mxu0 %v3527
      %3699 = vmatpush.bf16.msra.mxu0 %v3525
      %3700 = vmatpush.bf16.msra.mxu0 %v3523
      %3701 = vmatpush.bf16.msra.mxu0 %v3521
      %3702 = vmatmul.bf16.gmra.mxu0 %v3229
      %v3703 = vpop.f32.mrf.mxu0
      %v3704 = vadd.f32 %v3691, %v3703
      %v3705 = vpop.f32.mrf.mxu0
      %3706 = vdwg.mxu0
      %3707 = vmatpush.bf16.msra.mxu0 %v3551
      %3708 = vmatpush.bf16.msra.mxu0 %v3549
      %3709 = vmatpush.bf16.msra.mxu0 %v3547
      %3710 = vmatpush.bf16.msra.mxu0 %v3545
      %3711 = vmatpush.bf16.msra.mxu0 %v3543
      %3712 = vmatpush.bf16.msra.mxu0 %v3541
      %3713 = vmatpush.bf16.msra.mxu0 %v3539
      %3714 = vmatpush.bf16.msra.mxu0 %v3537
      %3715 = vmatmul.bf16.gmra.mxu0 %v3230
      %v3716 = vpop.f32.mrf.mxu0
      %v3717 = vadd.f32 %v3704, %v3716
      %v3718 = vpop.f32.mrf.mxu0
      %3719 = vdwg.mxu0
      %v3720 = vadd.f32 %v3225, %v3665
      %v3721 = vadd.f32 %v3226, %v3717
      %v3722 = vld [vmem:[%s4] sm:$0x3]
      %v3724 = vperm.slane %v3722, 0
      %v3725 = vperm.slane %v3722, 1
      %v3728 = vadd.f32 %v3720, %v3724
      %v3729 = vadd.f32 %v3721, %v3725
      %v3730 = vmax.f32 %v3728, 0.0
      %v3731 = vmax.f32 %v3729, 0.0
      %v3732 = vld [vmem:[%s5] sm:$0x3]
      %v3734 = vperm.slane %v3732, 0
      %v3735 = vperm.slane %v3732, 1
      %v3738 = vmul.f32 %v3730, %v3734
      %v3739 = vmul.f32 %v3731, %v3735
      %v3740 = vadd.f32 %v3738, %v3739
      %3741 = vadd.xlane.f32.xlu0 %v3740
      %v3742 = vpop.xlane.xlu0 %3741
      %v3743 = vld [vmem:[#allocation3] sm:$0x1]
      %v3745 = vperm.slane %v3743, 0
      %v3747 = vadd.f32 %v3742, %v3745
      %3749 = vset.pattern.permute.xlu0 0
      %3750 = vperm.xlu0 %3749, %v3747
      %v3751 = vpop.permute.xlu0 %3750
      %3753 = vst [vmem:[#allocation12] sm:$0xff] %v3751
    $region53: #{tpu_custom_call.1} parent=1 // pred_fallthru
      _
    // Predicated region
    $region54: #{tpu_custom_call.1} parent=1 // pred_check
      _
    $region55: #{tpu_custom_call.1} parent=1 // pred_check_branch
      %3755 = sbr.rel (0) target = $region57
    $region56: #{tpu_custom_call.1} parent=1 // pred_region
      %3757 = vsyncadd [#allocation6], 0
      %s3759 = sshll.u32 [#allocation12], 4
      %s3760 = int_to_ptr.vmem [resolvable:$true] %s3759
      %s3761 = sshll.u32 %s7, 4
      %s3762 = int_to_ptr.hbm [resolvable:$true] %s3761
      %3764 = dma.vmem_to_hbm [thread:$0]  %s3760, 128, %s3762, [#allocation6]
    $region57: #{tpu_custom_call.1} parent=1 // pred_fallthru
      _
    // Predicated region
    $region58: #{tpu_custom_call.1} parent=1 // pred_check
      _
    $region59: #{tpu_custom_call.1} parent=1 // pred_check_branch
      %3766 = sbr.rel (0) target = $region61
    $region60: #{tpu_custom_call.1} parent=1 // pred_region
      %3768 = dma.done [#allocation6], 128
    $region61: #{tpu_custom_call.1} parent=1 // pred_fallthru
      _
    %3769 = vsyncpa [#allocation5], 1
    %3770 = vsyncpa [#allocation8], 1
    %3771 = vsyncpa [#allocation11], 1
    %3772 = vsyncpa [#allocation6], 1

</llo_original>
